<compile_context>
chip_gen: v6e
topology: v6e:2x2x1
jax: 0.10.0
libtpu: 0.0.40
codegen_flags: <defaults>
</compile_context>

<pallas_src>
import math
import jax
import jax.numpy as jnp
from jax.experimental import pallas as pl
from jax.experimental.pallas import tpu as pltpu

# Full-precision f32 matmuls for BOTH the XLA reference and the in-kernel dots, so the
# 1e-4 numerics check is meaningful (XLA's DEFAULT f32 dot on TPU is bf16-pass based).
jax.config.update("jax_default_matmul_precision", "highest")


def _critic_kernel(obs_ref, act_ref,
                   wt_ref, tvec_ref,
                   w1h_ref, w1a_ref, hvec_ref,
                   w2_ref, w3_ref,
                   out_ref):
    """One batch tile of the full forward pass.

    obs_ref : (BT, R)        flattened observation tile (HBM dtype, cast in-kernel)
    act_ref : (BT, A)        action tile (f32)
    wt_ref  : (R, F)         trunk Linear weight (compute dtype)
    tvec_ref: (3, F)         rows = [trunk bias, LayerNorm gamma, LayerNorm beta] (f32)
    w1h_ref : (F, E*H)       head layer-1 weight (h part), ensemble packed on lanes
    w1a_ref : (A, E*H)       head layer-1 weight (action part), ensemble packed on lanes
    hvec_ref: (3, E*H)       rows = [b1_cat, b2_cat, output biases in first E+2 lanes]
    w2_ref  : (E*H, E*H)     block-diagonal head layer-2 weight
    w3_ref  : (E*H, E+2)     block-structured output weight; cols = [q_0..q_{E-1}, mean,
                             (q_0-q_1)/sqrt(2) when E==2]
    out_ref : (BT, E+2)      columns = [q_0 .. q_{E-1}, mean, unbiased std]
    """
    E = w3_ref.shape[1] - 2
    cd = wt_ref.dtype                                   # MXU compute dtype (f32 or bf16)

    # ---- trunk: Linear -> LayerNorm(eps=1e-5) -> Tanh (elementwise math in f32) ----
    obs = obs_ref[...].astype(cd)                       # in-kernel cast (VPU), no extra HBM pass
    h = jnp.dot(obs, wt_ref[...], preferred_element_type=jnp.float32)
    h = h + tvec_ref[0:1, :]
    mu = jnp.mean(h, axis=-1, keepdims=True)
    var = jnp.mean((h - mu) ** 2, axis=-1, keepdims=True)
    h = (h - mu) * jax.lax.rsqrt(var + 1e-5)
    h = h * tvec_ref[1:2, :] + tvec_ref[2:3, :]
    h = jnp.tanh(h)                                     # (BT, F), f32

    h_c = h.astype(cd)
    act_c = act_ref[...].astype(cd)

    # ---- Q heads, all ensemble members packed along the lane axis (width E*H) ----
    # concat(h, act) @ W1 == h @ W1h_cat + act @ W1a_cat  (avoids a lane concat),
    # merged across the ensemble: 2 matmuls total instead of 2*E.
    z1 = (jnp.dot(h_c, w1h_ref[...], preferred_element_type=jnp.float32)
          + jnp.dot(act_c, w1a_ref[...], preferred_element_type=jnp.float32)
          + hvec_ref[0:1, :])
    z1 = jnp.maximum(z1, 0.0).astype(cd)

    # layer 2: one block-diagonal (E*H, E*H) matmul instead of E small (H, H) ones.
    z2 = jnp.dot(z1, w2_ref[...], preferred_element_type=jnp.float32) + hvec_ref[1:2, :]
    z2 = jnp.maximum(z2, 0.0).astype(cd)

    # output layer: MXU emits qs, their mean, and (E==2) the scaled signed difference
    # directly -> no cross-lane XLU reductions, one dense (BT, E+2) result slab.
    full = (jnp.dot(z2, w3_ref[...], preferred_element_type=jnp.float32)
            + hvec_ref[2:3, :E + 2])

    if E == 2:
        # unbiased std for two samples = |q0 - q1| / sqrt(2); column E+1 holds the
        # signed scaled difference, so only abs() remains.
        col = jax.lax.broadcasted_iota(jnp.int32, full.shape, 1)
        out = jnp.where(col == E + 1, jnp.abs(full), full)
    else:
        # general E: mean column comes from the matmul; std via a small lane reduce.
        qs = full[:, :E]
        m = full[:, E:E + 1]
        var_q = jnp.sum((qs - m) ** 2, axis=-1, keepdims=True) * (1.0 / (E - 1))
        out = jnp.concatenate([full[:, :E + 1], jnp.sqrt(var_q)], axis=-1)

    out_ref[...] = out                                  # single full-tile store


def pack_params(params, use_bf16=False):
    """Fold the ensemble into the lane axis, build block-diagonal head weights, and fold
    the ensemble mean / (E==2) std-difference into extra output columns.

    Done once host-side (outside the hot path).  use_bf16=True casts the matmul weights
    to bfloat16 (f32 accumulation kept in-kernel) — a throughput lever on v5e, v6e and
    v7x alike (bf16-native MXUs); numerics loosen to ~1e-3.
    """
    E, F, H = params["w1h"].shape
    A = params["w1a"].shape[1]
    assert E >= 2, "ensemble_size must be >= 2 (unbiased std divides by E-1)"
    EH = E * H
    wd = jnp.bfloat16 if use_bf16 else jnp.float32

    # (E, F, H) -> (F, E*H) with ensemble-major lane order [e0 h-block, e1 h-block, ...]
    w1h_cat = jnp.transpose(params["w1h"], (1, 0, 2)).reshape(F, EH)
    w1a_cat = jnp.transpose(params["w1a"], (1, 0, 2)).reshape(A, EH)

    w2bd = jnp.zeros((EH, EH), jnp.float32)
    w3bd = jnp.zeros((EH, E + 2), jnp.float32)
    for e in range(E):
        w2bd = w2bd.at[e * H:(e + 1) * H, e * H:(e + 1) * H].set(params["w2"][e])
        col = params["w3"][e, 0]                                  # (H,)
        w3bd = w3bd.at[e * H:(e + 1) * H, e].set(col)             # q_e column
        w3bd = w3bd.at[e * H:(e + 1) * H, E].set(col / E)         # mean column

    b3 = params["b3"].reshape(E)
    b3_out = jnp.zeros((E + 2,), jnp.float32).at[:E].set(b3).at[E].set(b3.mean())
    if E == 2:
        s = 1.0 / math.sqrt(2.0)
        w3bd = w3bd.at[0:H, E + 1].set(params["w3"][0, 0] * s)
        w3bd = w3bd.at[H:2 * H, E + 1].set(-params["w3"][1, 0] * s)
        b3_out = b3_out.at[E + 1].set((b3[0] - b3[1]) * s)
    # (E > 2: std column stays zero; kernel computes the std from the qs lanes.)

    b1_cat = params["b1"].reshape(1, EH)
    b2_cat = params["b2"].reshape(1, EH)
    b3_row = jnp.zeros((1, EH), jnp.float32).at[0, :E + 2].set(b3_out)
    hvec = jnp.concatenate([b1_cat, b2_cat, b3_row], axis=0)                     # (3, E*H)

    tvec = jnp.concatenate([params["bt"], params["gamma"], params["beta"]], axis=0)  # (3, F)

    return {
        "wt": params["wt"].astype(wd),
        "tvec": tvec.astype(jnp.float32),
        "w1h": w1h_cat.astype(wd),
        "w1a": w1a_cat.astype(wd),
        "hvec": hvec.astype(jnp.float32),
        "w2bd": w2bd.astype(wd),
        "w3bd": w3bd.astype(wd),
    }


def _round_up(x, m):
    return ((x + m - 1) // m) * m


def _pick_batch_tile(B, obs_itemsize):
    """Batch tile: sublane-granule aligned, big (HBM roofline), but capped so it fits the
    per-generation scoped-VMEM defaults (v5e 16 MiB / v7x 32 MiB / v6e 32 MiB) with
    double-buffered obs tiles, and small enough that the grid has >= 2 steps whenever the
    batch allows it (so v7x's two TensorCores both get work)."""
    granule = 16 if obs_itemsize == 2 else 8            # bf16 packs 16 sublanes / vreg
    max_bt = 2048 if obs_itemsize == 2 else 1024
    half = _round_up(pl.cdiv(B, 2), granule)
    return int(max(granule, min(max_bt, half)))


def ensemble_q_critic_forward(obs, action, packed):
    """Returns (Qs, mean, scale) where scale = std + 0.001 (the Normal's stddev)."""
    B = obs.shape[0]
    # No wrapper-side compute-dtype cast: obs goes to the kernel in its HBM dtype and is
    # cast on the VPU after the load (supply bf16 obs upstream to halve HBM traffic).
    obs2d = obs.reshape(B, -1)
    if obs2d.dtype not in (jnp.float32, jnp.bfloat16):
        obs2d = obs2d.astype(jnp.float32)
    act2d = action.reshape(B, -1).astype(jnp.float32)   # num_actions == 1
    # TODO(synk): num_actions > 1 (action reshaped to (B, n, action_dim)) and the
    # discrete=True branch are not implemented in this kernel.

    R = obs2d.shape[1]
    A = act2d.shape[1]
    F = packed["wt"].shape[1]
    EH = packed["w2bd"].shape[0]
    Ep2 = packed["w3bd"].shape[1]
    E = Ep2 - 2

    BT = _pick_batch_tile(B, jnp.dtype(obs2d.dtype).itemsize)
    B_pad = _round_up(B, BT)
    if B_pad != B:                                       # pad, don't fall back to 1 huge tile
        obs2d = jnp.pad(obs2d, ((0, B_pad - B), (0, 0)))
        act2d = jnp.pad(act2d, ((0, B_pad - B), (0, 0)))
    grid = (B_pad // BT,)

    fixed = lambda shape: pl.BlockSpec(shape, lambda i: (0, 0))   # VMEM-resident weights

    out = pl.pallas_call(
        _critic_kernel,
        out_shape=jax.ShapeDtypeStruct((B_pad, Ep2), jnp.float32),
        grid=grid,
        in_specs=[
            pl.BlockSpec((BT, R), lambda i: (i, 0)),   # obs tile
            pl.BlockSpec((BT, A), lambda i: (i, 0)),   # action tile
            fixed((R, F)),                             # wt
            fixed((3, F)),                             # tvec  (bt, gamma, beta)
            fixed((F, EH)),                            # w1h_cat
            fixed((A, EH)),                            # w1a_cat
            fixed((3, EH)),                            # hvec  (b1, b2, output biases)
            fixed((EH, EH)),                           # w2 block-diagonal
            fixed((EH, Ep2)),                          # w3 block-structured (+mean/diff cols)
        ],
        out_specs=pl.BlockSpec((BT, Ep2), lambda i: (i, 0)),
        compiler_params=pltpu.CompilerParams(
            dimension_semantics=("parallel",)),        # batch tiles are independent
    )(obs2d, act2d,
      packed["wt"], packed["tvec"],
      packed["w1h"], packed["w1a"], packed["hvec"],
      packed["w2bd"], packed["w3bd"])

    out = out[:B]
    qs_lane = out[:, :E]                                # (B, E)
    mean = out[:, E:E + 1]                              # (B, 1)
    std = out[:, E + 1:E + 2]                           # (B, 1)
    Qs = jnp.transpose(qs_lane, (1, 0))[:, :, None]     # (E, B, 1)
    # TODO(synk): torch.distributions.Normal has no Pallas equivalent; we return
    # (mean, std + 0.001) which fully parameterizes it, plus the raw Qs.
    return Qs, mean, std + 0.001


def make_params(key, repr_dim, feature_dim, hidden_dim, action_dim, ensemble_size):
    ks = jax.random.split(key, 8)
    in_dim = feature_dim + action_dim
    E, F, H, A, R = ensemble_size, feature_dim, hidden_dim, action_dim, repr_dim
    n = jax.random.normal
    return {
        "wt": n(ks[0], (R, F), jnp.float32) / math.sqrt(R),
        "bt": n(ks[1], (1, F), jnp.float32) * 0.01,
        "gamma": jnp.ones((1, F), jnp.float32),
        "beta": jnp.zeros((1, F), jnp.float32),
        "w1h": n(ks[2], (E, F, H), jnp.float32) / math.sqrt(in_dim),
        "w1a": n(ks[3], (E, A, H), jnp.float32) / math.sqrt(in_dim),
        "b1": n(ks[4], (E, 1, H), jnp.float32) * 0.01,
        "w2": n(ks[5], (E, H, H), jnp.float32) / math.sqrt(H),
        "b2": n(ks[6], (E, 1, H), jnp.float32) * 0.01,
        "w3": n(ks[7], (E, 1, H), jnp.float32) / math.sqrt(H),
        "b3": jnp.zeros((E, 1, 1), jnp.float32),
    }


def reference_forward(obs, action, p):
    """Pure-JAX replica of the PyTorch forward (continuous path) on unpacked params."""
    B = obs.shape[0]
    x = obs.reshape(B, -1)
    h = x @ p["wt"] + p["bt"]
    mu = h.mean(-1, keepdims=True)
    var = ((h - mu) ** 2).mean(-1, keepdims=True)
    h = (h - mu) / jnp.sqrt(var + 1e-5) * p["gamma"] + p["beta"]
    h = jnp.tanh(h)
    a = action.reshape(B, -1)
    xin = jnp.concatenate([h, a], -1)
    w1 = jnp.concatenate([p["w1h"], p["w1a"]], axis=1)
    qs = []
    for e in range(p["w1h"].shape[0]):
        z1 = jax.nn.relu(xin @ w1[e] + p["b1"][e])
        z2 = jax.nn.relu(z1 @ p["w2"][e] + p["b2"][e])
        q = z2 @ p["w3"][e].T + p["b3"][e]
        qs.append(q)
    Qs = jnp.stack(qs, 0)                     # (E, B, 1)
    mean = Qs.mean(0)
    std = Qs.std(0, ddof=1)
    return Qs, mean, std + 0.001


if __name__ == "__main__":
    # module hyper-params (small, consistent with the PyTorch __init__)
    repr_shape = (4, 16, 16)          # repr_dim = 1024
    feature_dim = 64
    hidden_dim = 64
    action_dim = 6
    ensemble_size = 2
    B = 8

    repr_dim = math.prod(repr_shape)
    key = jax.random.PRNGKey(0)
    k_obs, k_act, k_par = jax.random.split(key, 3)

    obs = jax.random.normal(k_obs, (B,) + repr_shape, jnp.float32)
    action = jax.random.normal(k_act, (B, action_dim), jnp.float32)
    params = make_params(k_par, repr_dim, feature_dim, hidden_dim, action_dim, ensemble_size)

    # f32 packing so the 1e-4 numerics check holds; use_bf16=True is the throughput
    # path on all TPU generations (v5e/v6e/v7x), with ~1e-3 agreement instead.
    packed = pack_params(params, use_bf16=False)

    Qs, mean, scale = ensemble_q_critic_forward(obs, action, packed)
    jax.block_until_ready((Qs, mean, scale))

    # numerical check against the pure-JAX reference (original, unpacked params)
    Qs_r, mean_r, scale_r = reference_forward(obs, action, params)
    assert Qs.shape == (ensemble_size, B, 1)
    assert mean.shape == (B, 1) and scale.shape == (B, 1)
    assert jnp.allclose(Qs, Qs_r, atol=1e-4, rtol=1e-4)
    assert jnp.allclose(mean, mean_r, atol=1e-4, rtol=1e-4)
    assert jnp.allclose(scale, scale_r, atol=1e-4, rtol=1e-4)
    assert not bool(jnp.isnan(mean).any()) and not bool(jnp.isinf(mean).any())

    print("KERNEL_OK")
</pallas_src>

<mosaic_0001>
module attributes {stable_mosaic.version = 11 : i64} {
  func.func @_critic_kernel(%arg0: i32, %arg1: memref<8x1024xf32, #tpu.memory_space<vmem>>, %arg2: memref<8x6xf32, #tpu.memory_space<vmem>>, %arg3: memref<1024x64xf32, #tpu.memory_space<vmem>>, %arg4: memref<3x64xf32, #tpu.memory_space<vmem>>, %arg5: memref<64x128xf32, #tpu.memory_space<vmem>>, %arg6: memref<6x128xf32, #tpu.memory_space<vmem>>, %arg7: memref<3x128xf32, #tpu.memory_space<vmem>>, %arg8: memref<128x128xf32, #tpu.memory_space<vmem>>, %arg9: memref<128x4xf32, #tpu.memory_space<vmem>>, %arg10: memref<8x4xf32, #tpu.memory_space<vmem>>) attributes {dimension_semantics = [#tpu.dimension_semantics<parallel>], iteration_bounds = array<i64: 1>, scalar_prefetch = 0 : i64, scratch_operands = 0 : i64, tpu.core_type = #tpu.core_type<tc>, window_params = [{transform_indices = @transform_0, window_bounds = array<i64: 8, 1024>}, {transform_indices = @transform_1, window_bounds = array<i64: 8, 6>}, {pipeline_mode = #tpu.pipeline_mode<synchronous>, transform_indices = @transform_2, window_bounds = array<i64: 1024, 64>}, {pipeline_mode = #tpu.pipeline_mode<synchronous>, transform_indices = @transform_3, window_bounds = array<i64: 3, 64>}, {pipeline_mode = #tpu.pipeline_mode<synchronous>, transform_indices = @transform_4, window_bounds = array<i64: 64, 128>}, {pipeline_mode = #tpu.pipeline_mode<synchronous>, transform_indices = @transform_5, window_bounds = array<i64: 6, 128>}, {pipeline_mode = #tpu.pipeline_mode<synchronous>, transform_indices = @transform_6, window_bounds = array<i64: 3, 128>}, {pipeline_mode = #tpu.pipeline_mode<synchronous>, transform_indices = @transform_7, window_bounds = array<i64: 128, 128>}, {pipeline_mode = #tpu.pipeline_mode<synchronous>, transform_indices = @transform_8, window_bounds = array<i64: 128, 4>}, {transform_indices = @transform_9, window_bounds = array<i64: 8, 4>}]} {
    %c0 = arith.constant 0 : index
    %c0_0 = arith.constant 0 : index
    %0 = vector.load %arg1[%c0, %c0_0] : memref<8x1024xf32, #tpu.memory_space<vmem>>, vector<8x1024xf32>
    %c0_1 = arith.constant 0 : index
    %c0_2 = arith.constant 0 : index
    %1 = vector.load %arg3[%c0_1, %c0_2] : memref<1024x64xf32, #tpu.memory_space<vmem>>, vector<1024x64xf32>
    %cst = arith.constant dense<0.000000e+00> : vector<8x64xf32>
    %2 = tpu.matmul %0, %1, %cst {dimension_numbers = #tpu.dot_dimension_numbers<[1], [0], [0], [1], [0, 0, 1, 1], [], []>, precision = #tpu.contract_precision<fp32>} : vector<8x1024xf32>, vector<1024x64xf32>, vector<8x64xf32> -> vector<8x64xf32>
    %c0_3 = arith.constant 0 : index
    %c0_4 = arith.constant 0 : index
    %3 = vector.load %arg4[%c0_3, %c0_4] : memref<3x64xf32, #tpu.memory_space<vmem>>, vector<1x64xf32>
    %4 = vector.broadcast %3 : vector<1x64xf32> to vector<8x64xf32>
    %5 = arith.addf %2, %4 : vector<8x64xf32>
    %cst_5 = arith.constant dense<0.000000e+00> : vector<8xf32>
    %6 = vector.multi_reduction <add>, %5, %cst_5 [1] : vector<8x64xf32> to vector<8xf32>
    %7 = vector.shape_cast %6 : vector<8xf32> to vector<8x1xf32>
    %cst_6 = arith.constant 6.400000e+01 : f32
    %8 = vector.broadcast %cst_6 : f32 to vector<8x1xf32>
    %9 = arith.divf %7, %8 : vector<8x1xf32>
    %10 = vector.broadcast %9 : vector<8x1xf32> to vector<8x64xf32>
    %11 = arith.subf %5, %10 : vector<8x64xf32>
    %12 = arith.mulf %11, %11 : vector<8x64xf32>
    %cst_7 = arith.constant dense<0.000000e+00> : vector<8xf32>
    %13 = vector.multi_reduction <add>, %12, %cst_7 [1] : vector<8x64xf32> to vector<8xf32>
    %14 = vector.shape_cast %13 : vector<8xf32> to vector<8x1xf32>
    %cst_8 = arith.constant 6.400000e+01 : f32
    %15 = vector.broadcast %cst_8 : f32 to vector<8x1xf32>
    %16 = arith.divf %14, %15 : vector<8x1xf32>
    %17 = vector.broadcast %9 : vector<8x1xf32> to vector<8x64xf32>
    %18 = arith.subf %5, %17 : vector<8x64xf32>
    %cst_9 = arith.constant 9.99999974E-6 : f32
    %19 = vector.broadcast %cst_9 : f32 to vector<8x1xf32>
    %20 = arith.addf %16, %19 : vector<8x1xf32>
    %21 = math.rsqrt %20 : vector<8x1xf32>
    %22 = vector.broadcast %21 : vector<8x1xf32> to vector<8x64xf32>
    %23 = arith.mulf %18, %22 : vector<8x64xf32>
    %c1 = arith.constant 1 : index
    %c0_10 = arith.constant 0 : index
    %24 = vector.load %arg4[%c1, %c0_10] : memref<3x64xf32, #tpu.memory_space<vmem>>, vector<1x64xf32>
    %25 = vector.broadcast %24 : vector<1x64xf32> to vector<8x64xf32>
    %26 = arith.mulf %23, %25 : vector<8x64xf32>
    %c2 = arith.constant 2 : index
    %c0_11 = arith.constant 0 : index
    %27 = vector.load %arg4[%c2, %c0_11] : memref<3x64xf32, #tpu.memory_space<vmem>>, vector<1x64xf32>
    %28 = vector.broadcast %27 : vector<1x64xf32> to vector<8x64xf32>
    %29 = arith.addf %26, %28 : vector<8x64xf32>
    %30 = math.tanh %29 : vector<8x64xf32>
    %c0_12 = arith.constant 0 : index
    %c0_13 = arith.constant 0 : index
    %31 = vector.load %arg2[%c0_12, %c0_13] : memref<8x6xf32, #tpu.memory_space<vmem>>, vector<8x6xf32>
    %c0_14 = arith.constant 0 : index
    %c0_15 = arith.constant 0 : index
    %32 = vector.load %arg5[%c0_14, %c0_15] : memref<64x128xf32, #tpu.memory_space<vmem>>, vector<64x128xf32>
    %cst_16 = arith.constant dense<0.000000e+00> : vector<8x128xf32>
    %33 = tpu.matmul %30, %32, %cst_16 {dimension_numbers = #tpu.dot_dimension_numbers<[1], [0], [0], [1], [0, 0, 1, 1], [], []>, precision = #tpu.contract_precision<fp32>} : vector<8x64xf32>, vector<64x128xf32>, vector<8x128xf32> -> vector<8x128xf32>
    %c0_17 = arith.constant 0 : index
    %c0_18 = arith.constant 0 : index
    %34 = vector.load %arg6[%c0_17, %c0_18] : memref<6x128xf32, #tpu.memory_space<vmem>>, vector<6x128xf32>
    %cst_19 = arith.constant dense<0.000000e+00> : vector<8x128xf32>
    %35 = tpu.matmul %31, %34, %cst_19 {dimension_numbers = #tpu.dot_dimension_numbers<[1], [0], [0], [1], [0, 0, 1, 1], [], []>, precision = #tpu.contract_precision<fp32>} : vector<8x6xf32>, vector<6x128xf32>, vector<8x128xf32> -> vector<8x128xf32>
    %36 = arith.addf %33, %35 : vector<8x128xf32>
    %c0_20 = arith.constant 0 : index
    %c0_21 = arith.constant 0 : index
    %37 = vector.load %arg7[%c0_20, %c0_21] : memref<3x128xf32, #tpu.memory_space<vmem>>, vector<1x128xf32>
    %38 = vector.broadcast %37 : vector<1x128xf32> to vector<8x128xf32>
    %39 = arith.addf %36, %38 : vector<8x128xf32>
    %cst_22 = arith.constant 0.000000e+00 : f32
    %40 = vector.broadcast %cst_22 : f32 to vector<8x128xf32>
    %41 = arith.maximumf %39, %40 : vector<8x128xf32>
    %c0_23 = arith.constant 0 : index
    %c0_24 = arith.constant 0 : index
    %42 = vector.load %arg8[%c0_23, %c0_24] : memref<128x128xf32, #tpu.memory_space<vmem>>, vector<128x128xf32>
    %cst_25 = arith.constant dense<0.000000e+00> : vector<8x128xf32>
    %43 = tpu.matmul %41, %42, %cst_25 {dimension_numbers = #tpu.dot_dimension_numbers<[1], [0], [0], [1], [0, 0, 1, 1], [], []>, precision = #tpu.contract_precision<fp32>} : vector<8x128xf32>, vector<128x128xf32>, vector<8x128xf32> -> vector<8x128xf32>
    %c1_26 = arith.constant 1 : index
    %c0_27 = arith.constant 0 : index
    %44 = vector.load %arg7[%c1_26, %c0_27] : memref<3x128xf32, #tpu.memory_space<vmem>>, vector<1x128xf32>
    %45 = vector.broadcast %44 : vector<1x128xf32> to vector<8x128xf32>
    %46 = arith.addf %43, %45 : vector<8x128xf32>
    %cst_28 = arith.constant 0.000000e+00 : f32
    %47 = vector.broadcast %cst_28 : f32 to vector<8x128xf32>
    %48 = arith.maximumf %46, %47 : vector<8x128xf32>
    %c0_29 = arith.constant 0 : index
    %c0_30 = arith.constant 0 : index
    %49 = vector.load %arg9[%c0_29, %c0_30] : memref<128x4xf32, #tpu.memory_space<vmem>>, vector<128x4xf32>
    %cst_31 = arith.constant dense<0.000000e+00> : vector<8x4xf32>
    %50 = tpu.matmul %48, %49, %cst_31 {dimension_numbers = #tpu.dot_dimension_numbers<[1], [0], [0], [1], [0, 0, 1, 1], [], []>, precision = #tpu.contract_precision<fp32>} : vector<8x128xf32>, vector<128x4xf32>, vector<8x4xf32> -> vector<8x4xf32>
    %c2_32 = arith.constant 2 : index
    %c0_33 = arith.constant 0 : index
    %51 = vector.load %arg7[%c2_32, %c0_33] : memref<3x128xf32, #tpu.memory_space<vmem>>, vector<1x4xf32>
    %52 = vector.broadcast %51 : vector<1x4xf32> to vector<8x4xf32>
    %53 = arith.addf %50, %52 : vector<8x4xf32>
    %54 = tpu.iota {dimensions = array<i32: 1>} : vector<8x4xi32>
    %c3_i32 = arith.constant 3 : i32
    %55 = vector.broadcast %c3_i32 : i32 to vector<8x4xi32>
    %56 = arith.cmpi eq, %54, %55 : vector<8x4xi32>
    %57 = math.absf %53 : vector<8x4xf32>
    %58 = arith.select %56, %57, %53 : vector<8x4xi1>, vector<8x4xf32>
    %c0_34 = arith.constant 0 : index
    %c0_35 = arith.constant 0 : index
    %59 = vector.load %arg10[%c0_34, %c0_35] : memref<8x4xf32, #tpu.memory_space<vmem>>, vector<8x4xf32>
    tpu.vector_store %arg10[%c0_34, %c0_35], %58 {strides = array<i32>} : memref<8x4xf32, #tpu.memory_space<vmem>>, vector<8x4xf32>,
    return
  }
  func.func @transform_0(%arg0: i32) -> (i32, i32) {
    %c0_i32 = arith.constant 0 : i32
    %c0_i32_0 = arith.constant 0 : i32
    return %arg0, %c0_i32 : i32, i32
  }
  func.func @transform_1(%arg0: i32) -> (i32, i32) {
    %c0_i32 = arith.constant 0 : i32
    %c0_i32_0 = arith.constant 0 : i32
    return %arg0, %c0_i32 : i32, i32
  }
  func.func @transform_2(%arg0: i32) -> (i32, i32) {
    %c0_i32 = arith.constant 0 : i32
    %c0_i32_0 = arith.constant 0 : i32
    %c0_i32_1 = arith.constant 0 : i32
    return %c0_i32, %c0_i32_0 : i32, i32
  }
  func.func @transform_3(%arg0: i32) -> (i32, i32) {
    %c0_i32 = arith.constant 0 : i32
    %c0_i32_0 = arith.constant 0 : i32
    %c0_i32_1 = arith.constant 0 : i32
    return %c0_i32, %c0_i32_0 : i32, i32
  }
  func.func @transform_4(%arg0: i32) -> (i32, i32) {
    %c0_i32 = arith.constant 0 : i32
    %c0_i32_0 = arith.constant 0 : i32
    %c0_i32_1 = arith.constant 0 : i32
    return %c0_i32, %c0_i32_0 : i32, i32
  }
  func.func @transform_5(%arg0: i32) -> (i32, i32) {
    %c0_i32 = arith.constant 0 : i32
    %c0_i32_0 = arith.constant 0 : i32
    %c0_i32_1 = arith.constant 0 : i32
    return %c0_i32, %c0_i32_0 : i32, i32
  }
  func.func @transform_6(%arg0: i32) -> (i32, i32) {
    %c0_i32 = arith.constant 0 : i32
    %c0_i32_0 = arith.constant 0 : i32
    %c0_i32_1 = arith.constant 0 : i32
    return %c0_i32, %c0_i32_0 : i32, i32
  }
  func.func @transform_7(%arg0: i32) -> (i32, i32) {
    %c0_i32 = arith.constant 0 : i32
    %c0_i32_0 = arith.constant 0 : i32
    %c0_i32_1 = arith.constant 0 : i32
    return %c0_i32, %c0_i32_0 : i32, i32
  }
  func.func @transform_8(%arg0: i32) -> (i32, i32) {
    %c0_i32 = arith.constant 0 : i32
    %c0_i32_0 = arith.constant 0 : i32
    %c0_i32_1 = arith.constant 0 : i32
    return %c0_i32, %c0_i32_0 : i32, i32
  }
  func.func @transform_9(%arg0: i32) -> (i32, i32) {
    %c0_i32 = arith.constant 0 : i32
    %c0_i32_0 = arith.constant 0 : i32
    return %arg0, %c0_i32 : i32, i32
  }
}

</mosaic_0001>

<llo_original>
// kernel: tpu_custom_call.1
$region0: #{tpu_custom_call.1}
  #allocation0 [shape = 'u32[]', space=smem, size = 0x4, offset = 0x4, fixed_abs, tag = 'smem constant byte address 0x4 - core index']
  #allocation1 [shape = 'u32[144,128]{1,0:T(1,128)}', space=vmem, size = 0x12000, scoped, tag = 'internal scratch']
  %s0 = inlined_call_operand.vmem [shape: f32[8,1024], index: 0, kind: input, shape index: {}]
  %s1 = inlined_call_operand.vmem [shape: f32[8,6], index: 1, kind: input, shape index: {}]
  %s2 = inlined_call_operand.vmem [shape: f32[1024,64], index: 2, kind: input, shape index: {}]
  %s3 = inlined_call_operand.vmem [shape: f32[3,64], index: 3, kind: input, shape index: {}]
  %s4 = inlined_call_operand.vmem [shape: f32[64,128], index: 4, kind: input, shape index: {}]
  %s5 = inlined_call_operand.vmem [shape: f32[6,128], index: 5, kind: input, shape index: {}]
  %s6 = inlined_call_operand.vmem [shape: f32[3,128], index: 6, kind: input, shape index: {}]
  %s7 = inlined_call_operand.vmem [shape: f32[128,128], index: 7, kind: input, shape index: {}]
  %s8 = inlined_call_operand.vmem [shape: f32[128,4], index: 8, kind: input, shape index: {}]
  %s9 = inlined_call_operand.vmem [shape: f32[8,4], index: 9, kind: output, shape index: {}]
  %s10 = sld [smem:[#allocation0]]
  $region46: #{tpu_custom_call.1} parent=0
    _
  %s12 = ssub.s32 1, %s10
  %s13 = scalar_select 0, %s12, %s10
  // Predicated region
  $region2: #{tpu_custom_call.1} parent=0 // pred_check
    _
  $region3: #{tpu_custom_call.1} parent=0 // pred_check_branch
    %15 = sbr.rel (0) target = $region5
  $region4: #{tpu_custom_call.1} parent=0 // pred_region
    _
  $region5: #{tpu_custom_call.1} parent=0 // pred_fallthru
    _
  // Predicated region
  $region6: #{tpu_custom_call.1} parent=0 // pred_check
    _
  $region7: #{tpu_custom_call.1} parent=0 // pred_check_branch
    %17 = sbr.rel (0) target = $region9
  $region8: #{tpu_custom_call.1} parent=0 // pred_region
    _
  $region9: #{tpu_custom_call.1} parent=0 // pred_fallthru
    _
  // Predicated region
  $region10: #{tpu_custom_call.1} parent=0 // pred_check
    _
  $region11: #{tpu_custom_call.1} parent=0 // pred_check_branch
    %19 = sbr.rel (0) target = $region13
  $region12: #{tpu_custom_call.1} parent=0 // pred_region
    _
  $region13: #{tpu_custom_call.1} parent=0 // pred_fallthru
    _
  // Predicated region
  $region14: #{tpu_custom_call.1} parent=0 // pred_check
    _
  $region15: #{tpu_custom_call.1} parent=0 // pred_check_branch
    %21 = sbr.rel (0) target = $region17
  $region16: #{tpu_custom_call.1} parent=0 // pred_region
    _
  $region17: #{tpu_custom_call.1} parent=0 // pred_fallthru
    _
  // Predicated region
  $region18: #{tpu_custom_call.1} parent=0 // pred_check
    _
  $region19: #{tpu_custom_call.1} parent=0 // pred_check_branch
    %23 = sbr.rel (0) target = $region21
  $region20: #{tpu_custom_call.1} parent=0 // pred_region
    _
  $region21: #{tpu_custom_call.1} parent=0 // pred_fallthru
    _
  // Predicated region
  $region22: #{tpu_custom_call.1} parent=0 // pred_check
    _
  $region23: #{tpu_custom_call.1} parent=0 // pred_check_branch
    %25 = sbr.rel (0) target = $region25
  $region24: #{tpu_custom_call.1} parent=0 // pred_region
    _
  $region25: #{tpu_custom_call.1} parent=0 // pred_fallthru
    _
  // Predicated region
  $region26: #{tpu_custom_call.1} parent=0 // pred_check
    _
  $region27: #{tpu_custom_call.1} parent=0 // pred_check_branch
    %27 = sbr.rel (0) target = $region29
  $region28: #{tpu_custom_call.1} parent=0 // pred_region
    _
  $region29: #{tpu_custom_call.1} parent=0 // pred_fallthru
    _
  // Predicated region
  $region30: #{tpu_custom_call.1} parent=0 // pred_check
    _
  $region31: #{tpu_custom_call.1} parent=0 // pred_check_branch
    %29 = sbr.rel (0) target = $region33
  $region32: #{tpu_custom_call.1} parent=0 // pred_region
    _
  $region33: #{tpu_custom_call.1} parent=0 // pred_fallthru
    _
  // Predicated region
  $region34: #{tpu_custom_call.1} parent=0 // pred_check
    _
  $region35: #{tpu_custom_call.1} parent=0 // pred_check_branch
    %31 = sbr.rel (0) target = $region37
  $region36: #{tpu_custom_call.1} parent=0 // pred_region
    _
  $region37: #{tpu_custom_call.1} parent=0 // pred_fallthru
    _
  %v32 = vld [vmem:[%s0] sm:$0xff]
  %v33 = vld [vmem:[%s0 + $0x8] sm:$0xff]
  %v34 = vld [vmem:[%s0 + $0x10] sm:$0xff]
  %v35 = vld [vmem:[%s0 + $0x18] sm:$0xff]
  %v36 = vld [vmem:[%s0 + $0x20] sm:$0xff]
  %v37 = vld [vmem:[%s0 + $0x28] sm:$0xff]
  %v38 = vld [vmem:[%s0 + $0x30] sm:$0xff]
  %v39 = vld [vmem:[%s0 + $0x38] sm:$0xff]
  %v40 = vld [vmem:[%s2] sm:$0xff]
  %v41 = vld [vmem:[%s2 + $0x8] sm:$0xff]
  %v42 = vld [vmem:[%s2 + $0x10] sm:$0xff]
  %v43 = vld [vmem:[%s2 + $0x18] sm:$0xff]
  %v44 = vld [vmem:[%s2 + $0x20] sm:$0xff]
  %v45 = vld [vmem:[%s2 + $0x28] sm:$0xff]
  %v46 = vld [vmem:[%s2 + $0x30] sm:$0xff]
  %v47 = vld [vmem:[%s2 + $0x38] sm:$0xff]
  %v48 = vld [vmem:[%s2 + $0x40] sm:$0xff]
  %v49 = vld [vmem:[%s2 + $0x48] sm:$0xff]
  %v50 = vld [vmem:[%s2 + $0x50] sm:$0xff]
  %v51 = vld [vmem:[%s2 + $0x58] sm:$0xff]
  %v52 = vld [vmem:[%s2 + $0x60] sm:$0xff]
  %v53 = vld [vmem:[%s2 + $0x68] sm:$0xff]
  %v54 = vld [vmem:[%s2 + $0x70] sm:$0xff]
  %v55 = vld [vmem:[%s2 + $0x78] sm:$0xff]
  %v56 = vld [vmem:[%s2 + $0x80] sm:$0xff]
  %v57 = vld [vmem:[%s2 + $0x88] sm:$0xff]
  %v58 = vld [vmem:[%s2 + $0x90] sm:$0xff]
  %v59 = vld [vmem:[%s2 + $0x98] sm:$0xff]
  %v60 = vld [vmem:[%s2 + $0xa0] sm:$0xff]
  %v61 = vld [vmem:[%s2 + $0xa8] sm:$0xff]
  %v62 = vld [vmem:[%s2 + $0xb0] sm:$0xff]
  %v63 = vld [vmem:[%s2 + $0xb8] sm:$0xff]
  %v64 = vld [vmem:[%s2 + $0xc0] sm:$0xff]
  %v65 = vld [vmem:[%s2 + $0xc8] sm:$0xff]
  %v66 = vld [vmem:[%s2 + $0xd0] sm:$0xff]
  %v67 = vld [vmem:[%s2 + $0xd8] sm:$0xff]
  %v68 = vld [vmem:[%s2 + $0xe0] sm:$0xff]
  %v69 = vld [vmem:[%s2 + $0xe8] sm:$0xff]
  %v70 = vld [vmem:[%s2 + $0xf0] sm:$0xff]
  %v71 = vld [vmem:[%s2 + $0xf8] sm:$0xff]
  %v72 = vld [vmem:[%s2 + $0x100] sm:$0xff]
  %v73 = vld [vmem:[%s2 + $0x108] sm:$0xff]
  %v74 = vld [vmem:[%s2 + $0x110] sm:$0xff]
  %v75 = vld [vmem:[%s2 + $0x118] sm:$0xff]
  %v76 = vld [vmem:[%s2 + $0x120] sm:$0xff]
  %v77 = vld [vmem:[%s2 + $0x128] sm:$0xff]
  %v78 = vld [vmem:[%s2 + $0x130] sm:$0xff]
  %v79 = vld [vmem:[%s2 + $0x138] sm:$0xff]
  %v80 = vld [vmem:[%s2 + $0x140] sm:$0xff]
  %v81 = vld [vmem:[%s2 + $0x148] sm:$0xff]
  %v82 = vld [vmem:[%s2 + $0x150] sm:$0xff]
  %v83 = vld [vmem:[%s2 + $0x158] sm:$0xff]
  %v84 = vld [vmem:[%s2 + $0x160] sm:$0xff]
  %v85 = vld [vmem:[%s2 + $0x168] sm:$0xff]
  %v86 = vld [vmem:[%s2 + $0x170] sm:$0xff]
  %v87 = vld [vmem:[%s2 + $0x178] sm:$0xff]
  %v88 = vld [vmem:[%s2 + $0x180] sm:$0xff]
  %v89 = vld [vmem:[%s2 + $0x188] sm:$0xff]
  %v90 = vld [vmem:[%s2 + $0x190] sm:$0xff]
  %v91 = vld [vmem:[%s2 + $0x198] sm:$0xff]
  %v92 = vld [vmem:[%s2 + $0x1a0] sm:$0xff]
  %v93 = vld [vmem:[%s2 + $0x1a8] sm:$0xff]
  %v94 = vld [vmem:[%s2 + $0x1b0] sm:$0xff]
  %v95 = vld [vmem:[%s2 + $0x1b8] sm:$0xff]
  %v96 = vld [vmem:[%s2 + $0x1c0] sm:$0xff]
  %v97 = vld [vmem:[%s2 + $0x1c8] sm:$0xff]
  %v98 = vld [vmem:[%s2 + $0x1d0] sm:$0xff]
  %v99 = vld [vmem:[%s2 + $0x1d8] sm:$0xff]
  %v100 = vld [vmem:[%s2 + $0x1e0] sm:$0xff]
  %v101 = vld [vmem:[%s2 + $0x1e8] sm:$0xff]
  %v102 = vld [vmem:[%s2 + $0x1f0] sm:$0xff]
  %v103 = vld [vmem:[%s2 + $0x1f8] sm:$0xff]
  %v104 = vld [vmem:[%s2 + $0x200] sm:$0xff]
  %v105 = vld [vmem:[%s2 + $0x208] sm:$0xff]
  %v106 = vld [vmem:[%s2 + $0x210] sm:$0xff]
  %v107 = vld [vmem:[%s2 + $0x218] sm:$0xff]
  %v108 = vld [vmem:[%s2 + $0x220] sm:$0xff]
  %v109 = vld [vmem:[%s2 + $0x228] sm:$0xff]
  %v110 = vld [vmem:[%s2 + $0x230] sm:$0xff]
  %v111 = vld [vmem:[%s2 + $0x238] sm:$0xff]
  %v112 = vld [vmem:[%s2 + $0x240] sm:$0xff]
  %v113 = vld [vmem:[%s2 + $0x248] sm:$0xff]
  %v114 = vld [vmem:[%s2 + $0x250] sm:$0xff]
  %v115 = vld [vmem:[%s2 + $0x258] sm:$0xff]
  %v116 = vld [vmem:[%s2 + $0x260] sm:$0xff]
  %v117 = vld [vmem:[%s2 + $0x268] sm:$0xff]
  %v118 = vld [vmem:[%s2 + $0x270] sm:$0xff]
  %v119 = vld [vmem:[%s2 + $0x278] sm:$0xff]
  %v120 = vld [vmem:[%s2 + $0x280] sm:$0xff]
  %v121 = vld [vmem:[%s2 + $0x288] sm:$0xff]
  %v122 = vld [vmem:[%s2 + $0x290] sm:$0xff]
  %v123 = vld [vmem:[%s2 + $0x298] sm:$0xff]
  %v124 = vld [vmem:[%s2 + $0x2a0] sm:$0xff]
  %v125 = vld [vmem:[%s2 + $0x2a8] sm:$0xff]
  %v126 = vld [vmem:[%s2 + $0x2b0] sm:$0xff]
  %v127 = vld [vmem:[%s2 + $0x2b8] sm:$0xff]
  %v128 = vld [vmem:[%s2 + $0x2c0] sm:$0xff]
  %v129 = vld [vmem:[%s2 + $0x2c8] sm:$0xff]
  %v130 = vld [vmem:[%s2 + $0x2d0] sm:$0xff]
  %v131 = vld [vmem:[%s2 + $0x2d8] sm:$0xff]
  %v132 = vld [vmem:[%s2 + $0x2e0] sm:$0xff]
  %v133 = vld [vmem:[%s2 + $0x2e8] sm:$0xff]
  %v134 = vld [vmem:[%s2 + $0x2f0] sm:$0xff]
  %v135 = vld [vmem:[%s2 + $0x2f8] sm:$0xff]
  %v136 = vld [vmem:[%s2 + $0x300] sm:$0xff]
  %v137 = vld [vmem:[%s2 + $0x308] sm:$0xff]
  %v138 = vld [vmem:[%s2 + $0x310] sm:$0xff]
  %v139 = vld [vmem:[%s2 + $0x318] sm:$0xff]
  %v140 = vld [vmem:[%s2 + $0x320] sm:$0xff]
  %v141 = vld [vmem:[%s2 + $0x328] sm:$0xff]
  %v142 = vld [vmem:[%s2 + $0x330] sm:$0xff]
  %v143 = vld [vmem:[%s2 + $0x338] sm:$0xff]
  %v144 = vld [vmem:[%s2 + $0x340] sm:$0xff]
  %v145 = vld [vmem:[%s2 + $0x348] sm:$0xff]
  %v146 = vld [vmem:[%s2 + $0x350] sm:$0xff]
  %v147 = vld [vmem:[%s2 + $0x358] sm:$0xff]
  %v148 = vld [vmem:[%s2 + $0x360] sm:$0xff]
  %v149 = vld [vmem:[%s2 + $0x368] sm:$0xff]
  %v150 = vld [vmem:[%s2 + $0x370] sm:$0xff]
  %v151 = vld [vmem:[%s2 + $0x378] sm:$0xff]
  %v152 = vld [vmem:[%s2 + $0x380] sm:$0xff]
  %v153 = vld [vmem:[%s2 + $0x388] sm:$0xff]
  %v154 = vld [vmem:[%s2 + $0x390] sm:$0xff]
  %v155 = vld [vmem:[%s2 + $0x398] sm:$0xff]
  %v156 = vld [vmem:[%s2 + $0x3a0] sm:$0xff]
  %v157 = vld [vmem:[%s2 + $0x3a8] sm:$0xff]
  %v158 = vld [vmem:[%s2 + $0x3b0] sm:$0xff]
  %v159 = vld [vmem:[%s2 + $0x3b8] sm:$0xff]
  %v160 = vld [vmem:[%s2 + $0x3c0] sm:$0xff]
  %v161 = vld [vmem:[%s2 + $0x3c8] sm:$0xff]
  %v162 = vld [vmem:[%s2 + $0x3d0] sm:$0xff]
  %v163 = vld [vmem:[%s2 + $0x3d8] sm:$0xff]
  %v164 = vld [vmem:[%s2 + $0x3e0] sm:$0xff]
  %v165 = vld [vmem:[%s2 + $0x3e8] sm:$0xff]
  %v166 = vld [vmem:[%s2 + $0x3f0] sm:$0xff]
  %v167 = vld [vmem:[%s2 + $0x3f8] sm:$0xff]
  %v168 = vld [vmem:[%s3] sm:$0x1]
  %v169 = vlaneseq
  %v170 = vshrl.u32 %v169, 7
  %v171 = vsub.s32 0, %v170
  %v172 = vrot.slane %v168, %v171
  %173 = vmatprep.subr.mxu0 0.0
  %v174 = vand.u32 %v55, 4294901760
  %175 = vmatpush1.msra.mxu0 %v174
  %176 = vmatprep.subr.mxu0 0.0
  %v177 = vand.u32 %v54, 4294901760
  %178 = vmatpush1.msra.mxu0 %v177
  %179 = vmatprep.subr.mxu0 0.0
  %v180 = vand.u32 %v53, 4294901760
  %181 = vmatpush1.msra.mxu0 %v180
  %182 = vmatprep.subr.mxu0 0.0
  %v183 = vand.u32 %v52, 4294901760
  %184 = vmatpush1.msra.mxu0 %v183
  %185 = vmatprep.subr.mxu0 0.0
  %v186 = vand.u32 %v51, 4294901760
  %187 = vmatpush1.msra.mxu0 %v186
  %188 = vmatprep.subr.mxu0 0.0
  %v189 = vand.u32 %v50, 4294901760
  %190 = vmatpush1.msra.mxu0 %v189
  %191 = vmatprep.subr.mxu0 0.0
  %v192 = vand.u32 %v49, 4294901760
  %193 = vmatpush1.msra.mxu0 %v192
  %194 = vmatprep.subr.mxu0 0.0
  %v195 = vand.u32 %v48, 4294901760
  %196 = vmatpush1.msra.mxu0 %v195
  %197 = vmatprep.subr.mxu0 0.0
  %v198 = vand.u32 %v47, 4294901760
  %199 = vmatpush1.msra.mxu0 %v198
  %200 = vmatprep.subr.mxu0 0.0
  %v201 = vand.u32 %v46, 4294901760
  %202 = vmatpush1.msra.mxu0 %v201
  %203 = vmatprep.subr.mxu0 0.0
  %v204 = vand.u32 %v45, 4294901760
  %205 = vmatpush1.msra.mxu0 %v204
  %206 = vmatprep.subr.mxu0 0.0
  %v207 = vand.u32 %v44, 4294901760
  %208 = vmatpush1.msra.mxu0 %v207
  %209 = vmatprep.subr.mxu0 0.0
  %v210 = vand.u32 %v43, 4294901760
  %211 = vmatpush1.msra.mxu0 %v210
  %212 = vmatprep.subr.mxu0 0.0
  %v213 = vand.u32 %v42, 4294901760
  %214 = vmatpush1.msra.mxu0 %v213
  %215 = vmatprep.subr.mxu0 0.0
  %v216 = vand.u32 %v41, 4294901760
  %217 = vmatpush1.msra.mxu0 %v216
  %218 = vmatprep.subr.mxu0 0.0
  %v219 = vand.u32 %v40, 4294901760
  %220 = vmatpush1.msra.mxu0 %v219
  %221 = vmatprep.subr.mxu0 0.0
  %v222 = vand.u32 %v71, 4294901760
  %223 = vmatpush2.msra.mxu0 %v222
  %224 = vmatprep.subr.mxu0 0.0
  %v225 = vand.u32 %v70, 4294901760
  %226 = vmatpush2.msra.mxu0 %v225
  %227 = vmatprep.subr.mxu0 0.0
  %v228 = vand.u32 %v69, 4294901760
  %229 = vmatpush2.msra.mxu0 %v228
  %230 = vmatprep.subr.mxu0 0.0
  %v231 = vand.u32 %v68, 4294901760
  %232 = vmatpush2.msra.mxu0 %v231
  %233 = vmatprep.subr.mxu0 0.0
  %v234 = vand.u32 %v67, 4294901760
  %235 = vmatpush2.msra.mxu0 %v234
  %236 = vmatprep.subr.mxu0 0.0
  %v237 = vand.u32 %v66, 4294901760
  %238 = vmatpush2.msra.mxu0 %v237
  %239 = vmatprep.subr.mxu0 0.0
  %v240 = vand.u32 %v65, 4294901760
  %241 = vmatpush2.msra.mxu0 %v240
  %242 = vmatprep.subr.mxu0 0.0
  %v243 = vand.u32 %v64, 4294901760
  %244 = vmatpush2.msra.mxu0 %v243
  %245 = vmatprep.subr.mxu0 0.0
  %v246 = vand.u32 %v63, 4294901760
  %247 = vmatpush2.msra.mxu0 %v246
  %248 = vmatprep.subr.mxu0 0.0
  %v249 = vand.u32 %v62, 4294901760
  %250 = vmatpush2.msra.mxu0 %v249
  %251 = vmatprep.subr.mxu0 0.0
  %v252 = vand.u32 %v61, 4294901760
  %253 = vmatpush2.msra.mxu0 %v252
  %254 = vmatprep.subr.mxu0 0.0
  %v255 = vand.u32 %v60, 4294901760
  %256 = vmatpush2.msra.mxu0 %v255
  %257 = vmatprep.subr.mxu0 0.0
  %v258 = vand.u32 %v59, 4294901760
  %259 = vmatpush2.msra.mxu0 %v258
  %260 = vmatprep.subr.mxu0 0.0
  %v261 = vand.u32 %v58, 4294901760
  %262 = vmatpush2.msra.mxu0 %v261
  %263 = vmatprep.subr.mxu0 0.0
  %v264 = vand.u32 %v57, 4294901760
  %265 = vmatpush2.msra.mxu0 %v264
  %266 = vmatprep.subr.mxu0 0.0
  %v267 = vand.u32 %v56, 4294901760
  %268 = vmatpush2.msra.mxu0 %v267
  %v269 = vand.u32 %v33, 4294901760
  %v270 = vsub.f32 %v33, %v269
  %v271 = vand.u32 %v270, 4294901760
  %v272 = vsub.f32 %v270, %v271
  %v273 = vand.u32 %v272, 4294901760
  %274 = vmatprep.mubr.f32.mxu0 %v273
  %v275 = vand.u32 %v32, 4294901760
  %v276 = vsub.f32 %v32, %v275
  %v277 = vand.u32 %v276, 4294901760
  %v278 = vsub.f32 %v276, %v277
  %v279 = vand.u32 %v278, 4294901760
  %280 = vmatmul.mubr.f32.gmra.mxu0 %v279
  %v281 = vpop.f32.mrf.mxu0
  %v282 = vadd.f32 %v172, %v281
  %v283 = vpop.f32.mrf.mxu0
  %284 = vdwg.mxu0
  %285 = vmatprep.subr.mxu0 0.0
  %v286 = vand.u32 %v55, 4294901760
  %v287 = vsub.f32 %v55, %v286
  %v288 = vand.u32 %v287, 4294901760
  %v289 = vsub.f32 %v287, %v288
  %v290 = vand.u32 %v289, 4294901760
  %291 = vmatpush1.msra.mxu0 %v290
  %292 = vmatprep.subr.mxu0 0.0
  %v293 = vand.u32 %v54, 4294901760
  %v294 = vsub.f32 %v54, %v293
  %v295 = vand.u32 %v294, 4294901760
  %v296 = vsub.f32 %v294, %v295
  %v297 = vand.u32 %v296, 4294901760
  %298 = vmatpush1.msra.mxu0 %v297
  %299 = vmatprep.subr.mxu0 0.0
  %v300 = vand.u32 %v53, 4294901760
  %v301 = vsub.f32 %v53, %v300
  %v302 = vand.u32 %v301, 4294901760
  %v303 = vsub.f32 %v301, %v302
  %v304 = vand.u32 %v303, 4294901760
  %305 = vmatpush1.msra.mxu0 %v304
  %306 = vmatprep.subr.mxu0 0.0
  %v307 = vand.u32 %v52, 4294901760
  %v308 = vsub.f32 %v52, %v307
  %v309 = vand.u32 %v308, 4294901760
  %v310 = vsub.f32 %v308, %v309
  %v311 = vand.u32 %v310, 4294901760
  %312 = vmatpush1.msra.mxu0 %v311
  %313 = vmatprep.subr.mxu0 0.0
  %v314 = vand.u32 %v51, 4294901760
  %v315 = vsub.f32 %v51, %v314
  %v316 = vand.u32 %v315, 4294901760
  %v317 = vsub.f32 %v315, %v316
  %v318 = vand.u32 %v317, 4294901760
  %319 = vmatpush1.msra.mxu0 %v318
  %320 = vmatprep.subr.mxu0 0.0
  %v321 = vand.u32 %v50, 4294901760
  %v322 = vsub.f32 %v50, %v321
  %v323 = vand.u32 %v322, 4294901760
  %v324 = vsub.f32 %v322, %v323
  %v325 = vand.u32 %v324, 4294901760
  %326 = vmatpush1.msra.mxu0 %v325
  %327 = vmatprep.subr.mxu0 0.0
  %v328 = vand.u32 %v49, 4294901760
  %v329 = vsub.f32 %v49, %v328
  %v330 = vand.u32 %v329, 4294901760
  %v331 = vsub.f32 %v329, %v330
  %v332 = vand.u32 %v331, 4294901760
  %333 = vmatpush1.msra.mxu0 %v332
  %334 = vmatprep.subr.mxu0 0.0
  %v335 = vand.u32 %v48, 4294901760
  %v336 = vsub.f32 %v48, %v335
  %v337 = vand.u32 %v336, 4294901760
  %v338 = vsub.f32 %v336, %v337
  %v339 = vand.u32 %v338, 4294901760
  %340 = vmatpush1.msra.mxu0 %v339
  %341 = vmatprep.subr.mxu0 0.0
  %v342 = vand.u32 %v47, 4294901760
  %v343 = vsub.f32 %v47, %v342
  %v344 = vand.u32 %v343, 4294901760
  %v345 = vsub.f32 %v343, %v344
  %v346 = vand.u32 %v345, 4294901760
  %347 = vmatpush1.msra.mxu0 %v346
  %348 = vmatprep.subr.mxu0 0.0
  %v349 = vand.u32 %v46, 4294901760
  %v350 = vsub.f32 %v46, %v349
  %v351 = vand.u32 %v350, 4294901760
  %v352 = vsub.f32 %v350, %v351
  %v353 = vand.u32 %v352, 4294901760
  %354 = vmatpush1.msra.mxu0 %v353
  %355 = vmatprep.subr.mxu0 0.0
  %v356 = vand.u32 %v45, 4294901760
  %v357 = vsub.f32 %v45, %v356
  %v358 = vand.u32 %v357, 4294901760
  %v359 = vsub.f32 %v357, %v358
  %v360 = vand.u32 %v359, 4294901760
  %361 = vmatpush1.msra.mxu0 %v360
  %362 = vmatprep.subr.mxu0 0.0
  %v363 = vand.u32 %v44, 4294901760
  %v364 = vsub.f32 %v44, %v363
  %v365 = vand.u32 %v364, 4294901760
  %v366 = vsub.f32 %v364, %v365
  %v367 = vand.u32 %v366, 4294901760
  %368 = vmatpush1.msra.mxu0 %v367
  %369 = vmatprep.subr.mxu0 0.0
  %v370 = vand.u32 %v43, 4294901760
  %v371 = vsub.f32 %v43, %v370
  %v372 = vand.u32 %v371, 4294901760
  %v373 = vsub.f32 %v371, %v372
  %v374 = vand.u32 %v373, 4294901760
  %375 = vmatpush1.msra.mxu0 %v374
  %376 = vmatprep.subr.mxu0 0.0
  %v377 = vand.u32 %v42, 4294901760
  %v378 = vsub.f32 %v42, %v377
  %v379 = vand.u32 %v378, 4294901760
  %v380 = vsub.f32 %v378, %v379
  %v381 = vand.u32 %v380, 4294901760
  %382 = vmatpush1.msra.mxu0 %v381
  %383 = vmatprep.subr.mxu0 0.0
  %v384 = vand.u32 %v41, 4294901760
  %v385 = vsub.f32 %v41, %v384
  %v386 = vand.u32 %v385, 4294901760
  %v387 = vsub.f32 %v385, %v386
  %v388 = vand.u32 %v387, 4294901760
  %389 = vmatpush1.msra.mxu0 %v388
  %390 = vmatprep.subr.mxu0 0.0
  %v391 = vand.u32 %v40, 4294901760
  %v392 = vsub.f32 %v40, %v391
  %v393 = vand.u32 %v392, 4294901760
  %v394 = vsub.f32 %v392, %v393
  %v395 = vand.u32 %v394, 4294901760
  %396 = vmatpush1.msra.mxu0 %v395
  %397 = vmatprep.subr.mxu0 0.0
  %v398 = vand.u32 %v71, 4294901760
  %v399 = vsub.f32 %v71, %v398
  %v400 = vand.u32 %v399, 4294901760
  %v401 = vsub.f32 %v399, %v400
  %v402 = vand.u32 %v401, 4294901760
  %403 = vmatpush2.msra.mxu0 %v402
  %404 = vmatprep.subr.mxu0 0.0
  %v405 = vand.u32 %v70, 4294901760
  %v406 = vsub.f32 %v70, %v405
  %v407 = vand.u32 %v406, 4294901760
  %v408 = vsub.f32 %v406, %v407
  %v409 = vand.u32 %v408, 4294901760
  %410 = vmatpush2.msra.mxu0 %v409
  %411 = vmatprep.subr.mxu0 0.0
  %v412 = vand.u32 %v69, 4294901760
  %v413 = vsub.f32 %v69, %v412
  %v414 = vand.u32 %v413, 4294901760
  %v415 = vsub.f32 %v413, %v414
  %v416 = vand.u32 %v415, 4294901760
  %417 = vmatpush2.msra.mxu0 %v416
  %418 = vmatprep.subr.mxu0 0.0
  %v419 = vand.u32 %v68, 4294901760
  %v420 = vsub.f32 %v68, %v419
  %v421 = vand.u32 %v420, 4294901760
  %v422 = vsub.f32 %v420, %v421
  %v423 = vand.u32 %v422, 4294901760
  %424 = vmatpush2.msra.mxu0 %v423
  %425 = vmatprep.subr.mxu0 0.0
  %v426 = vand.u32 %v67, 4294901760
  %v427 = vsub.f32 %v67, %v426
  %v428 = vand.u32 %v427, 4294901760
  %v429 = vsub.f32 %v427, %v428
  %v430 = vand.u32 %v429, 4294901760
  %431 = vmatpush2.msra.mxu0 %v430
  %432 = vmatprep.subr.mxu0 0.0
  %v433 = vand.u32 %v66, 4294901760
  %v434 = vsub.f32 %v66, %v433
  %v435 = vand.u32 %v434, 4294901760
  %v436 = vsub.f32 %v434, %v435
  %v437 = vand.u32 %v436, 4294901760
  %438 = vmatpush2.msra.mxu0 %v437
  %439 = vmatprep.subr.mxu0 0.0
  %v440 = vand.u32 %v65, 4294901760
  %v441 = vsub.f32 %v65, %v440
  %v442 = vand.u32 %v441, 4294901760
  %v443 = vsub.f32 %v441, %v442
  %v444 = vand.u32 %v443, 4294901760
  %445 = vmatpush2.msra.mxu0 %v444
  %446 = vmatprep.subr.mxu0 0.0
  %v447 = vand.u32 %v64, 4294901760
  %v448 = vsub.f32 %v64, %v447
  %v449 = vand.u32 %v448, 4294901760
  %v450 = vsub.f32 %v448, %v449
  %v451 = vand.u32 %v450, 4294901760
  %452 = vmatpush2.msra.mxu0 %v451
  %453 = vmatprep.subr.mxu0 0.0
  %v454 = vand.u32 %v63, 4294901760
  %v455 = vsub.f32 %v63, %v454
  %v456 = vand.u32 %v455, 4294901760
  %v457 = vsub.f32 %v455, %v456
  %v458 = vand.u32 %v457, 4294901760
  %459 = vmatpush2.msra.mxu0 %v458
  %460 = vmatprep.subr.mxu0 0.0
  %v461 = vand.u32 %v62, 4294901760
  %v462 = vsub.f32 %v62, %v461
  %v463 = vand.u32 %v462, 4294901760
  %v464 = vsub.f32 %v462, %v463
  %v465 = vand.u32 %v464, 4294901760
  %466 = vmatpush2.msra.mxu0 %v465
  %467 = vmatprep.subr.mxu0 0.0
  %v468 = vand.u32 %v61, 4294901760
  %v469 = vsub.f32 %v61, %v468
  %v470 = vand.u32 %v469, 4294901760
  %v471 = vsub.f32 %v469, %v470
  %v472 = vand.u32 %v471, 4294901760
  %473 = vmatpush2.msra.mxu0 %v472
  %474 = vmatprep.subr.mxu0 0.0
  %v475 = vand.u32 %v60, 4294901760
  %v476 = vsub.f32 %v60, %v475
  %v477 = vand.u32 %v476, 4294901760
  %v478 = vsub.f32 %v476, %v477
  %v479 = vand.u32 %v478, 4294901760
  %480 = vmatpush2.msra.mxu0 %v479
  %481 = vmatprep.subr.mxu0 0.0
  %v482 = vand.u32 %v59, 4294901760
  %v483 = vsub.f32 %v59, %v482
  %v484 = vand.u32 %v483, 4294901760
  %v485 = vsub.f32 %v483, %v484
  %v486 = vand.u32 %v485, 4294901760
  %487 = vmatpush2.msra.mxu0 %v486
  %488 = vmatprep.subr.mxu0 0.0
  %v489 = vand.u32 %v58, 4294901760
  %v490 = vsub.f32 %v58, %v489
  %v491 = vand.u32 %v490, 4294901760
  %v492 = vsub.f32 %v490, %v491
  %v493 = vand.u32 %v492, 4294901760
  %494 = vmatpush2.msra.mxu0 %v493
  %495 = vmatprep.subr.mxu0 0.0
  %v496 = vand.u32 %v57, 4294901760
  %v497 = vsub.f32 %v57, %v496
  %v498 = vand.u32 %v497, 4294901760
  %v499 = vsub.f32 %v497, %v498
  %v500 = vand.u32 %v499, 4294901760
  %501 = vmatpush2.msra.mxu0 %v500
  %502 = vmatprep.subr.mxu0 0.0
  %v503 = vand.u32 %v56, 4294901760
  %v504 = vsub.f32 %v56, %v503
  %v505 = vand.u32 %v504, 4294901760
  %v506 = vsub.f32 %v504, %v505
  %v507 = vand.u32 %v506, 4294901760
  %508 = vmatpush2.msra.mxu0 %v507
  %v509 = vand.u32 %v33, 4294901760
  %510 = vmatprep.mubr.f32.mxu0 %v509
  %v511 = vand.u32 %v32, 4294901760
  %512 = vmatmul.mubr.f32.gmra.mxu0 %v511
  %v513 = vpop.f32.mrf.mxu0
  %v514 = vadd.f32 %v282, %v513
  %v515 = vpop.f32.mrf.mxu0
  %516 = vdwg.mxu0
  %517 = vmatprep.subr.mxu0 0.0
  %v518 = vand.u32 %v55, 4294901760
  %v519 = vsub.f32 %v55, %v518
  %520 = vmatpush1.msra.mxu0 %v519
  %521 = vmatprep.subr.mxu0 0.0
  %v522 = vand.u32 %v54, 4294901760
  %v523 = vsub.f32 %v54, %v522
  %524 = vmatpush1.msra.mxu0 %v523
  %525 = vmatprep.subr.mxu0 0.0
  %v526 = vand.u32 %v53, 4294901760
  %v527 = vsub.f32 %v53, %v526
  %528 = vmatpush1.msra.mxu0 %v527
  %529 = vmatprep.subr.mxu0 0.0
  %v530 = vand.u32 %v52, 4294901760
  %v531 = vsub.f32 %v52, %v530
  %532 = vmatpush1.msra.mxu0 %v531
  %533 = vmatprep.subr.mxu0 0.0
  %v534 = vand.u32 %v51, 4294901760
  %v535 = vsub.f32 %v51, %v534
  %536 = vmatpush1.msra.mxu0 %v535
  %537 = vmatprep.subr.mxu0 0.0
  %v538 = vand.u32 %v50, 4294901760
  %v539 = vsub.f32 %v50, %v538
  %540 = vmatpush1.msra.mxu0 %v539
  %541 = vmatprep.subr.mxu0 0.0
  %v542 = vand.u32 %v49, 4294901760
  %v543 = vsub.f32 %v49, %v542
  %544 = vmatpush1.msra.mxu0 %v543
  %545 = vmatprep.subr.mxu0 0.0
  %v546 = vand.u32 %v48, 4294901760
  %v547 = vsub.f32 %v48, %v546
  %548 = vmatpush1.msra.mxu0 %v547
  %549 = vmatprep.subr.mxu0 0.0
  %v550 = vand.u32 %v47, 4294901760
  %v551 = vsub.f32 %v47, %v550
  %552 = vmatpush1.msra.mxu0 %v551
  %553 = vmatprep.subr.mxu0 0.0
  %v554 = vand.u32 %v46, 4294901760
  %v555 = vsub.f32 %v46, %v554
  %556 = vmatpush1.msra.mxu0 %v555
  %557 = vmatprep.subr.mxu0 0.0
  %v558 = vand.u32 %v45, 4294901760
  %v559 = vsub.f32 %v45, %v558
  %560 = vmatpush1.msra.mxu0 %v559
  %561 = vmatprep.subr.mxu0 0.0
  %v562 = vand.u32 %v44, 4294901760
  %v563 = vsub.f32 %v44, %v562
  %564 = vmatpush1.msra.mxu0 %v563
  %565 = vmatprep.subr.mxu0 0.0
  %v566 = vand.u32 %v43, 4294901760
  %v567 = vsub.f32 %v43, %v566
  %568 = vmatpush1.msra.mxu0 %v567
  %569 = vmatprep.subr.mxu0 0.0
  %v570 = vand.u32 %v42, 4294901760
  %v571 = vsub.f32 %v42, %v570
  %572 = vmatpush1.msra.mxu0 %v571
  %573 = vmatprep.subr.mxu0 0.0
  %v574 = vand.u32 %v41, 4294901760
  %v575 = vsub.f32 %v41, %v574
  %576 = vmatpush1.msra.mxu0 %v575
  %577 = vmatprep.subr.mxu0 0.0
  %v578 = vand.u32 %v40, 4294901760
  %v579 = vsub.f32 %v40, %v578
  %580 = vmatpush1.msra.mxu0 %v579
  %581 = vmatprep.subr.mxu0 0.0
  %v582 = vand.u32 %v71, 4294901760
  %v583 = vsub.f32 %v71, %v582
  %584 = vmatpush2.msra.mxu0 %v583
  %585 = vmatprep.subr.mxu0 0.0
  %v586 = vand.u32 %v70, 4294901760
  %v587 = vsub.f32 %v70, %v586
  %588 = vmatpush2.msra.mxu0 %v587
  %589 = vmatprep.subr.mxu0 0.0
  %v590 = vand.u32 %v69, 4294901760
  %v591 = vsub.f32 %v69, %v590
  %592 = vmatpush2.msra.mxu0 %v591
  %593 = vmatprep.subr.mxu0 0.0
  %v594 = vand.u32 %v68, 4294901760
  %v595 = vsub.f32 %v68, %v594
  %596 = vmatpush2.msra.mxu0 %v595
  %597 = vmatprep.subr.mxu0 0.0
  %v598 = vand.u32 %v67, 4294901760
  %v599 = vsub.f32 %v67, %v598
  %600 = vmatpush2.msra.mxu0 %v599
  %601 = vmatprep.subr.mxu0 0.0
  %v602 = vand.u32 %v66, 4294901760
  %v603 = vsub.f32 %v66, %v602
  %604 = vmatpush2.msra.mxu0 %v603
  %605 = vmatprep.subr.mxu0 0.0
  %v606 = vand.u32 %v65, 4294901760
  %v607 = vsub.f32 %v65, %v606
  %608 = vmatpush2.msra.mxu0 %v607
  %609 = vmatprep.subr.mxu0 0.0
  %v610 = vand.u32 %v64, 4294901760
  %v611 = vsub.f32 %v64, %v610
  %612 = vmatpush2.msra.mxu0 %v611
  %613 = vmatprep.subr.mxu0 0.0
  %v614 = vand.u32 %v63, 4294901760
  %v615 = vsub.f32 %v63, %v614
  %616 = vmatpush2.msra.mxu0 %v615
  %617 = vmatprep.subr.mxu0 0.0
  %v618 = vand.u32 %v62, 4294901760
  %v619 = vsub.f32 %v62, %v618
  %620 = vmatpush2.msra.mxu0 %v619
  %621 = vmatprep.subr.mxu0 0.0
  %v622 = vand.u32 %v61, 4294901760
  %v623 = vsub.f32 %v61, %v622
  %624 = vmatpush2.msra.mxu0 %v623
  %625 = vmatprep.subr.mxu0 0.0
  %v626 = vand.u32 %v60, 4294901760
  %v627 = vsub.f32 %v60, %v626
  %628 = vmatpush2.msra.mxu0 %v627
  %629 = vmatprep.subr.mxu0 0.0
  %v630 = vand.u32 %v59, 4294901760
  %v631 = vsub.f32 %v59, %v630
  %632 = vmatpush2.msra.mxu0 %v631
  %633 = vmatprep.subr.mxu0 0.0
  %v634 = vand.u32 %v58, 4294901760
  %v635 = vsub.f32 %v58, %v634
  %636 = vmatpush2.msra.mxu0 %v635
  %637 = vmatprep.subr.mxu0 0.0
  %v638 = vand.u32 %v57, 4294901760
  %v639 = vsub.f32 %v57, %v638
  %640 = vmatpush2.msra.mxu0 %v639
  %641 = vmatprep.subr.mxu0 0.0
  %v642 = vand.u32 %v56, 4294901760
  %v643 = vsub.f32 %v56, %v642
  %644 = vmatpush2.msra.mxu0 %v643
  %v645 = vand.u32 %v33, 4294901760
  %v646 = vsub.f32 %v33, %v645
  %647 = vmatprep.mubr.f32.mxu0 %v646
  %v648 = vand.u32 %v32, 4294901760
  %v649 = vsub.f32 %v32, %v648
  %650 = vmatmul.mubr.f32.gmra.mxu0 %v649
  %v651 = vpop.f32.mrf.mxu0
  %v652 = vadd.f32 %v514, %v651
  %v653 = vpop.f32.mrf.mxu0
  %654 = vdwg.mxu0
  %655 = vmatprep.subr.mxu0 0.0
  %v656 = vand.u32 %v55, 4294901760
  %657 = vmatpush1.msra.mxu0 %v656
  %658 = vmatprep.subr.mxu0 0.0
  %v659 = vand.u32 %v54, 4294901760
  %660 = vmatpush1.msra.mxu0 %v659
  %661 = vmatprep.subr.mxu0 0.0
  %v662 = vand.u32 %v53, 4294901760
  %663 = vmatpush1.msra.mxu0 %v662
  %664 = vmatprep.subr.mxu0 0.0
  %v665 = vand.u32 %v52, 4294901760
  %666 = vmatpush1.msra.mxu0 %v665
  %667 = vmatprep.subr.mxu0 0.0
  %v668 = vand.u32 %v51, 4294901760
  %669 = vmatpush1.msra.mxu0 %v668
  %670 = vmatprep.subr.mxu0 0.0
  %v671 = vand.u32 %v50, 4294901760
  %672 = vmatpush1.msra.mxu0 %v671
  %673 = vmatprep.subr.mxu0 0.0
  %v674 = vand.u32 %v49, 4294901760
  %675 = vmatpush1.msra.mxu0 %v674
  %676 = vmatprep.subr.mxu0 0.0
  %v677 = vand.u32 %v48, 4294901760
  %678 = vmatpush1.msra.mxu0 %v677
  %679 = vmatprep.subr.mxu0 0.0
  %v680 = vand.u32 %v47, 4294901760
  %681 = vmatpush1.msra.mxu0 %v680
  %682 = vmatprep.subr.mxu0 0.0
  %v683 = vand.u32 %v46, 4294901760
  %684 = vmatpush1.msra.mxu0 %v683
  %685 = vmatprep.subr.mxu0 0.0
  %v686 = vand.u32 %v45, 4294901760
  %687 = vmatpush1.msra.mxu0 %v686
  %688 = vmatprep.subr.mxu0 0.0
  %v689 = vand.u32 %v44, 4294901760
  %690 = vmatpush1.msra.mxu0 %v689
  %691 = vmatprep.subr.mxu0 0.0
  %v692 = vand.u32 %v43, 4294901760
  %693 = vmatpush1.msra.mxu0 %v692
  %694 = vmatprep.subr.mxu0 0.0
  %v695 = vand.u32 %v42, 4294901760
  %696 = vmatpush1.msra.mxu0 %v695
  %697 = vmatprep.subr.mxu0 0.0
  %v698 = vand.u32 %v41, 4294901760
  %699 = vmatpush1.msra.mxu0 %v698
  %700 = vmatprep.subr.mxu0 0.0
  %v701 = vand.u32 %v40, 4294901760
  %702 = vmatpush1.msra.mxu0 %v701
  %703 = vmatprep.subr.mxu0 0.0
  %v704 = vand.u32 %v71, 4294901760
  %705 = vmatpush2.msra.mxu0 %v704
  %706 = vmatprep.subr.mxu0 0.0
  %v707 = vand.u32 %v70, 4294901760
  %708 = vmatpush2.msra.mxu0 %v707
  %709 = vmatprep.subr.mxu0 0.0
  %v710 = vand.u32 %v69, 4294901760
  %711 = vmatpush2.msra.mxu0 %v710
  %712 = vmatprep.subr.mxu0 0.0
  %v713 = vand.u32 %v68, 4294901760
  %714 = vmatpush2.msra.mxu0 %v713
  %715 = vmatprep.subr.mxu0 0.0
  %v716 = vand.u32 %v67, 4294901760
  %717 = vmatpush2.msra.mxu0 %v716
  %718 = vmatprep.subr.mxu0 0.0
  %v719 = vand.u32 %v66, 4294901760
  %720 = vmatpush2.msra.mxu0 %v719
  %721 = vmatprep.subr.mxu0 0.0
  %v722 = vand.u32 %v65, 4294901760
  %723 = vmatpush2.msra.mxu0 %v722
  %724 = vmatprep.subr.mxu0 0.0
  %v725 = vand.u32 %v64, 4294901760
  %726 = vmatpush2.msra.mxu0 %v725
  %727 = vmatprep.subr.mxu0 0.0
  %v728 = vand.u32 %v63, 4294901760
  %729 = vmatpush2.msra.mxu0 %v728
  %730 = vmatprep.subr.mxu0 0.0
  %v731 = vand.u32 %v62, 4294901760
  %732 = vmatpush2.msra.mxu0 %v731
  %733 = vmatprep.subr.mxu0 0.0
  %v734 = vand.u32 %v61, 4294901760
  %735 = vmatpush2.msra.mxu0 %v734
  %736 = vmatprep.subr.mxu0 0.0
  %v737 = vand.u32 %v60, 4294901760
  %738 = vmatpush2.msra.mxu0 %v737
  %739 = vmatprep.subr.mxu0 0.0
  %v740 = vand.u32 %v59, 4294901760
  %741 = vmatpush2.msra.mxu0 %v740
  %742 = vmatprep.subr.mxu0 0.0
  %v743 = vand.u32 %v58, 4294901760
  %744 = vmatpush2.msra.mxu0 %v743
  %745 = vmatprep.subr.mxu0 0.0
  %v746 = vand.u32 %v57, 4294901760
  %747 = vmatpush2.msra.mxu0 %v746
  %748 = vmatprep.subr.mxu0 0.0
  %v749 = vand.u32 %v56, 4294901760
  %750 = vmatpush2.msra.mxu0 %v749
  %v751 = vand.u32 %v33, 4294901760
  %v752 = vsub.f32 %v33, %v751
  %v753 = vand.u32 %v752, 4294901760
  %754 = vmatprep.mubr.f32.mxu0 %v753
  %v755 = vand.u32 %v32, 4294901760
  %v756 = vsub.f32 %v32, %v755
  %v757 = vand.u32 %v756, 4294901760
  %758 = vmatmul.mubr.f32.gmra.mxu0 %v757
  %v759 = vpop.f32.mrf.mxu0
  %v760 = vadd.f32 %v652, %v759
  %v761 = vpop.f32.mrf.mxu0
  %762 = vdwg.mxu0
  %763 = vmatprep.subr.mxu0 0.0
  %v764 = vand.u32 %v55, 4294901760
  %v765 = vsub.f32 %v55, %v764
  %v766 = vand.u32 %v765, 4294901760
  %767 = vmatpush1.msra.mxu0 %v766
  %768 = vmatprep.subr.mxu0 0.0
  %v769 = vand.u32 %v54, 4294901760
  %v770 = vsub.f32 %v54, %v769
  %v771 = vand.u32 %v770, 4294901760
  %772 = vmatpush1.msra.mxu0 %v771
  %773 = vmatprep.subr.mxu0 0.0
  %v774 = vand.u32 %v53, 4294901760
  %v775 = vsub.f32 %v53, %v774
  %v776 = vand.u32 %v775, 4294901760
  %777 = vmatpush1.msra.mxu0 %v776
  %778 = vmatprep.subr.mxu0 0.0
  %v779 = vand.u32 %v52, 4294901760
  %v780 = vsub.f32 %v52, %v779
  %v781 = vand.u32 %v780, 4294901760
  %782 = vmatpush1.msra.mxu0 %v781
  %783 = vmatprep.subr.mxu0 0.0
  %v784 = vand.u32 %v51, 4294901760
  %v785 = vsub.f32 %v51, %v784
  %v786 = vand.u32 %v785, 4294901760
  %787 = vmatpush1.msra.mxu0 %v786
  %788 = vmatprep.subr.mxu0 0.0
  %v789 = vand.u32 %v50, 4294901760
  %v790 = vsub.f32 %v50, %v789
  %v791 = vand.u32 %v790, 4294901760
  %792 = vmatpush1.msra.mxu0 %v791
  %793 = vmatprep.subr.mxu0 0.0
  %v794 = vand.u32 %v49, 4294901760
  %v795 = vsub.f32 %v49, %v794
  %v796 = vand.u32 %v795, 4294901760
  %797 = vmatpush1.msra.mxu0 %v796
  %798 = vmatprep.subr.mxu0 0.0
  %v799 = vand.u32 %v48, 4294901760
  %v800 = vsub.f32 %v48, %v799
  %v801 = vand.u32 %v800, 4294901760
  %802 = vmatpush1.msra.mxu0 %v801
  %803 = vmatprep.subr.mxu0 0.0
  %v804 = vand.u32 %v47, 4294901760
  %v805 = vsub.f32 %v47, %v804
  %v806 = vand.u32 %v805, 4294901760
  %807 = vmatpush1.msra.mxu0 %v806
  %808 = vmatprep.subr.mxu0 0.0
  %v809 = vand.u32 %v46, 4294901760
  %v810 = vsub.f32 %v46, %v809
  %v811 = vand.u32 %v810, 4294901760
  %812 = vmatpush1.msra.mxu0 %v811
  %813 = vmatprep.subr.mxu0 0.0
  %v814 = vand.u32 %v45, 4294901760
  %v815 = vsub.f32 %v45, %v814
  %v816 = vand.u32 %v815, 4294901760
  %817 = vmatpush1.msra.mxu0 %v816
  %818 = vmatprep.subr.mxu0 0.0
  %v819 = vand.u32 %v44, 4294901760
  %v820 = vsub.f32 %v44, %v819
  %v821 = vand.u32 %v820, 4294901760
  %822 = vmatpush1.msra.mxu0 %v821
  %823 = vmatprep.subr.mxu0 0.0
  %v824 = vand.u32 %v43, 4294901760
  %v825 = vsub.f32 %v43, %v824
  %v826 = vand.u32 %v825, 4294901760
  %827 = vmatpush1.msra.mxu0 %v826
  %828 = vmatprep.subr.mxu0 0.0
  %v829 = vand.u32 %v42, 4294901760
  %v830 = vsub.f32 %v42, %v829
  %v831 = vand.u32 %v830, 4294901760
  %832 = vmatpush1.msra.mxu0 %v831
  %833 = vmatprep.subr.mxu0 0.0
  %v834 = vand.u32 %v41, 4294901760
  %v835 = vsub.f32 %v41, %v834
  %v836 = vand.u32 %v835, 4294901760
  %837 = vmatpush1.msra.mxu0 %v836
  %838 = vmatprep.subr.mxu0 0.0
  %v839 = vand.u32 %v40, 4294901760
  %v840 = vsub.f32 %v40, %v839
  %v841 = vand.u32 %v840, 4294901760
  %842 = vmatpush1.msra.mxu0 %v841
  %843 = vmatprep.subr.mxu0 0.0
  %v844 = vand.u32 %v71, 4294901760
  %v845 = vsub.f32 %v71, %v844
  %v846 = vand.u32 %v845, 4294901760
  %847 = vmatpush2.msra.mxu0 %v846
  %848 = vmatprep.subr.mxu0 0.0
  %v849 = vand.u32 %v70, 4294901760
  %v850 = vsub.f32 %v70, %v849
  %v851 = vand.u32 %v850, 4294901760
  %852 = vmatpush2.msra.mxu0 %v851
  %853 = vmatprep.subr.mxu0 0.0
  %v854 = vand.u32 %v69, 4294901760
  %v855 = vsub.f32 %v69, %v854
  %v856 = vand.u32 %v855, 4294901760
  %857 = vmatpush2.msra.mxu0 %v856
  %858 = vmatprep.subr.mxu0 0.0
  %v859 = vand.u32 %v68, 4294901760
  %v860 = vsub.f32 %v68, %v859
  %v861 = vand.u32 %v860, 4294901760
  %862 = vmatpush2.msra.mxu0 %v861
  %863 = vmatprep.subr.mxu0 0.0
  %v864 = vand.u32 %v67, 4294901760
  %v865 = vsub.f32 %v67, %v864
  %v866 = vand.u32 %v865, 4294901760
  %867 = vmatpush2.msra.mxu0 %v866
  %868 = vmatprep.subr.mxu0 0.0
  %v869 = vand.u32 %v66, 4294901760
  %v870 = vsub.f32 %v66, %v869
  %v871 = vand.u32 %v870, 4294901760
  %872 = vmatpush2.msra.mxu0 %v871
  %873 = vmatprep.subr.mxu0 0.0
  %v874 = vand.u32 %v65, 4294901760
  %v875 = vsub.f32 %v65, %v874
  %v876 = vand.u32 %v875, 4294901760
  %877 = vmatpush2.msra.mxu0 %v876
  %878 = vmatprep.subr.mxu0 0.0
  %v879 = vand.u32 %v64, 4294901760
  %v880 = vsub.f32 %v64, %v879
  %v881 = vand.u32 %v880, 4294901760
  %882 = vmatpush2.msra.mxu0 %v881
  %883 = vmatprep.subr.mxu0 0.0
  %v884 = vand.u32 %v63, 4294901760
  %v885 = vsub.f32 %v63, %v884
  %v886 = vand.u32 %v885, 4294901760
  %887 = vmatpush2.msra.mxu0 %v886
  %888 = vmatprep.subr.mxu0 0.0
  %v889 = vand.u32 %v62, 4294901760
  %v890 = vsub.f32 %v62, %v889
  %v891 = vand.u32 %v890, 4294901760
  %892 = vmatpush2.msra.mxu0 %v891
  %893 = vmatprep.subr.mxu0 0.0
  %v894 = vand.u32 %v61, 4294901760
  %v895 = vsub.f32 %v61, %v894
  %v896 = vand.u32 %v895, 4294901760
  %897 = vmatpush2.msra.mxu0 %v896
  %898 = vmatprep.subr.mxu0 0.0
  %v899 = vand.u32 %v60, 4294901760
  %v900 = vsub.f32 %v60, %v899
  %v901 = vand.u32 %v900, 4294901760
  %902 = vmatpush2.msra.mxu0 %v901
  %903 = vmatprep.subr.mxu0 0.0
  %v904 = vand.u32 %v59, 4294901760
  %v905 = vsub.f32 %v59, %v904
  %v906 = vand.u32 %v905, 4294901760
  %907 = vmatpush2.msra.mxu0 %v906
  %908 = vmatprep.subr.mxu0 0.0
  %v909 = vand.u32 %v58, 4294901760
  %v910 = vsub.f32 %v58, %v909
  %v911 = vand.u32 %v910, 4294901760
  %912 = vmatpush2.msra.mxu0 %v911
  %913 = vmatprep.subr.mxu0 0.0
  %v914 = vand.u32 %v57, 4294901760
  %v915 = vsub.f32 %v57, %v914
  %v916 = vand.u32 %v915, 4294901760
  %917 = vmatpush2.msra.mxu0 %v916
  %918 = vmatprep.subr.mxu0 0.0
  %v919 = vand.u32 %v56, 4294901760
  %v920 = vsub.f32 %v56, %v919
  %v921 = vand.u32 %v920, 4294901760
  %922 = vmatpush2.msra.mxu0 %v921
  %v923 = vand.u32 %v33, 4294901760
  %924 = vmatprep.mubr.f32.mxu0 %v923
  %v925 = vand.u32 %v32, 4294901760
  %926 = vmatmul.mubr.f32.gmra.mxu0 %v925
  %v927 = vpop.f32.mrf.mxu0
  %v928 = vadd.f32 %v760, %v927
  %v929 = vpop.f32.mrf.mxu0
  %930 = vdwg.mxu0
  %931 = vmatprep.subr.mxu0 0.0
  %v932 = vand.u32 %v55, 4294901760
  %933 = vmatpush1.msra.mxu0 %v932
  %934 = vmatprep.subr.mxu0 0.0
  %v935 = vand.u32 %v54, 4294901760
  %936 = vmatpush1.msra.mxu0 %v935
  %937 = vmatprep.subr.mxu0 0.0
  %v938 = vand.u32 %v53, 4294901760
  %939 = vmatpush1.msra.mxu0 %v938
  %940 = vmatprep.subr.mxu0 0.0
  %v941 = vand.u32 %v52, 4294901760
  %942 = vmatpush1.msra.mxu0 %v941
  %943 = vmatprep.subr.mxu0 0.0
  %v944 = vand.u32 %v51, 4294901760
  %945 = vmatpush1.msra.mxu0 %v944
  %946 = vmatprep.subr.mxu0 0.0
  %v947 = vand.u32 %v50, 4294901760
  %948 = vmatpush1.msra.mxu0 %v947
  %949 = vmatprep.subr.mxu0 0.0
  %v950 = vand.u32 %v49, 4294901760
  %951 = vmatpush1.msra.mxu0 %v950
  %952 = vmatprep.subr.mxu0 0.0
  %v953 = vand.u32 %v48, 4294901760
  %954 = vmatpush1.msra.mxu0 %v953
  %955 = vmatprep.subr.mxu0 0.0
  %v956 = vand.u32 %v47, 4294901760
  %957 = vmatpush1.msra.mxu0 %v956
  %958 = vmatprep.subr.mxu0 0.0
  %v959 = vand.u32 %v46, 4294901760
  %960 = vmatpush1.msra.mxu0 %v959
  %961 = vmatprep.subr.mxu0 0.0
  %v962 = vand.u32 %v45, 4294901760
  %963 = vmatpush1.msra.mxu0 %v962
  %964 = vmatprep.subr.mxu0 0.0
  %v965 = vand.u32 %v44, 4294901760
  %966 = vmatpush1.msra.mxu0 %v965
  %967 = vmatprep.subr.mxu0 0.0
  %v968 = vand.u32 %v43, 4294901760
  %969 = vmatpush1.msra.mxu0 %v968
  %970 = vmatprep.subr.mxu0 0.0
  %v971 = vand.u32 %v42, 4294901760
  %972 = vmatpush1.msra.mxu0 %v971
  %973 = vmatprep.subr.mxu0 0.0
  %v974 = vand.u32 %v41, 4294901760
  %975 = vmatpush1.msra.mxu0 %v974
  %976 = vmatprep.subr.mxu0 0.0
  %v977 = vand.u32 %v40, 4294901760
  %978 = vmatpush1.msra.mxu0 %v977
  %979 = vmatprep.subr.mxu0 0.0
  %v980 = vand.u32 %v71, 4294901760
  %981 = vmatpush2.msra.mxu0 %v980
  %982 = vmatprep.subr.mxu0 0.0
  %v983 = vand.u32 %v70, 4294901760
  %984 = vmatpush2.msra.mxu0 %v983
  %985 = vmatprep.subr.mxu0 0.0
  %v986 = vand.u32 %v69, 4294901760
  %987 = vmatpush2.msra.mxu0 %v986
  %988 = vmatprep.subr.mxu0 0.0
  %v989 = vand.u32 %v68, 4294901760
  %990 = vmatpush2.msra.mxu0 %v989
  %991 = vmatprep.subr.mxu0 0.0
  %v992 = vand.u32 %v67, 4294901760
  %993 = vmatpush2.msra.mxu0 %v992
  %994 = vmatprep.subr.mxu0 0.0
  %v995 = vand.u32 %v66, 4294901760
  %996 = vmatpush2.msra.mxu0 %v995
  %997 = vmatprep.subr.mxu0 0.0
  %v998 = vand.u32 %v65, 4294901760
  %999 = vmatpush2.msra.mxu0 %v998
  %1000 = vmatprep.subr.mxu0 0.0
  %v1001 = vand.u32 %v64, 4294901760
  %1002 = vmatpush2.msra.mxu0 %v1001
  %1003 = vmatprep.subr.mxu0 0.0
  %v1004 = vand.u32 %v63, 4294901760
  %1005 = vmatpush2.msra.mxu0 %v1004
  %1006 = vmatprep.subr.mxu0 0.0
  %v1007 = vand.u32 %v62, 4294901760
  %1008 = vmatpush2.msra.mxu0 %v1007
  %1009 = vmatprep.subr.mxu0 0.0
  %v1010 = vand.u32 %v61, 4294901760
  %1011 = vmatpush2.msra.mxu0 %v1010
  %1012 = vmatprep.subr.mxu0 0.0
  %v1013 = vand.u32 %v60, 4294901760
  %1014 = vmatpush2.msra.mxu0 %v1013
  %1015 = vmatprep.subr.mxu0 0.0
  %v1016 = vand.u32 %v59, 4294901760
  %1017 = vmatpush2.msra.mxu0 %v1016
  %1018 = vmatprep.subr.mxu0 0.0
  %v1019 = vand.u32 %v58, 4294901760
  %1020 = vmatpush2.msra.mxu0 %v1019
  %1021 = vmatprep.subr.mxu0 0.0
  %v1022 = vand.u32 %v57, 4294901760
  %1023 = vmatpush2.msra.mxu0 %v1022
  %1024 = vmatprep.subr.mxu0 0.0
  %v1025 = vand.u32 %v56, 4294901760
  %1026 = vmatpush2.msra.mxu0 %v1025
  %v1027 = vand.u32 %v33, 4294901760
  %1028 = vmatprep.mubr.f32.mxu0 %v1027
  %v1029 = vand.u32 %v32, 4294901760
  %1030 = vmatmul.mubr.f32.gmra.mxu0 %v1029
  %v1031 = vpop.f32.mrf.mxu0
  %v1032 = vadd.f32 %v928, %v1031
  %v1033 = vpop.f32.mrf.mxu0
  %1034 = vdwg.mxu0
  %1035 = vmatprep.subr.mxu0 0.0
  %v1036 = vand.u32 %v87, 4294901760
  %1037 = vmatpush1.msra.mxu0 %v1036
  %1038 = vmatprep.subr.mxu0 0.0
  %v1039 = vand.u32 %v86, 4294901760
  %1040 = vmatpush1.msra.mxu0 %v1039
  %1041 = vmatprep.subr.mxu0 0.0
  %v1042 = vand.u32 %v85, 4294901760
  %1043 = vmatpush1.msra.mxu0 %v1042
  %1044 = vmatprep.subr.mxu0 0.0
  %v1045 = vand.u32 %v84, 4294901760
  %1046 = vmatpush1.msra.mxu0 %v1045
  %1047 = vmatprep.subr.mxu0 0.0
  %v1048 = vand.u32 %v83, 4294901760
  %1049 = vmatpush1.msra.mxu0 %v1048
  %1050 = vmatprep.subr.mxu0 0.0
  %v1051 = vand.u32 %v82, 4294901760
  %1052 = vmatpush1.msra.mxu0 %v1051
  %1053 = vmatprep.subr.mxu0 0.0
  %v1054 = vand.u32 %v81, 4294901760
  %1055 = vmatpush1.msra.mxu0 %v1054
  %1056 = vmatprep.subr.mxu0 0.0
  %v1057 = vand.u32 %v80, 4294901760
  %1058 = vmatpush1.msra.mxu0 %v1057
  %1059 = vmatprep.subr.mxu0 0.0
  %v1060 = vand.u32 %v79, 4294901760
  %1061 = vmatpush1.msra.mxu0 %v1060
  %1062 = vmatprep.subr.mxu0 0.0
  %v1063 = vand.u32 %v78, 4294901760
  %1064 = vmatpush1.msra.mxu0 %v1063
  %1065 = vmatprep.subr.mxu0 0.0
  %v1066 = vand.u32 %v77, 4294901760
  %1067 = vmatpush1.msra.mxu0 %v1066
  %1068 = vmatprep.subr.mxu0 0.0
  %v1069 = vand.u32 %v76, 4294901760
  %1070 = vmatpush1.msra.mxu0 %v1069
  %1071 = vmatprep.subr.mxu0 0.0
  %v1072 = vand.u32 %v75, 4294901760
  %1073 = vmatpush1.msra.mxu0 %v1072
  %1074 = vmatprep.subr.mxu0 0.0
  %v1075 = vand.u32 %v74, 4294901760
  %1076 = vmatpush1.msra.mxu0 %v1075
  %1077 = vmatprep.subr.mxu0 0.0
  %v1078 = vand.u32 %v73, 4294901760
  %1079 = vmatpush1.msra.mxu0 %v1078
  %1080 = vmatprep.subr.mxu0 0.0
  %v1081 = vand.u32 %v72, 4294901760
  %1082 = vmatpush1.msra.mxu0 %v1081
  %1083 = vmatprep.subr.mxu0 0.0
  %v1084 = vand.u32 %v103, 4294901760
  %1085 = vmatpush2.msra.mxu0 %v1084
  %1086 = vmatprep.subr.mxu0 0.0
  %v1087 = vand.u32 %v102, 4294901760
  %1088 = vmatpush2.msra.mxu0 %v1087
  %1089 = vmatprep.subr.mxu0 0.0
  %v1090 = vand.u32 %v101, 4294901760
  %1091 = vmatpush2.msra.mxu0 %v1090
  %1092 = vmatprep.subr.mxu0 0.0
  %v1093 = vand.u32 %v100, 4294901760
  %1094 = vmatpush2.msra.mxu0 %v1093
  %1095 = vmatprep.subr.mxu0 0.0
  %v1096 = vand.u32 %v99, 4294901760
  %1097 = vmatpush2.msra.mxu0 %v1096
  %1098 = vmatprep.subr.mxu0 0.0
  %v1099 = vand.u32 %v98, 4294901760
  %1100 = vmatpush2.msra.mxu0 %v1099
  %1101 = vmatprep.subr.mxu0 0.0
  %v1102 = vand.u32 %v97, 4294901760
  %1103 = vmatpush2.msra.mxu0 %v1102
  %1104 = vmatprep.subr.mxu0 0.0
  %v1105 = vand.u32 %v96, 4294901760
  %1106 = vmatpush2.msra.mxu0 %v1105
  %1107 = vmatprep.subr.mxu0 0.0
  %v1108 = vand.u32 %v95, 4294901760
  %1109 = vmatpush2.msra.mxu0 %v1108
  %1110 = vmatprep.subr.mxu0 0.0
  %v1111 = vand.u32 %v94, 4294901760
  %1112 = vmatpush2.msra.mxu0 %v1111
  %1113 = vmatprep.subr.mxu0 0.0
  %v1114 = vand.u32 %v93, 4294901760
  %1115 = vmatpush2.msra.mxu0 %v1114
  %1116 = vmatprep.subr.mxu0 0.0
  %v1117 = vand.u32 %v92, 4294901760
  %1118 = vmatpush2.msra.mxu0 %v1117
  %1119 = vmatprep.subr.mxu0 0.0
  %v1120 = vand.u32 %v91, 4294901760
  %1121 = vmatpush2.msra.mxu0 %v1120
  %1122 = vmatprep.subr.mxu0 0.0
  %v1123 = vand.u32 %v90, 4294901760
  %1124 = vmatpush2.msra.mxu0 %v1123
  %1125 = vmatprep.subr.mxu0 0.0
  %v1126 = vand.u32 %v89, 4294901760
  %1127 = vmatpush2.msra.mxu0 %v1126
  %1128 = vmatprep.subr.mxu0 0.0
  %v1129 = vand.u32 %v88, 4294901760
  %1130 = vmatpush2.msra.mxu0 %v1129
  %v1131 = vand.u32 %v35, 4294901760
  %v1132 = vsub.f32 %v35, %v1131
  %v1133 = vand.u32 %v1132, 4294901760
  %v1134 = vsub.f32 %v1132, %v1133
  %v1135 = vand.u32 %v1134, 4294901760
  %1136 = vmatprep.mubr.f32.mxu0 %v1135
  %v1137 = vand.u32 %v34, 4294901760
  %v1138 = vsub.f32 %v34, %v1137
  %v1139 = vand.u32 %v1138, 4294901760
  %v1140 = vsub.f32 %v1138, %v1139
  %v1141 = vand.u32 %v1140, 4294901760
  %1142 = vmatmul.mubr.f32.gmra.mxu0 %v1141
  %v1143 = vpop.f32.mrf.mxu0
  %v1144 = vadd.f32 %v1032, %v1143
  %v1145 = vpop.f32.mrf.mxu0
  %1146 = vdwg.mxu0
  %1147 = vmatprep.subr.mxu0 0.0
  %v1148 = vand.u32 %v87, 4294901760
  %v1149 = vsub.f32 %v87, %v1148
  %v1150 = vand.u32 %v1149, 4294901760
  %v1151 = vsub.f32 %v1149, %v1150
  %v1152 = vand.u32 %v1151, 4294901760
  %1153 = vmatpush1.msra.mxu0 %v1152
  %1154 = vmatprep.subr.mxu0 0.0
  %v1155 = vand.u32 %v86, 4294901760
  %v1156 = vsub.f32 %v86, %v1155
  %v1157 = vand.u32 %v1156, 4294901760
  %v1158 = vsub.f32 %v1156, %v1157
  %v1159 = vand.u32 %v1158, 4294901760
  %1160 = vmatpush1.msra.mxu0 %v1159
  %1161 = vmatprep.subr.mxu0 0.0
  %v1162 = vand.u32 %v85, 4294901760
  %v1163 = vsub.f32 %v85, %v1162
  %v1164 = vand.u32 %v1163, 4294901760
  %v1165 = vsub.f32 %v1163, %v1164
  %v1166 = vand.u32 %v1165, 4294901760
  %1167 = vmatpush1.msra.mxu0 %v1166
  %1168 = vmatprep.subr.mxu0 0.0
  %v1169 = vand.u32 %v84, 4294901760
  %v1170 = vsub.f32 %v84, %v1169
  %v1171 = vand.u32 %v1170, 4294901760
  %v1172 = vsub.f32 %v1170, %v1171
  %v1173 = vand.u32 %v1172, 4294901760
  %1174 = vmatpush1.msra.mxu0 %v1173
  %1175 = vmatprep.subr.mxu0 0.0
  %v1176 = vand.u32 %v83, 4294901760
  %v1177 = vsub.f32 %v83, %v1176
  %v1178 = vand.u32 %v1177, 4294901760
  %v1179 = vsub.f32 %v1177, %v1178
  %v1180 = vand.u32 %v1179, 4294901760
  %1181 = vmatpush1.msra.mxu0 %v1180
  %1182 = vmatprep.subr.mxu0 0.0
  %v1183 = vand.u32 %v82, 4294901760
  %v1184 = vsub.f32 %v82, %v1183
  %v1185 = vand.u32 %v1184, 4294901760
  %v1186 = vsub.f32 %v1184, %v1185
  %v1187 = vand.u32 %v1186, 4294901760
  %1188 = vmatpush1.msra.mxu0 %v1187
  %1189 = vmatprep.subr.mxu0 0.0
  %v1190 = vand.u32 %v81, 4294901760
  %v1191 = vsub.f32 %v81, %v1190
  %v1192 = vand.u32 %v1191, 4294901760
  %v1193 = vsub.f32 %v1191, %v1192
  %v1194 = vand.u32 %v1193, 4294901760
  %1195 = vmatpush1.msra.mxu0 %v1194
  %1196 = vmatprep.subr.mxu0 0.0
  %v1197 = vand.u32 %v80, 4294901760
  %v1198 = vsub.f32 %v80, %v1197
  %v1199 = vand.u32 %v1198, 4294901760
  %v1200 = vsub.f32 %v1198, %v1199
  %v1201 = vand.u32 %v1200, 4294901760
  %1202 = vmatpush1.msra.mxu0 %v1201
  %1203 = vmatprep.subr.mxu0 0.0
  %v1204 = vand.u32 %v79, 4294901760
  %v1205 = vsub.f32 %v79, %v1204
  %v1206 = vand.u32 %v1205, 4294901760
  %v1207 = vsub.f32 %v1205, %v1206
  %v1208 = vand.u32 %v1207, 4294901760
  %1209 = vmatpush1.msra.mxu0 %v1208
  %1210 = vmatprep.subr.mxu0 0.0
  %v1211 = vand.u32 %v78, 4294901760
  %v1212 = vsub.f32 %v78, %v1211
  %v1213 = vand.u32 %v1212, 4294901760
  %v1214 = vsub.f32 %v1212, %v1213
  %v1215 = vand.u32 %v1214, 4294901760
  %1216 = vmatpush1.msra.mxu0 %v1215
  %1217 = vmatprep.subr.mxu0 0.0
  %v1218 = vand.u32 %v77, 4294901760
  %v1219 = vsub.f32 %v77, %v1218
  %v1220 = vand.u32 %v1219, 4294901760
  %v1221 = vsub.f32 %v1219, %v1220
  %v1222 = vand.u32 %v1221, 4294901760
  %1223 = vmatpush1.msra.mxu0 %v1222
  %1224 = vmatprep.subr.mxu0 0.0
  %v1225 = vand.u32 %v76, 4294901760
  %v1226 = vsub.f32 %v76, %v1225
  %v1227 = vand.u32 %v1226, 4294901760
  %v1228 = vsub.f32 %v1226, %v1227
  %v1229 = vand.u32 %v1228, 4294901760
  %1230 = vmatpush1.msra.mxu0 %v1229
  %1231 = vmatprep.subr.mxu0 0.0
  %v1232 = vand.u32 %v75, 4294901760
  %v1233 = vsub.f32 %v75, %v1232
  %v1234 = vand.u32 %v1233, 4294901760
  %v1235 = vsub.f32 %v1233, %v1234
  %v1236 = vand.u32 %v1235, 4294901760
  %1237 = vmatpush1.msra.mxu0 %v1236
  %1238 = vmatprep.subr.mxu0 0.0
  %v1239 = vand.u32 %v74, 4294901760
  %v1240 = vsub.f32 %v74, %v1239
  %v1241 = vand.u32 %v1240, 4294901760
  %v1242 = vsub.f32 %v1240, %v1241
  %v1243 = vand.u32 %v1242, 4294901760
  %1244 = vmatpush1.msra.mxu0 %v1243
  %1245 = vmatprep.subr.mxu0 0.0
  %v1246 = vand.u32 %v73, 4294901760
  %v1247 = vsub.f32 %v73, %v1246
  %v1248 = vand.u32 %v1247, 4294901760
  %v1249 = vsub.f32 %v1247, %v1248
  %v1250 = vand.u32 %v1249, 4294901760
  %1251 = vmatpush1.msra.mxu0 %v1250
  %1252 = vmatprep.subr.mxu0 0.0
  %v1253 = vand.u32 %v72, 4294901760
  %v1254 = vsub.f32 %v72, %v1253
  %v1255 = vand.u32 %v1254, 4294901760
  %v1256 = vsub.f32 %v1254, %v1255
  %v1257 = vand.u32 %v1256, 4294901760
  %1258 = vmatpush1.msra.mxu0 %v1257
  %1259 = vmatprep.subr.mxu0 0.0
  %v1260 = vand.u32 %v103, 4294901760
  %v1261 = vsub.f32 %v103, %v1260
  %v1262 = vand.u32 %v1261, 4294901760
  %v1263 = vsub.f32 %v1261, %v1262
  %v1264 = vand.u32 %v1263, 4294901760
  %1265 = vmatpush2.msra.mxu0 %v1264
  %1266 = vmatprep.subr.mxu0 0.0
  %v1267 = vand.u32 %v102, 4294901760
  %v1268 = vsub.f32 %v102, %v1267
  %v1269 = vand.u32 %v1268, 4294901760
  %v1270 = vsub.f32 %v1268, %v1269
  %v1271 = vand.u32 %v1270, 4294901760
  %1272 = vmatpush2.msra.mxu0 %v1271
  %1273 = vmatprep.subr.mxu0 0.0
  %v1274 = vand.u32 %v101, 4294901760
  %v1275 = vsub.f32 %v101, %v1274
  %v1276 = vand.u32 %v1275, 4294901760
  %v1277 = vsub.f32 %v1275, %v1276
  %v1278 = vand.u32 %v1277, 4294901760
  %1279 = vmatpush2.msra.mxu0 %v1278
  %1280 = vmatprep.subr.mxu0 0.0
  %v1281 = vand.u32 %v100, 4294901760
  %v1282 = vsub.f32 %v100, %v1281
  %v1283 = vand.u32 %v1282, 4294901760
  %v1284 = vsub.f32 %v1282, %v1283
  %v1285 = vand.u32 %v1284, 4294901760
  %1286 = vmatpush2.msra.mxu0 %v1285
  %1287 = vmatprep.subr.mxu0 0.0
  %v1288 = vand.u32 %v99, 4294901760
  %v1289 = vsub.f32 %v99, %v1288
  %v1290 = vand.u32 %v1289, 4294901760
  %v1291 = vsub.f32 %v1289, %v1290
  %v1292 = vand.u32 %v1291, 4294901760
  %1293 = vmatpush2.msra.mxu0 %v1292
  %1294 = vmatprep.subr.mxu0 0.0
  %v1295 = vand.u32 %v98, 4294901760
  %v1296 = vsub.f32 %v98, %v1295
  %v1297 = vand.u32 %v1296, 4294901760
  %v1298 = vsub.f32 %v1296, %v1297
  %v1299 = vand.u32 %v1298, 4294901760
  %1300 = vmatpush2.msra.mxu0 %v1299
  %1301 = vmatprep.subr.mxu0 0.0
  %v1302 = vand.u32 %v97, 4294901760
  %v1303 = vsub.f32 %v97, %v1302
  %v1304 = vand.u32 %v1303, 4294901760
  %v1305 = vsub.f32 %v1303, %v1304
  %v1306 = vand.u32 %v1305, 4294901760
  %1307 = vmatpush2.msra.mxu0 %v1306
  %1308 = vmatprep.subr.mxu0 0.0
  %v1309 = vand.u32 %v96, 4294901760
  %v1310 = vsub.f32 %v96, %v1309
  %v1311 = vand.u32 %v1310, 4294901760
  %v1312 = vsub.f32 %v1310, %v1311
  %v1313 = vand.u32 %v1312, 4294901760
  %1314 = vmatpush2.msra.mxu0 %v1313
  %1315 = vmatprep.subr.mxu0 0.0
  %v1316 = vand.u32 %v95, 4294901760
  %v1317 = vsub.f32 %v95, %v1316
  %v1318 = vand.u32 %v1317, 4294901760
  %v1319 = vsub.f32 %v1317, %v1318
  %v1320 = vand.u32 %v1319, 4294901760
  %1321 = vmatpush2.msra.mxu0 %v1320
  %1322 = vmatprep.subr.mxu0 0.0
  %v1323 = vand.u32 %v94, 4294901760
  %v1324 = vsub.f32 %v94, %v1323
  %v1325 = vand.u32 %v1324, 4294901760
  %v1326 = vsub.f32 %v1324, %v1325
  %v1327 = vand.u32 %v1326, 4294901760
  %1328 = vmatpush2.msra.mxu0 %v1327
  %1329 = vmatprep.subr.mxu0 0.0
  %v1330 = vand.u32 %v93, 4294901760
  %v1331 = vsub.f32 %v93, %v1330
  %v1332 = vand.u32 %v1331, 4294901760
  %v1333 = vsub.f32 %v1331, %v1332
  %v1334 = vand.u32 %v1333, 4294901760
  %1335 = vmatpush2.msra.mxu0 %v1334
  %1336 = vmatprep.subr.mxu0 0.0
  %v1337 = vand.u32 %v92, 4294901760
  %v1338 = vsub.f32 %v92, %v1337
  %v1339 = vand.u32 %v1338, 4294901760
  %v1340 = vsub.f32 %v1338, %v1339
  %v1341 = vand.u32 %v1340, 4294901760
  %1342 = vmatpush2.msra.mxu0 %v1341
  %1343 = vmatprep.subr.mxu0 0.0
  %v1344 = vand.u32 %v91, 4294901760
  %v1345 = vsub.f32 %v91, %v1344
  %v1346 = vand.u32 %v1345, 4294901760
  %v1347 = vsub.f32 %v1345, %v1346
  %v1348 = vand.u32 %v1347, 4294901760
  %1349 = vmatpush2.msra.mxu0 %v1348
  %1350 = vmatprep.subr.mxu0 0.0
  %v1351 = vand.u32 %v90, 4294901760
  %v1352 = vsub.f32 %v90, %v1351
  %v1353 = vand.u32 %v1352, 4294901760
  %v1354 = vsub.f32 %v1352, %v1353
  %v1355 = vand.u32 %v1354, 4294901760
  %1356 = vmatpush2.msra.mxu0 %v1355
  %1357 = vmatprep.subr.mxu0 0.0
  %v1358 = vand.u32 %v89, 4294901760
  %v1359 = vsub.f32 %v89, %v1358
  %v1360 = vand.u32 %v1359, 4294901760
  %v1361 = vsub.f32 %v1359, %v1360
  %v1362 = vand.u32 %v1361, 4294901760
  %1363 = vmatpush2.msra.mxu0 %v1362
  %1364 = vmatprep.subr.mxu0 0.0
  %v1365 = vand.u32 %v88, 4294901760
  %v1366 = vsub.f32 %v88, %v1365
  %v1367 = vand.u32 %v1366, 4294901760
  %v1368 = vsub.f32 %v1366, %v1367
  %v1369 = vand.u32 %v1368, 4294901760
  %1370 = vmatpush2.msra.mxu0 %v1369
  %v1371 = vand.u32 %v35, 4294901760
  %1372 = vmatprep.mubr.f32.mxu0 %v1371
  %v1373 = vand.u32 %v34, 4294901760
  %1374 = vmatmul.mubr.f32.gmra.mxu0 %v1373
  %v1375 = vpop.f32.mrf.mxu0
  %v1376 = vadd.f32 %v1144, %v1375
  %v1377 = vpop.f32.mrf.mxu0
  %1378 = vdwg.mxu0
  %1379 = vmatprep.subr.mxu0 0.0
  %v1380 = vand.u32 %v87, 4294901760
  %v1381 = vsub.f32 %v87, %v1380
  %1382 = vmatpush1.msra.mxu0 %v1381
  %1383 = vmatprep.subr.mxu0 0.0
  %v1384 = vand.u32 %v86, 4294901760
  %v1385 = vsub.f32 %v86, %v1384
  %1386 = vmatpush1.msra.mxu0 %v1385
  %1387 = vmatprep.subr.mxu0 0.0
  %v1388 = vand.u32 %v85, 4294901760
  %v1389 = vsub.f32 %v85, %v1388
  %1390 = vmatpush1.msra.mxu0 %v1389
  %1391 = vmatprep.subr.mxu0 0.0
  %v1392 = vand.u32 %v84, 4294901760
  %v1393 = vsub.f32 %v84, %v1392
  %1394 = vmatpush1.msra.mxu0 %v1393
  %1395 = vmatprep.subr.mxu0 0.0
  %v1396 = vand.u32 %v83, 4294901760
  %v1397 = vsub.f32 %v83, %v1396
  %1398 = vmatpush1.msra.mxu0 %v1397
  %1399 = vmatprep.subr.mxu0 0.0
  %v1400 = vand.u32 %v82, 4294901760
  %v1401 = vsub.f32 %v82, %v1400
  %1402 = vmatpush1.msra.mxu0 %v1401
  %1403 = vmatprep.subr.mxu0 0.0
  %v1404 = vand.u32 %v81, 4294901760
  %v1405 = vsub.f32 %v81, %v1404
  %1406 = vmatpush1.msra.mxu0 %v1405
  %1407 = vmatprep.subr.mxu0 0.0
  %v1408 = vand.u32 %v80, 4294901760
  %v1409 = vsub.f32 %v80, %v1408
  %1410 = vmatpush1.msra.mxu0 %v1409
  %1411 = vmatprep.subr.mxu0 0.0
  %v1412 = vand.u32 %v79, 4294901760
  %v1413 = vsub.f32 %v79, %v1412
  %1414 = vmatpush1.msra.mxu0 %v1413
  %1415 = vmatprep.subr.mxu0 0.0
  %v1416 = vand.u32 %v78, 4294901760
  %v1417 = vsub.f32 %v78, %v1416
  %1418 = vmatpush1.msra.mxu0 %v1417
  %1419 = vmatprep.subr.mxu0 0.0
  %v1420 = vand.u32 %v77, 4294901760
  %v1421 = vsub.f32 %v77, %v1420
  %1422 = vmatpush1.msra.mxu0 %v1421
  %1423 = vmatprep.subr.mxu0 0.0
  %v1424 = vand.u32 %v76, 4294901760
  %v1425 = vsub.f32 %v76, %v1424
  %1426 = vmatpush1.msra.mxu0 %v1425
  %1427 = vmatprep.subr.mxu0 0.0
  %v1428 = vand.u32 %v75, 4294901760
  %v1429 = vsub.f32 %v75, %v1428
  %1430 = vmatpush1.msra.mxu0 %v1429
  %1431 = vmatprep.subr.mxu0 0.0
  %v1432 = vand.u32 %v74, 4294901760
  %v1433 = vsub.f32 %v74, %v1432
  %1434 = vmatpush1.msra.mxu0 %v1433
  %1435 = vmatprep.subr.mxu0 0.0
  %v1436 = vand.u32 %v73, 4294901760
  %v1437 = vsub.f32 %v73, %v1436
  %1438 = vmatpush1.msra.mxu0 %v1437
  %1439 = vmatprep.subr.mxu0 0.0
  %v1440 = vand.u32 %v72, 4294901760
  %v1441 = vsub.f32 %v72, %v1440
  %1442 = vmatpush1.msra.mxu0 %v1441
  %1443 = vmatprep.subr.mxu0 0.0
  %v1444 = vand.u32 %v103, 4294901760
  %v1445 = vsub.f32 %v103, %v1444
  %1446 = vmatpush2.msra.mxu0 %v1445
  %1447 = vmatprep.subr.mxu0 0.0
  %v1448 = vand.u32 %v102, 4294901760
  %v1449 = vsub.f32 %v102, %v1448
  %1450 = vmatpush2.msra.mxu0 %v1449
  %1451 = vmatprep.subr.mxu0 0.0
  %v1452 = vand.u32 %v101, 4294901760
  %v1453 = vsub.f32 %v101, %v1452
  %1454 = vmatpush2.msra.mxu0 %v1453
  %1455 = vmatprep.subr.mxu0 0.0
  %v1456 = vand.u32 %v100, 4294901760
  %v1457 = vsub.f32 %v100, %v1456
  %1458 = vmatpush2.msra.mxu0 %v1457
  %1459 = vmatprep.subr.mxu0 0.0
  %v1460 = vand.u32 %v99, 4294901760
  %v1461 = vsub.f32 %v99, %v1460
  %1462 = vmatpush2.msra.mxu0 %v1461
  %1463 = vmatprep.subr.mxu0 0.0
  %v1464 = vand.u32 %v98, 4294901760
  %v1465 = vsub.f32 %v98, %v1464
  %1466 = vmatpush2.msra.mxu0 %v1465
  %1467 = vmatprep.subr.mxu0 0.0
  %v1468 = vand.u32 %v97, 4294901760
  %v1469 = vsub.f32 %v97, %v1468
  %1470 = vmatpush2.msra.mxu0 %v1469
  %1471 = vmatprep.subr.mxu0 0.0
  %v1472 = vand.u32 %v96, 4294901760
  %v1473 = vsub.f32 %v96, %v1472
  %1474 = vmatpush2.msra.mxu0 %v1473
  %1475 = vmatprep.subr.mxu0 0.0
  %v1476 = vand.u32 %v95, 4294901760
  %v1477 = vsub.f32 %v95, %v1476
  %1478 = vmatpush2.msra.mxu0 %v1477
  %1479 = vmatprep.subr.mxu0 0.0
  %v1480 = vand.u32 %v94, 4294901760
  %v1481 = vsub.f32 %v94, %v1480
  %1482 = vmatpush2.msra.mxu0 %v1481
  %1483 = vmatprep.subr.mxu0 0.0
  %v1484 = vand.u32 %v93, 4294901760
  %v1485 = vsub.f32 %v93, %v1484
  %1486 = vmatpush2.msra.mxu0 %v1485
  %1487 = vmatprep.subr.mxu0 0.0
  %v1488 = vand.u32 %v92, 4294901760
  %v1489 = vsub.f32 %v92, %v1488
  %1490 = vmatpush2.msra.mxu0 %v1489
  %1491 = vmatprep.subr.mxu0 0.0
  %v1492 = vand.u32 %v91, 4294901760
  %v1493 = vsub.f32 %v91, %v1492
  %1494 = vmatpush2.msra.mxu0 %v1493
  %1495 = vmatprep.subr.mxu0 0.0
  %v1496 = vand.u32 %v90, 4294901760
  %v1497 = vsub.f32 %v90, %v1496
  %1498 = vmatpush2.msra.mxu0 %v1497
  %1499 = vmatprep.subr.mxu0 0.0
  %v1500 = vand.u32 %v89, 4294901760
  %v1501 = vsub.f32 %v89, %v1500
  %1502 = vmatpush2.msra.mxu0 %v1501
  %1503 = vmatprep.subr.mxu0 0.0
  %v1504 = vand.u32 %v88, 4294901760
  %v1505 = vsub.f32 %v88, %v1504
  %1506 = vmatpush2.msra.mxu0 %v1505
  %v1507 = vand.u32 %v35, 4294901760
  %v1508 = vsub.f32 %v35, %v1507
  %1509 = vmatprep.mubr.f32.mxu0 %v1508
  %v1510 = vand.u32 %v34, 4294901760
  %v1511 = vsub.f32 %v34, %v1510
  %1512 = vmatmul.mubr.f32.gmra.mxu0 %v1511
  %v1513 = vpop.f32.mrf.mxu0
  %v1514 = vadd.f32 %v1376, %v1513
  %v1515 = vpop.f32.mrf.mxu0
  %1516 = vdwg.mxu0
  %1517 = vmatprep.subr.mxu0 0.0
  %v1518 = vand.u32 %v87, 4294901760
  %1519 = vmatpush1.msra.mxu0 %v1518
  %1520 = vmatprep.subr.mxu0 0.0
  %v1521 = vand.u32 %v86, 4294901760
  %1522 = vmatpush1.msra.mxu0 %v1521
  %1523 = vmatprep.subr.mxu0 0.0
  %v1524 = vand.u32 %v85, 4294901760
  %1525 = vmatpush1.msra.mxu0 %v1524
  %1526 = vmatprep.subr.mxu0 0.0
  %v1527 = vand.u32 %v84, 4294901760
  %1528 = vmatpush1.msra.mxu0 %v1527
  %1529 = vmatprep.subr.mxu0 0.0
  %v1530 = vand.u32 %v83, 4294901760
  %1531 = vmatpush1.msra.mxu0 %v1530
  %1532 = vmatprep.subr.mxu0 0.0
  %v1533 = vand.u32 %v82, 4294901760
  %1534 = vmatpush1.msra.mxu0 %v1533
  %1535 = vmatprep.subr.mxu0 0.0
  %v1536 = vand.u32 %v81, 4294901760
  %1537 = vmatpush1.msra.mxu0 %v1536
  %1538 = vmatprep.subr.mxu0 0.0
  %v1539 = vand.u32 %v80, 4294901760
  %1540 = vmatpush1.msra.mxu0 %v1539
  %1541 = vmatprep.subr.mxu0 0.0
  %v1542 = vand.u32 %v79, 4294901760
  %1543 = vmatpush1.msra.mxu0 %v1542
  %1544 = vmatprep.subr.mxu0 0.0
  %v1545 = vand.u32 %v78, 4294901760
  %1546 = vmatpush1.msra.mxu0 %v1545
  %1547 = vmatprep.subr.mxu0 0.0
  %v1548 = vand.u32 %v77, 4294901760
  %1549 = vmatpush1.msra.mxu0 %v1548
  %1550 = vmatprep.subr.mxu0 0.0
  %v1551 = vand.u32 %v76, 4294901760
  %1552 = vmatpush1.msra.mxu0 %v1551
  %1553 = vmatprep.subr.mxu0 0.0
  %v1554 = vand.u32 %v75, 4294901760
  %1555 = vmatpush1.msra.mxu0 %v1554
  %1556 = vmatprep.subr.mxu0 0.0
  %v1557 = vand.u32 %v74, 4294901760
  %1558 = vmatpush1.msra.mxu0 %v1557
  %1559 = vmatprep.subr.mxu0 0.0
  %v1560 = vand.u32 %v73, 4294901760
  %1561 = vmatpush1.msra.mxu0 %v1560
  %1562 = vmatprep.subr.mxu0 0.0
  %v1563 = vand.u32 %v72, 4294901760
  %1564 = vmatpush1.msra.mxu0 %v1563
  %1565 = vmatprep.subr.mxu0 0.0
  %v1566 = vand.u32 %v103, 4294901760
  %1567 = vmatpush2.msra.mxu0 %v1566
  %1568 = vmatprep.subr.mxu0 0.0
  %v1569 = vand.u32 %v102, 4294901760
  %1570 = vmatpush2.msra.mxu0 %v1569
  %1571 = vmatprep.subr.mxu0 0.0
  %v1572 = vand.u32 %v101, 4294901760
  %1573 = vmatpush2.msra.mxu0 %v1572
  %1574 = vmatprep.subr.mxu0 0.0
  %v1575 = vand.u32 %v100, 4294901760
  %1576 = vmatpush2.msra.mxu0 %v1575
  %1577 = vmatprep.subr.mxu0 0.0
  %v1578 = vand.u32 %v99, 4294901760
  %1579 = vmatpush2.msra.mxu0 %v1578
  %1580 = vmatprep.subr.mxu0 0.0
  %v1581 = vand.u32 %v98, 4294901760
  %1582 = vmatpush2.msra.mxu0 %v1581
  %1583 = vmatprep.subr.mxu0 0.0
  %v1584 = vand.u32 %v97, 4294901760
  %1585 = vmatpush2.msra.mxu0 %v1584
  %1586 = vmatprep.subr.mxu0 0.0
  %v1587 = vand.u32 %v96, 4294901760
  %1588 = vmatpush2.msra.mxu0 %v1587
  %1589 = vmatprep.subr.mxu0 0.0
  %v1590 = vand.u32 %v95, 4294901760
  %1591 = vmatpush2.msra.mxu0 %v1590
  %1592 = vmatprep.subr.mxu0 0.0
  %v1593 = vand.u32 %v94, 4294901760
  %1594 = vmatpush2.msra.mxu0 %v1593
  %1595 = vmatprep.subr.mxu0 0.0
  %v1596 = vand.u32 %v93, 4294901760
  %1597 = vmatpush2.msra.mxu0 %v1596
  %1598 = vmatprep.subr.mxu0 0.0
  %v1599 = vand.u32 %v92, 4294901760
  %1600 = vmatpush2.msra.mxu0 %v1599
  %1601 = vmatprep.subr.mxu0 0.0
  %v1602 = vand.u32 %v91, 4294901760
  %1603 = vmatpush2.msra.mxu0 %v1602
  %1604 = vmatprep.subr.mxu0 0.0
  %v1605 = vand.u32 %v90, 4294901760
  %1606 = vmatpush2.msra.mxu0 %v1605
  %1607 = vmatprep.subr.mxu0 0.0
  %v1608 = vand.u32 %v89, 4294901760
  %1609 = vmatpush2.msra.mxu0 %v1608
  %1610 = vmatprep.subr.mxu0 0.0
  %v1611 = vand.u32 %v88, 4294901760
  %1612 = vmatpush2.msra.mxu0 %v1611
  %v1613 = vand.u32 %v35, 4294901760
  %v1614 = vsub.f32 %v35, %v1613
  %v1615 = vand.u32 %v1614, 4294901760
  %1616 = vmatprep.mubr.f32.mxu0 %v1615
  %v1617 = vand.u32 %v34, 4294901760
  %v1618 = vsub.f32 %v34, %v1617
  %v1619 = vand.u32 %v1618, 4294901760
  %1620 = vmatmul.mubr.f32.gmra.mxu0 %v1619
  %v1621 = vpop.f32.mrf.mxu0
  %v1622 = vadd.f32 %v1514, %v1621
  %v1623 = vpop.f32.mrf.mxu0
  %1624 = vdwg.mxu0
  %1625 = vmatprep.subr.mxu0 0.0
  %v1626 = vand.u32 %v87, 4294901760
  %v1627 = vsub.f32 %v87, %v1626
  %v1628 = vand.u32 %v1627, 4294901760
  %1629 = vmatpush1.msra.mxu0 %v1628
  %1630 = vmatprep.subr.mxu0 0.0
  %v1631 = vand.u32 %v86, 4294901760
  %v1632 = vsub.f32 %v86, %v1631
  %v1633 = vand.u32 %v1632, 4294901760
  %1634 = vmatpush1.msra.mxu0 %v1633
  %1635 = vmatprep.subr.mxu0 0.0
  %v1636 = vand.u32 %v85, 4294901760
  %v1637 = vsub.f32 %v85, %v1636
  %v1638 = vand.u32 %v1637, 4294901760
  %1639 = vmatpush1.msra.mxu0 %v1638
  %1640 = vmatprep.subr.mxu0 0.0
  %v1641 = vand.u32 %v84, 4294901760
  %v1642 = vsub.f32 %v84, %v1641
  %v1643 = vand.u32 %v1642, 4294901760
  %1644 = vmatpush1.msra.mxu0 %v1643
  %1645 = vmatprep.subr.mxu0 0.0
  %v1646 = vand.u32 %v83, 4294901760
  %v1647 = vsub.f32 %v83, %v1646
  %v1648 = vand.u32 %v1647, 4294901760
  %1649 = vmatpush1.msra.mxu0 %v1648
  %1650 = vmatprep.subr.mxu0 0.0
  %v1651 = vand.u32 %v82, 4294901760
  %v1652 = vsub.f32 %v82, %v1651
  %v1653 = vand.u32 %v1652, 4294901760
  %1654 = vmatpush1.msra.mxu0 %v1653
  %1655 = vmatprep.subr.mxu0 0.0
  %v1656 = vand.u32 %v81, 4294901760
  %v1657 = vsub.f32 %v81, %v1656
  %v1658 = vand.u32 %v1657, 4294901760
  %1659 = vmatpush1.msra.mxu0 %v1658
  %1660 = vmatprep.subr.mxu0 0.0
  %v1661 = vand.u32 %v80, 4294901760
  %v1662 = vsub.f32 %v80, %v1661
  %v1663 = vand.u32 %v1662, 4294901760
  %1664 = vmatpush1.msra.mxu0 %v1663
  %1665 = vmatprep.subr.mxu0 0.0
  %v1666 = vand.u32 %v79, 4294901760
  %v1667 = vsub.f32 %v79, %v1666
  %v1668 = vand.u32 %v1667, 4294901760
  %1669 = vmatpush1.msra.mxu0 %v1668
  %1670 = vmatprep.subr.mxu0 0.0
  %v1671 = vand.u32 %v78, 4294901760
  %v1672 = vsub.f32 %v78, %v1671
  %v1673 = vand.u32 %v1672, 4294901760
  %1674 = vmatpush1.msra.mxu0 %v1673
  %1675 = vmatprep.subr.mxu0 0.0
  %v1676 = vand.u32 %v77, 4294901760
  %v1677 = vsub.f32 %v77, %v1676
  %v1678 = vand.u32 %v1677, 4294901760
  %1679 = vmatpush1.msra.mxu0 %v1678
  %1680 = vmatprep.subr.mxu0 0.0
  %v1681 = vand.u32 %v76, 4294901760
  %v1682 = vsub.f32 %v76, %v1681
  %v1683 = vand.u32 %v1682, 4294901760
  %1684 = vmatpush1.msra.mxu0 %v1683
  %1685 = vmatprep.subr.mxu0 0.0
  %v1686 = vand.u32 %v75, 4294901760
  %v1687 = vsub.f32 %v75, %v1686
  %v1688 = vand.u32 %v1687, 4294901760
  %1689 = vmatpush1.msra.mxu0 %v1688
  %1690 = vmatprep.subr.mxu0 0.0
  %v1691 = vand.u32 %v74, 4294901760
  %v1692 = vsub.f32 %v74, %v1691
  %v1693 = vand.u32 %v1692, 4294901760
  %1694 = vmatpush1.msra.mxu0 %v1693
  %1695 = vmatprep.subr.mxu0 0.0
  %v1696 = vand.u32 %v73, 4294901760
  %v1697 = vsub.f32 %v73, %v1696
  %v1698 = vand.u32 %v1697, 4294901760
  %1699 = vmatpush1.msra.mxu0 %v1698
  %1700 = vmatprep.subr.mxu0 0.0
  %v1701 = vand.u32 %v72, 4294901760
  %v1702 = vsub.f32 %v72, %v1701
  %v1703 = vand.u32 %v1702, 4294901760
  %1704 = vmatpush1.msra.mxu0 %v1703
  %1705 = vmatprep.subr.mxu0 0.0
  %v1706 = vand.u32 %v103, 4294901760
  %v1707 = vsub.f32 %v103, %v1706
  %v1708 = vand.u32 %v1707, 4294901760
  %1709 = vmatpush2.msra.mxu0 %v1708
  %1710 = vmatprep.subr.mxu0 0.0
  %v1711 = vand.u32 %v102, 4294901760
  %v1712 = vsub.f32 %v102, %v1711
  %v1713 = vand.u32 %v1712, 4294901760
  %1714 = vmatpush2.msra.mxu0 %v1713
  %1715 = vmatprep.subr.mxu0 0.0
  %v1716 = vand.u32 %v101, 4294901760
  %v1717 = vsub.f32 %v101, %v1716
  %v1718 = vand.u32 %v1717, 4294901760
  %1719 = vmatpush2.msra.mxu0 %v1718
  %1720 = vmatprep.subr.mxu0 0.0
  %v1721 = vand.u32 %v100, 4294901760
  %v1722 = vsub.f32 %v100, %v1721
  %v1723 = vand.u32 %v1722, 4294901760
  %1724 = vmatpush2.msra.mxu0 %v1723
  %1725 = vmatprep.subr.mxu0 0.0
  %v1726 = vand.u32 %v99, 4294901760
  %v1727 = vsub.f32 %v99, %v1726
  %v1728 = vand.u32 %v1727, 4294901760
  %1729 = vmatpush2.msra.mxu0 %v1728
  %1730 = vmatprep.subr.mxu0 0.0
  %v1731 = vand.u32 %v98, 4294901760
  %v1732 = vsub.f32 %v98, %v1731
  %v1733 = vand.u32 %v1732, 4294901760
  %1734 = vmatpush2.msra.mxu0 %v1733
  %1735 = vmatprep.subr.mxu0 0.0
  %v1736 = vand.u32 %v97, 4294901760
  %v1737 = vsub.f32 %v97, %v1736
  %v1738 = vand.u32 %v1737, 4294901760
  %1739 = vmatpush2.msra.mxu0 %v1738
  %1740 = vmatprep.subr.mxu0 0.0
  %v1741 = vand.u32 %v96, 4294901760
  %v1742 = vsub.f32 %v96, %v1741
  %v1743 = vand.u32 %v1742, 4294901760
  %1744 = vmatpush2.msra.mxu0 %v1743
  %1745 = vmatprep.subr.mxu0 0.0
  %v1746 = vand.u32 %v95, 4294901760
  %v1747 = vsub.f32 %v95, %v1746
  %v1748 = vand.u32 %v1747, 4294901760
  %1749 = vmatpush2.msra.mxu0 %v1748
  %1750 = vmatprep.subr.mxu0 0.0
  %v1751 = vand.u32 %v94, 4294901760
  %v1752 = vsub.f32 %v94, %v1751
  %v1753 = vand.u32 %v1752, 4294901760
  %1754 = vmatpush2.msra.mxu0 %v1753
  %1755 = vmatprep.subr.mxu0 0.0
  %v1756 = vand.u32 %v93, 4294901760
  %v1757 = vsub.f32 %v93, %v1756
  %v1758 = vand.u32 %v1757, 4294901760
  %1759 = vmatpush2.msra.mxu0 %v1758
  %1760 = vmatprep.subr.mxu0 0.0
  %v1761 = vand.u32 %v92, 4294901760
  %v1762 = vsub.f32 %v92, %v1761
  %v1763 = vand.u32 %v1762, 4294901760
  %1764 = vmatpush2.msra.mxu0 %v1763
  %1765 = vmatprep.subr.mxu0 0.0
  %v1766 = vand.u32 %v91, 4294901760
  %v1767 = vsub.f32 %v91, %v1766
  %v1768 = vand.u32 %v1767, 4294901760
  %1769 = vmatpush2.msra.mxu0 %v1768
  %1770 = vmatprep.subr.mxu0 0.0
  %v1771 = vand.u32 %v90, 4294901760
  %v1772 = vsub.f32 %v90, %v1771
  %v1773 = vand.u32 %v1772, 4294901760
  %1774 = vmatpush2.msra.mxu0 %v1773
  %1775 = vmatprep.subr.mxu0 0.0
  %v1776 = vand.u32 %v89, 4294901760
  %v1777 = vsub.f32 %v89, %v1776
  %v1778 = vand.u32 %v1777, 4294901760
  %1779 = vmatpush2.msra.mxu0 %v1778
  %1780 = vmatprep.subr.mxu0 0.0
  %v1781 = vand.u32 %v88, 4294901760
  %v1782 = vsub.f32 %v88, %v1781
  %v1783 = vand.u32 %v1782, 4294901760
  %1784 = vmatpush2.msra.mxu0 %v1783
  %v1785 = vand.u32 %v35, 4294901760
  %1786 = vmatprep.mubr.f32.mxu0 %v1785
  %v1787 = vand.u32 %v34, 4294901760
  %1788 = vmatmul.mubr.f32.gmra.mxu0 %v1787
  %v1789 = vpop.f32.mrf.mxu0
  %v1790 = vadd.f32 %v1622, %v1789
  %v1791 = vpop.f32.mrf.mxu0
  %1792 = vdwg.mxu0
  %1793 = vmatprep.subr.mxu0 0.0
  %v1794 = vand.u32 %v87, 4294901760
  %1795 = vmatpush1.msra.mxu0 %v1794
  %1796 = vmatprep.subr.mxu0 0.0
  %v1797 = vand.u32 %v86, 4294901760
  %1798 = vmatpush1.msra.mxu0 %v1797
  %1799 = vmatprep.subr.mxu0 0.0
  %v1800 = vand.u32 %v85, 4294901760
  %1801 = vmatpush1.msra.mxu0 %v1800
  %1802 = vmatprep.subr.mxu0 0.0
  %v1803 = vand.u32 %v84, 4294901760
  %1804 = vmatpush1.msra.mxu0 %v1803
  %1805 = vmatprep.subr.mxu0 0.0
  %v1806 = vand.u32 %v83, 4294901760
  %1807 = vmatpush1.msra.mxu0 %v1806
  %1808 = vmatprep.subr.mxu0 0.0
  %v1809 = vand.u32 %v82, 4294901760
  %1810 = vmatpush1.msra.mxu0 %v1809
  %1811 = vmatprep.subr.mxu0 0.0
  %v1812 = vand.u32 %v81, 4294901760
  %1813 = vmatpush1.msra.mxu0 %v1812
  %1814 = vmatprep.subr.mxu0 0.0
  %v1815 = vand.u32 %v80, 4294901760
  %1816 = vmatpush1.msra.mxu0 %v1815
  %1817 = vmatprep.subr.mxu0 0.0
  %v1818 = vand.u32 %v79, 4294901760
  %1819 = vmatpush1.msra.mxu0 %v1818
  %1820 = vmatprep.subr.mxu0 0.0
  %v1821 = vand.u32 %v78, 4294901760
  %1822 = vmatpush1.msra.mxu0 %v1821
  %1823 = vmatprep.subr.mxu0 0.0
  %v1824 = vand.u32 %v77, 4294901760
  %1825 = vmatpush1.msra.mxu0 %v1824
  %1826 = vmatprep.subr.mxu0 0.0
  %v1827 = vand.u32 %v76, 4294901760
  %1828 = vmatpush1.msra.mxu0 %v1827
  %1829 = vmatprep.subr.mxu0 0.0
  %v1830 = vand.u32 %v75, 4294901760
  %1831 = vmatpush1.msra.mxu0 %v1830
  %1832 = vmatprep.subr.mxu0 0.0
  %v1833 = vand.u32 %v74, 4294901760
  %1834 = vmatpush1.msra.mxu0 %v1833
  %1835 = vmatprep.subr.mxu0 0.0
  %v1836 = vand.u32 %v73, 4294901760
  %1837 = vmatpush1.msra.mxu0 %v1836
  %1838 = vmatprep.subr.mxu0 0.0
  %v1839 = vand.u32 %v72, 4294901760
  %1840 = vmatpush1.msra.mxu0 %v1839
  %1841 = vmatprep.subr.mxu0 0.0
  %v1842 = vand.u32 %v103, 4294901760
  %1843 = vmatpush2.msra.mxu0 %v1842
  %1844 = vmatprep.subr.mxu0 0.0
  %v1845 = vand.u32 %v102, 4294901760
  %1846 = vmatpush2.msra.mxu0 %v1845
  %1847 = vmatprep.subr.mxu0 0.0
  %v1848 = vand.u32 %v101, 4294901760
  %1849 = vmatpush2.msra.mxu0 %v1848
  %1850 = vmatprep.subr.mxu0 0.0
  %v1851 = vand.u32 %v100, 4294901760
  %1852 = vmatpush2.msra.mxu0 %v1851
  %1853 = vmatprep.subr.mxu0 0.0
  %v1854 = vand.u32 %v99, 4294901760
  %1855 = vmatpush2.msra.mxu0 %v1854
  %1856 = vmatprep.subr.mxu0 0.0
  %v1857 = vand.u32 %v98, 4294901760
  %1858 = vmatpush2.msra.mxu0 %v1857
  %1859 = vmatprep.subr.mxu0 0.0
  %v1860 = vand.u32 %v97, 4294901760
  %1861 = vmatpush2.msra.mxu0 %v1860
  %1862 = vmatprep.subr.mxu0 0.0
  %v1863 = vand.u32 %v96, 4294901760
  %1864 = vmatpush2.msra.mxu0 %v1863
  %1865 = vmatprep.subr.mxu0 0.0
  %v1866 = vand.u32 %v95, 4294901760
  %1867 = vmatpush2.msra.mxu0 %v1866
  %1868 = vmatprep.subr.mxu0 0.0
  %v1869 = vand.u32 %v94, 4294901760
  %1870 = vmatpush2.msra.mxu0 %v1869
  %1871 = vmatprep.subr.mxu0 0.0
  %v1872 = vand.u32 %v93, 4294901760
  %1873 = vmatpush2.msra.mxu0 %v1872
  %1874 = vmatprep.subr.mxu0 0.0
  %v1875 = vand.u32 %v92, 4294901760
  %1876 = vmatpush2.msra.mxu0 %v1875
  %1877 = vmatprep.subr.mxu0 0.0
  %v1878 = vand.u32 %v91, 4294901760
  %1879 = vmatpush2.msra.mxu0 %v1878
  %1880 = vmatprep.subr.mxu0 0.0
  %v1881 = vand.u32 %v90, 4294901760
  %1882 = vmatpush2.msra.mxu0 %v1881
  %1883 = vmatprep.subr.mxu0 0.0
  %v1884 = vand.u32 %v89, 4294901760
  %1885 = vmatpush2.msra.mxu0 %v1884
  %1886 = vmatprep.subr.mxu0 0.0
  %v1887 = vand.u32 %v88, 4294901760
  %1888 = vmatpush2.msra.mxu0 %v1887
  %v1889 = vand.u32 %v35, 4294901760
  %1890 = vmatprep.mubr.f32.mxu0 %v1889
  %v1891 = vand.u32 %v34, 4294901760
  %1892 = vmatmul.mubr.f32.gmra.mxu0 %v1891
  %v1893 = vpop.f32.mrf.mxu0
  %v1894 = vadd.f32 %v1790, %v1893
  %v1895 = vpop.f32.mrf.mxu0
  %1896 = vdwg.mxu0
  %1897 = vmatprep.subr.mxu0 0.0
  %v1898 = vand.u32 %v119, 4294901760
  %1899 = vmatpush1.msra.mxu0 %v1898
  %1900 = vmatprep.subr.mxu0 0.0
  %v1901 = vand.u32 %v118, 4294901760
  %1902 = vmatpush1.msra.mxu0 %v1901
  %1903 = vmatprep.subr.mxu0 0.0
  %v1904 = vand.u32 %v117, 4294901760
  %1905 = vmatpush1.msra.mxu0 %v1904
  %1906 = vmatprep.subr.mxu0 0.0
  %v1907 = vand.u32 %v116, 4294901760
  %1908 = vmatpush1.msra.mxu0 %v1907
  %1909 = vmatprep.subr.mxu0 0.0
  %v1910 = vand.u32 %v115, 4294901760
  %1911 = vmatpush1.msra.mxu0 %v1910
  %1912 = vmatprep.subr.mxu0 0.0
  %v1913 = vand.u32 %v114, 4294901760
  %1914 = vmatpush1.msra.mxu0 %v1913
  %1915 = vmatprep.subr.mxu0 0.0
  %v1916 = vand.u32 %v113, 4294901760
  %1917 = vmatpush1.msra.mxu0 %v1916
  %1918 = vmatprep.subr.mxu0 0.0
  %v1919 = vand.u32 %v112, 4294901760
  %1920 = vmatpush1.msra.mxu0 %v1919
  %1921 = vmatprep.subr.mxu0 0.0
  %v1922 = vand.u32 %v111, 4294901760
  %1923 = vmatpush1.msra.mxu0 %v1922
  %1924 = vmatprep.subr.mxu0 0.0
  %v1925 = vand.u32 %v110, 4294901760
  %1926 = vmatpush1.msra.mxu0 %v1925
  %1927 = vmatprep.subr.mxu0 0.0
  %v1928 = vand.u32 %v109, 4294901760
  %1929 = vmatpush1.msra.mxu0 %v1928
  %1930 = vmatprep.subr.mxu0 0.0
  %v1931 = vand.u32 %v108, 4294901760
  %1932 = vmatpush1.msra.mxu0 %v1931
  %1933 = vmatprep.subr.mxu0 0.0
  %v1934 = vand.u32 %v107, 4294901760
  %1935 = vmatpush1.msra.mxu0 %v1934
  %1936 = vmatprep.subr.mxu0 0.0
  %v1937 = vand.u32 %v106, 4294901760
  %1938 = vmatpush1.msra.mxu0 %v1937
  %1939 = vmatprep.subr.mxu0 0.0
  %v1940 = vand.u32 %v105, 4294901760
  %1941 = vmatpush1.msra.mxu0 %v1940
  %1942 = vmatprep.subr.mxu0 0.0
  %v1943 = vand.u32 %v104, 4294901760
  %1944 = vmatpush1.msra.mxu0 %v1943
  %1945 = vmatprep.subr.mxu0 0.0
  %v1946 = vand.u32 %v135, 4294901760
  %1947 = vmatpush2.msra.mxu0 %v1946
  %1948 = vmatprep.subr.mxu0 0.0
  %v1949 = vand.u32 %v134, 4294901760
  %1950 = vmatpush2.msra.mxu0 %v1949
  %1951 = vmatprep.subr.mxu0 0.0
  %v1952 = vand.u32 %v133, 4294901760
  %1953 = vmatpush2.msra.mxu0 %v1952
  %1954 = vmatprep.subr.mxu0 0.0
  %v1955 = vand.u32 %v132, 4294901760
  %1956 = vmatpush2.msra.mxu0 %v1955
  %1957 = vmatprep.subr.mxu0 0.0
  %v1958 = vand.u32 %v131, 4294901760
  %1959 = vmatpush2.msra.mxu0 %v1958
  %1960 = vmatprep.subr.mxu0 0.0
  %v1961 = vand.u32 %v130, 4294901760
  %1962 = vmatpush2.msra.mxu0 %v1961
  %1963 = vmatprep.subr.mxu0 0.0
  %v1964 = vand.u32 %v129, 4294901760
  %1965 = vmatpush2.msra.mxu0 %v1964
  %1966 = vmatprep.subr.mxu0 0.0
  %v1967 = vand.u32 %v128, 4294901760
  %1968 = vmatpush2.msra.mxu0 %v1967
  %1969 = vmatprep.subr.mxu0 0.0
  %v1970 = vand.u32 %v127, 4294901760
  %1971 = vmatpush2.msra.mxu0 %v1970
  %1972 = vmatprep.subr.mxu0 0.0
  %v1973 = vand.u32 %v126, 4294901760
  %1974 = vmatpush2.msra.mxu0 %v1973
  %1975 = vmatprep.subr.mxu0 0.0
  %v1976 = vand.u32 %v125, 4294901760
  %1977 = vmatpush2.msra.mxu0 %v1976
  %1978 = vmatprep.subr.mxu0 0.0
  %v1979 = vand.u32 %v124, 4294901760
  %1980 = vmatpush2.msra.mxu0 %v1979
  %1981 = vmatprep.subr.mxu0 0.0
  %v1982 = vand.u32 %v123, 4294901760
  %1983 = vmatpush2.msra.mxu0 %v1982
  %1984 = vmatprep.subr.mxu0 0.0
  %v1985 = vand.u32 %v122, 4294901760
  %1986 = vmatpush2.msra.mxu0 %v1985
  %1987 = vmatprep.subr.mxu0 0.0
  %v1988 = vand.u32 %v121, 4294901760
  %1989 = vmatpush2.msra.mxu0 %v1988
  %1990 = vmatprep.subr.mxu0 0.0
  %v1991 = vand.u32 %v120, 4294901760
  %1992 = vmatpush2.msra.mxu0 %v1991
  %v1993 = vand.u32 %v37, 4294901760
  %v1994 = vsub.f32 %v37, %v1993
  %v1995 = vand.u32 %v1994, 4294901760
  %v1996 = vsub.f32 %v1994, %v1995
  %v1997 = vand.u32 %v1996, 4294901760
  %1998 = vmatprep.mubr.f32.mxu0 %v1997
  %v1999 = vand.u32 %v36, 4294901760
  %v2000 = vsub.f32 %v36, %v1999
  %v2001 = vand.u32 %v2000, 4294901760
  %v2002 = vsub.f32 %v2000, %v2001
  %v2003 = vand.u32 %v2002, 4294901760
  %2004 = vmatmul.mubr.f32.gmra.mxu0 %v2003
  %v2005 = vpop.f32.mrf.mxu0
  %v2006 = vadd.f32 %v1894, %v2005
  %v2007 = vpop.f32.mrf.mxu0
  %2008 = vdwg.mxu0
  %2009 = vmatprep.subr.mxu0 0.0
  %v2010 = vand.u32 %v119, 4294901760
  %v2011 = vsub.f32 %v119, %v2010
  %v2012 = vand.u32 %v2011, 4294901760
  %v2013 = vsub.f32 %v2011, %v2012
  %v2014 = vand.u32 %v2013, 4294901760
  %2015 = vmatpush1.msra.mxu0 %v2014
  %2016 = vmatprep.subr.mxu0 0.0
  %v2017 = vand.u32 %v118, 4294901760
  %v2018 = vsub.f32 %v118, %v2017
  %v2019 = vand.u32 %v2018, 4294901760
  %v2020 = vsub.f32 %v2018, %v2019
  %v2021 = vand.u32 %v2020, 4294901760
  %2022 = vmatpush1.msra.mxu0 %v2021
  %2023 = vmatprep.subr.mxu0 0.0
  %v2024 = vand.u32 %v117, 4294901760
  %v2025 = vsub.f32 %v117, %v2024
  %v2026 = vand.u32 %v2025, 4294901760
  %v2027 = vsub.f32 %v2025, %v2026
  %v2028 = vand.u32 %v2027, 4294901760
  %2029 = vmatpush1.msra.mxu0 %v2028
  %2030 = vmatprep.subr.mxu0 0.0
  %v2031 = vand.u32 %v116, 4294901760
  %v2032 = vsub.f32 %v116, %v2031
  %v2033 = vand.u32 %v2032, 4294901760
  %v2034 = vsub.f32 %v2032, %v2033
  %v2035 = vand.u32 %v2034, 4294901760
  %2036 = vmatpush1.msra.mxu0 %v2035
  %2037 = vmatprep.subr.mxu0 0.0
  %v2038 = vand.u32 %v115, 4294901760
  %v2039 = vsub.f32 %v115, %v2038
  %v2040 = vand.u32 %v2039, 4294901760
  %v2041 = vsub.f32 %v2039, %v2040
  %v2042 = vand.u32 %v2041, 4294901760
  %2043 = vmatpush1.msra.mxu0 %v2042
  %2044 = vmatprep.subr.mxu0 0.0
  %v2045 = vand.u32 %v114, 4294901760
  %v2046 = vsub.f32 %v114, %v2045
  %v2047 = vand.u32 %v2046, 4294901760
  %v2048 = vsub.f32 %v2046, %v2047
  %v2049 = vand.u32 %v2048, 4294901760
  %2050 = vmatpush1.msra.mxu0 %v2049
  %2051 = vmatprep.subr.mxu0 0.0
  %v2052 = vand.u32 %v113, 4294901760
  %v2053 = vsub.f32 %v113, %v2052
  %v2054 = vand.u32 %v2053, 4294901760
  %v2055 = vsub.f32 %v2053, %v2054
  %v2056 = vand.u32 %v2055, 4294901760
  %2057 = vmatpush1.msra.mxu0 %v2056
  %2058 = vmatprep.subr.mxu0 0.0
  %v2059 = vand.u32 %v112, 4294901760
  %v2060 = vsub.f32 %v112, %v2059
  %v2061 = vand.u32 %v2060, 4294901760
  %v2062 = vsub.f32 %v2060, %v2061
  %v2063 = vand.u32 %v2062, 4294901760
  %2064 = vmatpush1.msra.mxu0 %v2063
  %2065 = vmatprep.subr.mxu0 0.0
  %v2066 = vand.u32 %v111, 4294901760
  %v2067 = vsub.f32 %v111, %v2066
  %v2068 = vand.u32 %v2067, 4294901760
  %v2069 = vsub.f32 %v2067, %v2068
  %v2070 = vand.u32 %v2069, 4294901760
  %2071 = vmatpush1.msra.mxu0 %v2070
  %2072 = vmatprep.subr.mxu0 0.0
  %v2073 = vand.u32 %v110, 4294901760
  %v2074 = vsub.f32 %v110, %v2073
  %v2075 = vand.u32 %v2074, 4294901760
  %v2076 = vsub.f32 %v2074, %v2075
  %v2077 = vand.u32 %v2076, 4294901760
  %2078 = vmatpush1.msra.mxu0 %v2077
  %2079 = vmatprep.subr.mxu0 0.0
  %v2080 = vand.u32 %v109, 4294901760
  %v2081 = vsub.f32 %v109, %v2080
  %v2082 = vand.u32 %v2081, 4294901760
  %v2083 = vsub.f32 %v2081, %v2082
  %v2084 = vand.u32 %v2083, 4294901760
  %2085 = vmatpush1.msra.mxu0 %v2084
  %2086 = vmatprep.subr.mxu0 0.0
  %v2087 = vand.u32 %v108, 4294901760
  %v2088 = vsub.f32 %v108, %v2087
  %v2089 = vand.u32 %v2088, 4294901760
  %v2090 = vsub.f32 %v2088, %v2089
  %v2091 = vand.u32 %v2090, 4294901760
  %2092 = vmatpush1.msra.mxu0 %v2091
  %2093 = vmatprep.subr.mxu0 0.0
  %v2094 = vand.u32 %v107, 4294901760
  %v2095 = vsub.f32 %v107, %v2094
  %v2096 = vand.u32 %v2095, 4294901760
  %v2097 = vsub.f32 %v2095, %v2096
  %v2098 = vand.u32 %v2097, 4294901760
  %2099 = vmatpush1.msra.mxu0 %v2098
  %2100 = vmatprep.subr.mxu0 0.0
  %v2101 = vand.u32 %v106, 4294901760
  %v2102 = vsub.f32 %v106, %v2101
  %v2103 = vand.u32 %v2102, 4294901760
  %v2104 = vsub.f32 %v2102, %v2103
  %v2105 = vand.u32 %v2104, 4294901760
  %2106 = vmatpush1.msra.mxu0 %v2105
  %2107 = vmatprep.subr.mxu0 0.0
  %v2108 = vand.u32 %v105, 4294901760
  %v2109 = vsub.f32 %v105, %v2108
  %v2110 = vand.u32 %v2109, 4294901760
  %v2111 = vsub.f32 %v2109, %v2110
  %v2112 = vand.u32 %v2111, 4294901760
  %2113 = vmatpush1.msra.mxu0 %v2112
  %2114 = vmatprep.subr.mxu0 0.0
  %v2115 = vand.u32 %v104, 4294901760
  %v2116 = vsub.f32 %v104, %v2115
  %v2117 = vand.u32 %v2116, 4294901760
  %v2118 = vsub.f32 %v2116, %v2117
  %v2119 = vand.u32 %v2118, 4294901760
  %2120 = vmatpush1.msra.mxu0 %v2119
  %2121 = vmatprep.subr.mxu0 0.0
  %v2122 = vand.u32 %v135, 4294901760
  %v2123 = vsub.f32 %v135, %v2122
  %v2124 = vand.u32 %v2123, 4294901760
  %v2125 = vsub.f32 %v2123, %v2124
  %v2126 = vand.u32 %v2125, 4294901760
  %2127 = vmatpush2.msra.mxu0 %v2126
  %2128 = vmatprep.subr.mxu0 0.0
  %v2129 = vand.u32 %v134, 4294901760
  %v2130 = vsub.f32 %v134, %v2129
  %v2131 = vand.u32 %v2130, 4294901760
  %v2132 = vsub.f32 %v2130, %v2131
  %v2133 = vand.u32 %v2132, 4294901760
  %2134 = vmatpush2.msra.mxu0 %v2133
  %2135 = vmatprep.subr.mxu0 0.0
  %v2136 = vand.u32 %v133, 4294901760
  %v2137 = vsub.f32 %v133, %v2136
  %v2138 = vand.u32 %v2137, 4294901760
  %v2139 = vsub.f32 %v2137, %v2138
  %v2140 = vand.u32 %v2139, 4294901760
  %2141 = vmatpush2.msra.mxu0 %v2140
  %2142 = vmatprep.subr.mxu0 0.0
  %v2143 = vand.u32 %v132, 4294901760
  %v2144 = vsub.f32 %v132, %v2143
  %v2145 = vand.u32 %v2144, 4294901760
  %v2146 = vsub.f32 %v2144, %v2145
  %v2147 = vand.u32 %v2146, 4294901760
  %2148 = vmatpush2.msra.mxu0 %v2147
  %2149 = vmatprep.subr.mxu0 0.0
  %v2150 = vand.u32 %v131, 4294901760
  %v2151 = vsub.f32 %v131, %v2150
  %v2152 = vand.u32 %v2151, 4294901760
  %v2153 = vsub.f32 %v2151, %v2152
  %v2154 = vand.u32 %v2153, 4294901760
  %2155 = vmatpush2.msra.mxu0 %v2154
  %2156 = vmatprep.subr.mxu0 0.0
  %v2157 = vand.u32 %v130, 4294901760
  %v2158 = vsub.f32 %v130, %v2157
  %v2159 = vand.u32 %v2158, 4294901760
  %v2160 = vsub.f32 %v2158, %v2159
  %v2161 = vand.u32 %v2160, 4294901760
  %2162 = vmatpush2.msra.mxu0 %v2161
  %2163 = vmatprep.subr.mxu0 0.0
  %v2164 = vand.u32 %v129, 4294901760
  %v2165 = vsub.f32 %v129, %v2164
  %v2166 = vand.u32 %v2165, 4294901760
  %v2167 = vsub.f32 %v2165, %v2166
  %v2168 = vand.u32 %v2167, 4294901760
  %2169 = vmatpush2.msra.mxu0 %v2168
  %2170 = vmatprep.subr.mxu0 0.0
  %v2171 = vand.u32 %v128, 4294901760
  %v2172 = vsub.f32 %v128, %v2171
  %v2173 = vand.u32 %v2172, 4294901760
  %v2174 = vsub.f32 %v2172, %v2173
  %v2175 = vand.u32 %v2174, 4294901760
  %2176 = vmatpush2.msra.mxu0 %v2175
  %2177 = vmatprep.subr.mxu0 0.0
  %v2178 = vand.u32 %v127, 4294901760
  %v2179 = vsub.f32 %v127, %v2178
  %v2180 = vand.u32 %v2179, 4294901760
  %v2181 = vsub.f32 %v2179, %v2180
  %v2182 = vand.u32 %v2181, 4294901760
  %2183 = vmatpush2.msra.mxu0 %v2182
  %2184 = vmatprep.subr.mxu0 0.0
  %v2185 = vand.u32 %v126, 4294901760
  %v2186 = vsub.f32 %v126, %v2185
  %v2187 = vand.u32 %v2186, 4294901760
  %v2188 = vsub.f32 %v2186, %v2187
  %v2189 = vand.u32 %v2188, 4294901760
  %2190 = vmatpush2.msra.mxu0 %v2189
  %2191 = vmatprep.subr.mxu0 0.0
  %v2192 = vand.u32 %v125, 4294901760
  %v2193 = vsub.f32 %v125, %v2192
  %v2194 = vand.u32 %v2193, 4294901760
  %v2195 = vsub.f32 %v2193, %v2194
  %v2196 = vand.u32 %v2195, 4294901760
  %2197 = vmatpush2.msra.mxu0 %v2196
  %2198 = vmatprep.subr.mxu0 0.0
  %v2199 = vand.u32 %v124, 4294901760
  %v2200 = vsub.f32 %v124, %v2199
  %v2201 = vand.u32 %v2200, 4294901760
  %v2202 = vsub.f32 %v2200, %v2201
  %v2203 = vand.u32 %v2202, 4294901760
  %2204 = vmatpush2.msra.mxu0 %v2203
  %2205 = vmatprep.subr.mxu0 0.0
  %v2206 = vand.u32 %v123, 4294901760
  %v2207 = vsub.f32 %v123, %v2206
  %v2208 = vand.u32 %v2207, 4294901760
  %v2209 = vsub.f32 %v2207, %v2208
  %v2210 = vand.u32 %v2209, 4294901760
  %2211 = vmatpush2.msra.mxu0 %v2210
  %2212 = vmatprep.subr.mxu0 0.0
  %v2213 = vand.u32 %v122, 4294901760
  %v2214 = vsub.f32 %v122, %v2213
  %v2215 = vand.u32 %v2214, 4294901760
  %v2216 = vsub.f32 %v2214, %v2215
  %v2217 = vand.u32 %v2216, 4294901760
  %2218 = vmatpush2.msra.mxu0 %v2217
  %2219 = vmatprep.subr.mxu0 0.0
  %v2220 = vand.u32 %v121, 4294901760
  %v2221 = vsub.f32 %v121, %v2220
  %v2222 = vand.u32 %v2221, 4294901760
  %v2223 = vsub.f32 %v2221, %v2222
  %v2224 = vand.u32 %v2223, 4294901760
  %2225 = vmatpush2.msra.mxu0 %v2224
  %2226 = vmatprep.subr.mxu0 0.0
  %v2227 = vand.u32 %v120, 4294901760
  %v2228 = vsub.f32 %v120, %v2227
  %v2229 = vand.u32 %v2228, 4294901760
  %v2230 = vsub.f32 %v2228, %v2229
  %v2231 = vand.u32 %v2230, 4294901760
  %2232 = vmatpush2.msra.mxu0 %v2231
  %v2233 = vand.u32 %v37, 4294901760
  %2234 = vmatprep.mubr.f32.mxu0 %v2233
  %v2235 = vand.u32 %v36, 4294901760
  %2236 = vmatmul.mubr.f32.gmra.mxu0 %v2235
  %v2237 = vpop.f32.mrf.mxu0
  %v2238 = vadd.f32 %v2006, %v2237
  %v2239 = vpop.f32.mrf.mxu0
  %2240 = vdwg.mxu0
  %2241 = vmatprep.subr.mxu0 0.0
  %v2242 = vand.u32 %v119, 4294901760
  %v2243 = vsub.f32 %v119, %v2242
  %2244 = vmatpush1.msra.mxu0 %v2243
  %2245 = vmatprep.subr.mxu0 0.0
  %v2246 = vand.u32 %v118, 4294901760
  %v2247 = vsub.f32 %v118, %v2246
  %2248 = vmatpush1.msra.mxu0 %v2247
  %2249 = vmatprep.subr.mxu0 0.0
  %v2250 = vand.u32 %v117, 4294901760
  %v2251 = vsub.f32 %v117, %v2250
  %2252 = vmatpush1.msra.mxu0 %v2251
  %2253 = vmatprep.subr.mxu0 0.0
  %v2254 = vand.u32 %v116, 4294901760
  %v2255 = vsub.f32 %v116, %v2254
  %2256 = vmatpush1.msra.mxu0 %v2255
  %2257 = vmatprep.subr.mxu0 0.0
  %v2258 = vand.u32 %v115, 4294901760
  %v2259 = vsub.f32 %v115, %v2258
  %2260 = vmatpush1.msra.mxu0 %v2259
  %2261 = vmatprep.subr.mxu0 0.0
  %v2262 = vand.u32 %v114, 4294901760
  %v2263 = vsub.f32 %v114, %v2262
  %2264 = vmatpush1.msra.mxu0 %v2263
  %2265 = vmatprep.subr.mxu0 0.0
  %v2266 = vand.u32 %v113, 4294901760
  %v2267 = vsub.f32 %v113, %v2266
  %2268 = vmatpush1.msra.mxu0 %v2267
  %2269 = vmatprep.subr.mxu0 0.0
  %v2270 = vand.u32 %v112, 4294901760
  %v2271 = vsub.f32 %v112, %v2270
  %2272 = vmatpush1.msra.mxu0 %v2271
  %2273 = vmatprep.subr.mxu0 0.0
  %v2274 = vand.u32 %v111, 4294901760
  %v2275 = vsub.f32 %v111, %v2274
  %2276 = vmatpush1.msra.mxu0 %v2275
  %2277 = vmatprep.subr.mxu0 0.0
  %v2278 = vand.u32 %v110, 4294901760
  %v2279 = vsub.f32 %v110, %v2278
  %2280 = vmatpush1.msra.mxu0 %v2279
  %2281 = vmatprep.subr.mxu0 0.0
  %v2282 = vand.u32 %v109, 4294901760
  %v2283 = vsub.f32 %v109, %v2282
  %2284 = vmatpush1.msra.mxu0 %v2283
  %2285 = vmatprep.subr.mxu0 0.0
  %v2286 = vand.u32 %v108, 4294901760
  %v2287 = vsub.f32 %v108, %v2286
  %2288 = vmatpush1.msra.mxu0 %v2287
  %2289 = vmatprep.subr.mxu0 0.0
  %v2290 = vand.u32 %v107, 4294901760
  %v2291 = vsub.f32 %v107, %v2290
  %2292 = vmatpush1.msra.mxu0 %v2291
  %2293 = vmatprep.subr.mxu0 0.0
  %v2294 = vand.u32 %v106, 4294901760
  %v2295 = vsub.f32 %v106, %v2294
  %2296 = vmatpush1.msra.mxu0 %v2295
  %2297 = vmatprep.subr.mxu0 0.0
  %v2298 = vand.u32 %v105, 4294901760
  %v2299 = vsub.f32 %v105, %v2298
  %2300 = vmatpush1.msra.mxu0 %v2299
  %2301 = vmatprep.subr.mxu0 0.0
  %v2302 = vand.u32 %v104, 4294901760
  %v2303 = vsub.f32 %v104, %v2302
  %2304 = vmatpush1.msra.mxu0 %v2303
  %2305 = vmatprep.subr.mxu0 0.0
  %v2306 = vand.u32 %v135, 4294901760
  %v2307 = vsub.f32 %v135, %v2306
  %2308 = vmatpush2.msra.mxu0 %v2307
  %2309 = vmatprep.subr.mxu0 0.0
  %v2310 = vand.u32 %v134, 4294901760
  %v2311 = vsub.f32 %v134, %v2310
  %2312 = vmatpush2.msra.mxu0 %v2311
  %2313 = vmatprep.subr.mxu0 0.0
  %v2314 = vand.u32 %v133, 4294901760
  %v2315 = vsub.f32 %v133, %v2314
  %2316 = vmatpush2.msra.mxu0 %v2315
  %2317 = vmatprep.subr.mxu0 0.0
  %v2318 = vand.u32 %v132, 4294901760
  %v2319 = vsub.f32 %v132, %v2318
  %2320 = vmatpush2.msra.mxu0 %v2319
  %2321 = vmatprep.subr.mxu0 0.0
  %v2322 = vand.u32 %v131, 4294901760
  %v2323 = vsub.f32 %v131, %v2322
  %2324 = vmatpush2.msra.mxu0 %v2323
  %2325 = vmatprep.subr.mxu0 0.0
  %v2326 = vand.u32 %v130, 4294901760
  %v2327 = vsub.f32 %v130, %v2326
  %2328 = vmatpush2.msra.mxu0 %v2327
  %2329 = vmatprep.subr.mxu0 0.0
  %v2330 = vand.u32 %v129, 4294901760
  %v2331 = vsub.f32 %v129, %v2330
  %2332 = vmatpush2.msra.mxu0 %v2331
  %2333 = vmatprep.subr.mxu0 0.0
  %v2334 = vand.u32 %v128, 4294901760
  %v2335 = vsub.f32 %v128, %v2334
  %2336 = vmatpush2.msra.mxu0 %v2335
  %2337 = vmatprep.subr.mxu0 0.0
  %v2338 = vand.u32 %v127, 4294901760
  %v2339 = vsub.f32 %v127, %v2338
  %2340 = vmatpush2.msra.mxu0 %v2339
  %2341 = vmatprep.subr.mxu0 0.0
  %v2342 = vand.u32 %v126, 4294901760
  %v2343 = vsub.f32 %v126, %v2342
  %2344 = vmatpush2.msra.mxu0 %v2343
  %2345 = vmatprep.subr.mxu0 0.0
  %v2346 = vand.u32 %v125, 4294901760
  %v2347 = vsub.f32 %v125, %v2346
  %2348 = vmatpush2.msra.mxu0 %v2347
  %2349 = vmatprep.subr.mxu0 0.0
  %v2350 = vand.u32 %v124, 4294901760
  %v2351 = vsub.f32 %v124, %v2350
  %2352 = vmatpush2.msra.mxu0 %v2351
  %2353 = vmatprep.subr.mxu0 0.0
  %v2354 = vand.u32 %v123, 4294901760
  %v2355 = vsub.f32 %v123, %v2354
  %2356 = vmatpush2.msra.mxu0 %v2355
  %2357 = vmatprep.subr.mxu0 0.0
  %v2358 = vand.u32 %v122, 4294901760
  %v2359 = vsub.f32 %v122, %v2358
  %2360 = vmatpush2.msra.mxu0 %v2359
  %2361 = vmatprep.subr.mxu0 0.0
  %v2362 = vand.u32 %v121, 4294901760
  %v2363 = vsub.f32 %v121, %v2362
  %2364 = vmatpush2.msra.mxu0 %v2363
  %2365 = vmatprep.subr.mxu0 0.0
  %v2366 = vand.u32 %v120, 4294901760
  %v2367 = vsub.f32 %v120, %v2366
  %2368 = vmatpush2.msra.mxu0 %v2367
  %v2369 = vand.u32 %v37, 4294901760
  %v2370 = vsub.f32 %v37, %v2369
  %2371 = vmatprep.mubr.f32.mxu0 %v2370
  %v2372 = vand.u32 %v36, 4294901760
  %v2373 = vsub.f32 %v36, %v2372
  %2374 = vmatmul.mubr.f32.gmra.mxu0 %v2373
  %v2375 = vpop.f32.mrf.mxu0
  %v2376 = vadd.f32 %v2238, %v2375
  %v2377 = vpop.f32.mrf.mxu0
  %2378 = vdwg.mxu0
  %2379 = vmatprep.subr.mxu0 0.0
  %v2380 = vand.u32 %v119, 4294901760
  %2381 = vmatpush1.msra.mxu0 %v2380
  %2382 = vmatprep.subr.mxu0 0.0
  %v2383 = vand.u32 %v118, 4294901760
  %2384 = vmatpush1.msra.mxu0 %v2383
  %2385 = vmatprep.subr.mxu0 0.0
  %v2386 = vand.u32 %v117, 4294901760
  %2387 = vmatpush1.msra.mxu0 %v2386
  %2388 = vmatprep.subr.mxu0 0.0
  %v2389 = vand.u32 %v116, 4294901760
  %2390 = vmatpush1.msra.mxu0 %v2389
  %2391 = vmatprep.subr.mxu0 0.0
  %v2392 = vand.u32 %v115, 4294901760
  %2393 = vmatpush1.msra.mxu0 %v2392
  %2394 = vmatprep.subr.mxu0 0.0
  %v2395 = vand.u32 %v114, 4294901760
  %2396 = vmatpush1.msra.mxu0 %v2395
  %2397 = vmatprep.subr.mxu0 0.0
  %v2398 = vand.u32 %v113, 4294901760
  %2399 = vmatpush1.msra.mxu0 %v2398
  %2400 = vmatprep.subr.mxu0 0.0
  %v2401 = vand.u32 %v112, 4294901760
  %2402 = vmatpush1.msra.mxu0 %v2401
  %2403 = vmatprep.subr.mxu0 0.0
  %v2404 = vand.u32 %v111, 4294901760
  %2405 = vmatpush1.msra.mxu0 %v2404
  %2406 = vmatprep.subr.mxu0 0.0
  %v2407 = vand.u32 %v110, 4294901760
  %2408 = vmatpush1.msra.mxu0 %v2407
  %2409 = vmatprep.subr.mxu0 0.0
  %v2410 = vand.u32 %v109, 4294901760
  %2411 = vmatpush1.msra.mxu0 %v2410
  %2412 = vmatprep.subr.mxu0 0.0
  %v2413 = vand.u32 %v108, 4294901760
  %2414 = vmatpush1.msra.mxu0 %v2413
  %2415 = vmatprep.subr.mxu0 0.0
  %v2416 = vand.u32 %v107, 4294901760
  %2417 = vmatpush1.msra.mxu0 %v2416
  %2418 = vmatprep.subr.mxu0 0.0
  %v2419 = vand.u32 %v106, 4294901760
  %2420 = vmatpush1.msra.mxu0 %v2419
  %2421 = vmatprep.subr.mxu0 0.0
  %v2422 = vand.u32 %v105, 4294901760
  %2423 = vmatpush1.msra.mxu0 %v2422
  %2424 = vmatprep.subr.mxu0 0.0
  %v2425 = vand.u32 %v104, 4294901760
  %2426 = vmatpush1.msra.mxu0 %v2425
  %2427 = vmatprep.subr.mxu0 0.0
  %v2428 = vand.u32 %v135, 4294901760
  %2429 = vmatpush2.msra.mxu0 %v2428
  %2430 = vmatprep.subr.mxu0 0.0
  %v2431 = vand.u32 %v134, 4294901760
  %2432 = vmatpush2.msra.mxu0 %v2431
  %2433 = vmatprep.subr.mxu0 0.0
  %v2434 = vand.u32 %v133, 4294901760
  %2435 = vmatpush2.msra.mxu0 %v2434
  %2436 = vmatprep.subr.mxu0 0.0
  %v2437 = vand.u32 %v132, 4294901760
  %2438 = vmatpush2.msra.mxu0 %v2437
  %2439 = vmatprep.subr.mxu0 0.0
  %v2440 = vand.u32 %v131, 4294901760
  %2441 = vmatpush2.msra.mxu0 %v2440
  %2442 = vmatprep.subr.mxu0 0.0
  %v2443 = vand.u32 %v130, 4294901760
  %2444 = vmatpush2.msra.mxu0 %v2443
  %2445 = vmatprep.subr.mxu0 0.0
  %v2446 = vand.u32 %v129, 4294901760
  %2447 = vmatpush2.msra.mxu0 %v2446
  %2448 = vmatprep.subr.mxu0 0.0
  %v2449 = vand.u32 %v128, 4294901760
  %2450 = vmatpush2.msra.mxu0 %v2449
  %2451 = vmatprep.subr.mxu0 0.0
  %v2452 = vand.u32 %v127, 4294901760
  %2453 = vmatpush2.msra.mxu0 %v2452
  %2454 = vmatprep.subr.mxu0 0.0
  %v2455 = vand.u32 %v126, 4294901760
  %2456 = vmatpush2.msra.mxu0 %v2455
  %2457 = vmatprep.subr.mxu0 0.0
  %v2458 = vand.u32 %v125, 4294901760
  %2459 = vmatpush2.msra.mxu0 %v2458
  %2460 = vmatprep.subr.mxu0 0.0
  %v2461 = vand.u32 %v124, 4294901760
  %2462 = vmatpush2.msra.mxu0 %v2461
  %2463 = vmatprep.subr.mxu0 0.0
  %v2464 = vand.u32 %v123, 4294901760
  %2465 = vmatpush2.msra.mxu0 %v2464
  %2466 = vmatprep.subr.mxu0 0.0
  %v2467 = vand.u32 %v122, 4294901760
  %2468 = vmatpush2.msra.mxu0 %v2467
  %2469 = vmatprep.subr.mxu0 0.0
  %v2470 = vand.u32 %v121, 4294901760
  %2471 = vmatpush2.msra.mxu0 %v2470
  %2472 = vmatprep.subr.mxu0 0.0
  %v2473 = vand.u32 %v120, 4294901760
  %2474 = vmatpush2.msra.mxu0 %v2473
  %v2475 = vand.u32 %v37, 4294901760
  %v2476 = vsub.f32 %v37, %v2475
  %v2477 = vand.u32 %v2476, 4294901760
  %2478 = vmatprep.mubr.f32.mxu0 %v2477
  %v2479 = vand.u32 %v36, 4294901760
  %v2480 = vsub.f32 %v36, %v2479
  %v2481 = vand.u32 %v2480, 4294901760
  %2482 = vmatmul.mubr.f32.gmra.mxu0 %v2481
  %v2483 = vpop.f32.mrf.mxu0
  %v2484 = vadd.f32 %v2376, %v2483
  %v2485 = vpop.f32.mrf.mxu0
  %2486 = vdwg.mxu0
  %2487 = vmatprep.subr.mxu0 0.0
  %v2488 = vand.u32 %v119, 4294901760
  %v2489 = vsub.f32 %v119, %v2488
  %v2490 = vand.u32 %v2489, 4294901760
  %2491 = vmatpush1.msra.mxu0 %v2490
  %2492 = vmatprep.subr.mxu0 0.0
  %v2493 = vand.u32 %v118, 4294901760
  %v2494 = vsub.f32 %v118, %v2493
  %v2495 = vand.u32 %v2494, 4294901760
  %2496 = vmatpush1.msra.mxu0 %v2495
  %2497 = vmatprep.subr.mxu0 0.0
  %v2498 = vand.u32 %v117, 4294901760
  %v2499 = vsub.f32 %v117, %v2498
  %v2500 = vand.u32 %v2499, 4294901760
  %2501 = vmatpush1.msra.mxu0 %v2500
  %2502 = vmatprep.subr.mxu0 0.0
  %v2503 = vand.u32 %v116, 4294901760
  %v2504 = vsub.f32 %v116, %v2503
  %v2505 = vand.u32 %v2504, 4294901760
  %2506 = vmatpush1.msra.mxu0 %v2505
  %2507 = vmatprep.subr.mxu0 0.0
  %v2508 = vand.u32 %v115, 4294901760
  %v2509 = vsub.f32 %v115, %v2508
  %v2510 = vand.u32 %v2509, 4294901760
  %2511 = vmatpush1.msra.mxu0 %v2510
  %2512 = vmatprep.subr.mxu0 0.0
  %v2513 = vand.u32 %v114, 4294901760
  %v2514 = vsub.f32 %v114, %v2513
  %v2515 = vand.u32 %v2514, 4294901760
  %2516 = vmatpush1.msra.mxu0 %v2515
  %2517 = vmatprep.subr.mxu0 0.0
  %v2518 = vand.u32 %v113, 4294901760
  %v2519 = vsub.f32 %v113, %v2518
  %v2520 = vand.u32 %v2519, 4294901760
  %2521 = vmatpush1.msra.mxu0 %v2520
  %2522 = vmatprep.subr.mxu0 0.0
  %v2523 = vand.u32 %v112, 4294901760
  %v2524 = vsub.f32 %v112, %v2523
  %v2525 = vand.u32 %v2524, 4294901760
  %2526 = vmatpush1.msra.mxu0 %v2525
  %2527 = vmatprep.subr.mxu0 0.0
  %v2528 = vand.u32 %v111, 4294901760
  %v2529 = vsub.f32 %v111, %v2528
  %v2530 = vand.u32 %v2529, 4294901760
  %2531 = vmatpush1.msra.mxu0 %v2530
  %2532 = vmatprep.subr.mxu0 0.0
  %v2533 = vand.u32 %v110, 4294901760
  %v2534 = vsub.f32 %v110, %v2533
  %v2535 = vand.u32 %v2534, 4294901760
  %2536 = vmatpush1.msra.mxu0 %v2535
  %2537 = vmatprep.subr.mxu0 0.0
  %v2538 = vand.u32 %v109, 4294901760
  %v2539 = vsub.f32 %v109, %v2538
  %v2540 = vand.u32 %v2539, 4294901760
  %2541 = vmatpush1.msra.mxu0 %v2540
  %2542 = vmatprep.subr.mxu0 0.0
  %v2543 = vand.u32 %v108, 4294901760
  %v2544 = vsub.f32 %v108, %v2543
  %v2545 = vand.u32 %v2544, 4294901760
  %2546 = vmatpush1.msra.mxu0 %v2545
  %2547 = vmatprep.subr.mxu0 0.0
  %v2548 = vand.u32 %v107, 4294901760
  %v2549 = vsub.f32 %v107, %v2548
  %v2550 = vand.u32 %v2549, 4294901760
  %2551 = vmatpush1.msra.mxu0 %v2550
  %2552 = vmatprep.subr.mxu0 0.0
  %v2553 = vand.u32 %v106, 4294901760
  %v2554 = vsub.f32 %v106, %v2553
  %v2555 = vand.u32 %v2554, 4294901760
  %2556 = vmatpush1.msra.mxu0 %v2555
  %2557 = vmatprep.subr.mxu0 0.0
  %v2558 = vand.u32 %v105, 4294901760
  %v2559 = vsub.f32 %v105, %v2558
  %v2560 = vand.u32 %v2559, 4294901760
  %2561 = vmatpush1.msra.mxu0 %v2560
  %2562 = vmatprep.subr.mxu0 0.0
  %v2563 = vand.u32 %v104, 4294901760
  %v2564 = vsub.f32 %v104, %v2563
  %v2565 = vand.u32 %v2564, 4294901760
  %2566 = vmatpush1.msra.mxu0 %v2565
  %2567 = vmatprep.subr.mxu0 0.0
  %v2568 = vand.u32 %v135, 4294901760
  %v2569 = vsub.f32 %v135, %v2568
  %v2570 = vand.u32 %v2569, 4294901760
  %2571 = vmatpush2.msra.mxu0 %v2570
  %2572 = vmatprep.subr.mxu0 0.0
  %v2573 = vand.u32 %v134, 4294901760
  %v2574 = vsub.f32 %v134, %v2573
  %v2575 = vand.u32 %v2574, 4294901760
  %2576 = vmatpush2.msra.mxu0 %v2575
  %2577 = vmatprep.subr.mxu0 0.0
  %v2578 = vand.u32 %v133, 4294901760
  %v2579 = vsub.f32 %v133, %v2578
  %v2580 = vand.u32 %v2579, 4294901760
  %2581 = vmatpush2.msra.mxu0 %v2580
  %2582 = vmatprep.subr.mxu0 0.0
  %v2583 = vand.u32 %v132, 4294901760
  %v2584 = vsub.f32 %v132, %v2583
  %v2585 = vand.u32 %v2584, 4294901760
  %2586 = vmatpush2.msra.mxu0 %v2585
  %2587 = vmatprep.subr.mxu0 0.0
  %v2588 = vand.u32 %v131, 4294901760
  %v2589 = vsub.f32 %v131, %v2588
  %v2590 = vand.u32 %v2589, 4294901760
  %2591 = vmatpush2.msra.mxu0 %v2590
  %2592 = vmatprep.subr.mxu0 0.0
  %v2593 = vand.u32 %v130, 4294901760
  %v2594 = vsub.f32 %v130, %v2593
  %v2595 = vand.u32 %v2594, 4294901760
  %2596 = vmatpush2.msra.mxu0 %v2595
  %2597 = vmatprep.subr.mxu0 0.0
  %v2598 = vand.u32 %v129, 4294901760
  %v2599 = vsub.f32 %v129, %v2598
  %v2600 = vand.u32 %v2599, 4294901760
  %2601 = vmatpush2.msra.mxu0 %v2600
  %2602 = vmatprep.subr.mxu0 0.0
  %v2603 = vand.u32 %v128, 4294901760
  %v2604 = vsub.f32 %v128, %v2603
  %v2605 = vand.u32 %v2604, 4294901760
  %2606 = vmatpush2.msra.mxu0 %v2605
  %2607 = vmatprep.subr.mxu0 0.0
  %v2608 = vand.u32 %v127, 4294901760
  %v2609 = vsub.f32 %v127, %v2608
  %v2610 = vand.u32 %v2609, 4294901760
  %2611 = vmatpush2.msra.mxu0 %v2610
  %2612 = vmatprep.subr.mxu0 0.0
  %v2613 = vand.u32 %v126, 4294901760
  %v2614 = vsub.f32 %v126, %v2613
  %v2615 = vand.u32 %v2614, 4294901760
  %2616 = vmatpush2.msra.mxu0 %v2615
  %2617 = vmatprep.subr.mxu0 0.0
  %v2618 = vand.u32 %v125, 4294901760
  %v2619 = vsub.f32 %v125, %v2618
  %v2620 = vand.u32 %v2619, 4294901760
  %2621 = vmatpush2.msra.mxu0 %v2620
  %2622 = vmatprep.subr.mxu0 0.0
  %v2623 = vand.u32 %v124, 4294901760
  %v2624 = vsub.f32 %v124, %v2623
  %v2625 = vand.u32 %v2624, 4294901760
  %2626 = vmatpush2.msra.mxu0 %v2625
  %2627 = vmatprep.subr.mxu0 0.0
  %v2628 = vand.u32 %v123, 4294901760
  %v2629 = vsub.f32 %v123, %v2628
  %v2630 = vand.u32 %v2629, 4294901760
  %2631 = vmatpush2.msra.mxu0 %v2630
  %2632 = vmatprep.subr.mxu0 0.0
  %v2633 = vand.u32 %v122, 4294901760
  %v2634 = vsub.f32 %v122, %v2633
  %v2635 = vand.u32 %v2634, 4294901760
  %2636 = vmatpush2.msra.mxu0 %v2635
  %2637 = vmatprep.subr.mxu0 0.0
  %v2638 = vand.u32 %v121, 4294901760
  %v2639 = vsub.f32 %v121, %v2638
  %v2640 = vand.u32 %v2639, 4294901760
  %2641 = vmatpush2.msra.mxu0 %v2640
  %2642 = vmatprep.subr.mxu0 0.0
  %v2643 = vand.u32 %v120, 4294901760
  %v2644 = vsub.f32 %v120, %v2643
  %v2645 = vand.u32 %v2644, 4294901760
  %2646 = vmatpush2.msra.mxu0 %v2645
  %v2647 = vand.u32 %v37, 4294901760
  %2648 = vmatprep.mubr.f32.mxu0 %v2647
  %v2649 = vand.u32 %v36, 4294901760
  %2650 = vmatmul.mubr.f32.gmra.mxu0 %v2649
  %v2651 = vpop.f32.mrf.mxu0
  %v2652 = vadd.f32 %v2484, %v2651
  %v2653 = vpop.f32.mrf.mxu0
  %2654 = vdwg.mxu0
  %2655 = vmatprep.subr.mxu0 0.0
  %v2656 = vand.u32 %v119, 4294901760
  %2657 = vmatpush1.msra.mxu0 %v2656
  %2658 = vmatprep.subr.mxu0 0.0
  %v2659 = vand.u32 %v118, 4294901760
  %2660 = vmatpush1.msra.mxu0 %v2659
  %2661 = vmatprep.subr.mxu0 0.0
  %v2662 = vand.u32 %v117, 4294901760
  %2663 = vmatpush1.msra.mxu0 %v2662
  %2664 = vmatprep.subr.mxu0 0.0
  %v2665 = vand.u32 %v116, 4294901760
  %2666 = vmatpush1.msra.mxu0 %v2665
  %2667 = vmatprep.subr.mxu0 0.0
  %v2668 = vand.u32 %v115, 4294901760
  %2669 = vmatpush1.msra.mxu0 %v2668
  %2670 = vmatprep.subr.mxu0 0.0
  %v2671 = vand.u32 %v114, 4294901760
  %2672 = vmatpush1.msra.mxu0 %v2671
  %2673 = vmatprep.subr.mxu0 0.0
  %v2674 = vand.u32 %v113, 4294901760
  %2675 = vmatpush1.msra.mxu0 %v2674
  %2676 = vmatprep.subr.mxu0 0.0
  %v2677 = vand.u32 %v112, 4294901760
  %2678 = vmatpush1.msra.mxu0 %v2677
  %2679 = vmatprep.subr.mxu0 0.0
  %v2680 = vand.u32 %v111, 4294901760
  %2681 = vmatpush1.msra.mxu0 %v2680
  %2682 = vmatprep.subr.mxu0 0.0
  %v2683 = vand.u32 %v110, 4294901760
  %2684 = vmatpush1.msra.mxu0 %v2683
  %2685 = vmatprep.subr.mxu0 0.0
  %v2686 = vand.u32 %v109, 4294901760
  %2687 = vmatpush1.msra.mxu0 %v2686
  %2688 = vmatprep.subr.mxu0 0.0
  %v2689 = vand.u32 %v108, 4294901760
  %2690 = vmatpush1.msra.mxu0 %v2689
  %2691 = vmatprep.subr.mxu0 0.0
  %v2692 = vand.u32 %v107, 4294901760
  %2693 = vmatpush1.msra.mxu0 %v2692
  %2694 = vmatprep.subr.mxu0 0.0
  %v2695 = vand.u32 %v106, 4294901760
  %2696 = vmatpush1.msra.mxu0 %v2695
  %2697 = vmatprep.subr.mxu0 0.0
  %v2698 = vand.u32 %v105, 4294901760
  %2699 = vmatpush1.msra.mxu0 %v2698
  %2700 = vmatprep.subr.mxu0 0.0
  %v2701 = vand.u32 %v104, 4294901760
  %2702 = vmatpush1.msra.mxu0 %v2701
  %2703 = vmatprep.subr.mxu0 0.0
  %v2704 = vand.u32 %v135, 4294901760
  %2705 = vmatpush2.msra.mxu0 %v2704
  %2706 = vmatprep.subr.mxu0 0.0
  %v2707 = vand.u32 %v134, 4294901760
  %2708 = vmatpush2.msra.mxu0 %v2707
  %2709 = vmatprep.subr.mxu0 0.0
  %v2710 = vand.u32 %v133, 4294901760
  %2711 = vmatpush2.msra.mxu0 %v2710
  %2712 = vmatprep.subr.mxu0 0.0
  %v2713 = vand.u32 %v132, 4294901760
  %2714 = vmatpush2.msra.mxu0 %v2713
  %2715 = vmatprep.subr.mxu0 0.0
  %v2716 = vand.u32 %v131, 4294901760
  %2717 = vmatpush2.msra.mxu0 %v2716
  %2718 = vmatprep.subr.mxu0 0.0
  %v2719 = vand.u32 %v130, 4294901760
  %2720 = vmatpush2.msra.mxu0 %v2719
  %2721 = vmatprep.subr.mxu0 0.0
  %v2722 = vand.u32 %v129, 4294901760
  %2723 = vmatpush2.msra.mxu0 %v2722
  %2724 = vmatprep.subr.mxu0 0.0
  %v2725 = vand.u32 %v128, 4294901760
  %2726 = vmatpush2.msra.mxu0 %v2725
  %2727 = vmatprep.subr.mxu0 0.0
  %v2728 = vand.u32 %v127, 4294901760
  %2729 = vmatpush2.msra.mxu0 %v2728
  %2730 = vmatprep.subr.mxu0 0.0
  %v2731 = vand.u32 %v126, 4294901760
  %2732 = vmatpush2.msra.mxu0 %v2731
  %2733 = vmatprep.subr.mxu0 0.0
  %v2734 = vand.u32 %v125, 4294901760
  %2735 = vmatpush2.msra.mxu0 %v2734
  %2736 = vmatprep.subr.mxu0 0.0
  %v2737 = vand.u32 %v124, 4294901760
  %2738 = vmatpush2.msra.mxu0 %v2737
  %2739 = vmatprep.subr.mxu0 0.0
  %v2740 = vand.u32 %v123, 4294901760
  %2741 = vmatpush2.msra.mxu0 %v2740
  %2742 = vmatprep.subr.mxu0 0.0
  %v2743 = vand.u32 %v122, 4294901760
  %2744 = vmatpush2.msra.mxu0 %v2743
  %2745 = vmatprep.subr.mxu0 0.0
  %v2746 = vand.u32 %v121, 4294901760
  %2747 = vmatpush2.msra.mxu0 %v2746
  %2748 = vmatprep.subr.mxu0 0.0
  %v2749 = vand.u32 %v120, 4294901760
  %2750 = vmatpush2.msra.mxu0 %v2749
  %v2751 = vand.u32 %v37, 4294901760
  %2752 = vmatprep.mubr.f32.mxu0 %v2751
  %v2753 = vand.u32 %v36, 4294901760
  %2754 = vmatmul.mubr.f32.gmra.mxu0 %v2753
  %v2755 = vpop.f32.mrf.mxu0
  %v2756 = vadd.f32 %v2652, %v2755
  %v2757 = vpop.f32.mrf.mxu0
  %2758 = vdwg.mxu0
  %2759 = vmatprep.subr.mxu0 0.0
  %v2760 = vand.u32 %v151, 4294901760
  %2761 = vmatpush1.msra.mxu0 %v2760
  %2762 = vmatprep.subr.mxu0 0.0
  %v2763 = vand.u32 %v150, 4294901760
  %2764 = vmatpush1.msra.mxu0 %v2763
  %2765 = vmatprep.subr.mxu0 0.0
  %v2766 = vand.u32 %v149, 4294901760
  %2767 = vmatpush1.msra.mxu0 %v2766
  %2768 = vmatprep.subr.mxu0 0.0
  %v2769 = vand.u32 %v148, 4294901760
  %2770 = vmatpush1.msra.mxu0 %v2769
  %2771 = vmatprep.subr.mxu0 0.0
  %v2772 = vand.u32 %v147, 4294901760
  %2773 = vmatpush1.msra.mxu0 %v2772
  %2774 = vmatprep.subr.mxu0 0.0
  %v2775 = vand.u32 %v146, 4294901760
  %2776 = vmatpush1.msra.mxu0 %v2775
  %2777 = vmatprep.subr.mxu0 0.0
  %v2778 = vand.u32 %v145, 4294901760
  %2779 = vmatpush1.msra.mxu0 %v2778
  %2780 = vmatprep.subr.mxu0 0.0
  %v2781 = vand.u32 %v144, 4294901760
  %2782 = vmatpush1.msra.mxu0 %v2781
  %2783 = vmatprep.subr.mxu0 0.0
  %v2784 = vand.u32 %v143, 4294901760
  %2785 = vmatpush1.msra.mxu0 %v2784
  %2786 = vmatprep.subr.mxu0 0.0
  %v2787 = vand.u32 %v142, 4294901760
  %2788 = vmatpush1.msra.mxu0 %v2787
  %2789 = vmatprep.subr.mxu0 0.0
  %v2790 = vand.u32 %v141, 4294901760
  %2791 = vmatpush1.msra.mxu0 %v2790
  %2792 = vmatprep.subr.mxu0 0.0
  %v2793 = vand.u32 %v140, 4294901760
  %2794 = vmatpush1.msra.mxu0 %v2793
  %2795 = vmatprep.subr.mxu0 0.0
  %v2796 = vand.u32 %v139, 4294901760
  %2797 = vmatpush1.msra.mxu0 %v2796
  %2798 = vmatprep.subr.mxu0 0.0
  %v2799 = vand.u32 %v138, 4294901760
  %2800 = vmatpush1.msra.mxu0 %v2799
  %2801 = vmatprep.subr.mxu0 0.0
  %v2802 = vand.u32 %v137, 4294901760
  %2803 = vmatpush1.msra.mxu0 %v2802
  %2804 = vmatprep.subr.mxu0 0.0
  %v2805 = vand.u32 %v136, 4294901760
  %2806 = vmatpush1.msra.mxu0 %v2805
  %2807 = vmatprep.subr.mxu0 0.0
  %v2808 = vand.u32 %v167, 4294901760
  %2809 = vmatpush2.msra.mxu0 %v2808
  %2810 = vmatprep.subr.mxu0 0.0
  %v2811 = vand.u32 %v166, 4294901760
  %2812 = vmatpush2.msra.mxu0 %v2811
  %2813 = vmatprep.subr.mxu0 0.0
  %v2814 = vand.u32 %v165, 4294901760
  %2815 = vmatpush2.msra.mxu0 %v2814
  %2816 = vmatprep.subr.mxu0 0.0
  %v2817 = vand.u32 %v164, 4294901760
  %2818 = vmatpush2.msra.mxu0 %v2817
  %2819 = vmatprep.subr.mxu0 0.0
  %v2820 = vand.u32 %v163, 4294901760
  %2821 = vmatpush2.msra.mxu0 %v2820
  %2822 = vmatprep.subr.mxu0 0.0
  %v2823 = vand.u32 %v162, 4294901760
  %2824 = vmatpush2.msra.mxu0 %v2823
  %2825 = vmatprep.subr.mxu0 0.0
  %v2826 = vand.u32 %v161, 4294901760
  %2827 = vmatpush2.msra.mxu0 %v2826
  %2828 = vmatprep.subr.mxu0 0.0
  %v2829 = vand.u32 %v160, 4294901760
  %2830 = vmatpush2.msra.mxu0 %v2829
  %2831 = vmatprep.subr.mxu0 0.0
  %v2832 = vand.u32 %v159, 4294901760
  %2833 = vmatpush2.msra.mxu0 %v2832
  %2834 = vmatprep.subr.mxu0 0.0
  %v2835 = vand.u32 %v158, 4294901760
  %2836 = vmatpush2.msra.mxu0 %v2835
  %2837 = vmatprep.subr.mxu0 0.0
  %v2838 = vand.u32 %v157, 4294901760
  %2839 = vmatpush2.msra.mxu0 %v2838
  %2840 = vmatprep.subr.mxu0 0.0
  %v2841 = vand.u32 %v156, 4294901760
  %2842 = vmatpush2.msra.mxu0 %v2841
  %2843 = vmatprep.subr.mxu0 0.0
  %v2844 = vand.u32 %v155, 4294901760
  %2845 = vmatpush2.msra.mxu0 %v2844
  %2846 = vmatprep.subr.mxu0 0.0
  %v2847 = vand.u32 %v154, 4294901760
  %2848 = vmatpush2.msra.mxu0 %v2847
  %2849 = vmatprep.subr.mxu0 0.0
  %v2850 = vand.u32 %v153, 4294901760
  %2851 = vmatpush2.msra.mxu0 %v2850
  %2852 = vmatprep.subr.mxu0 0.0
  %v2853 = vand.u32 %v152, 4294901760
  %2854 = vmatpush2.msra.mxu0 %v2853
  %v2855 = vand.u32 %v39, 4294901760
  %v2856 = vsub.f32 %v39, %v2855
  %v2857 = vand.u32 %v2856, 4294901760
  %v2858 = vsub.f32 %v2856, %v2857
  %v2859 = vand.u32 %v2858, 4294901760
  %2860 = vmatprep.mubr.f32.mxu0 %v2859
  %v2861 = vand.u32 %v38, 4294901760
  %v2862 = vsub.f32 %v38, %v2861
  %v2863 = vand.u32 %v2862, 4294901760
  %v2864 = vsub.f32 %v2862, %v2863
  %v2865 = vand.u32 %v2864, 4294901760
  %2866 = vmatmul.mubr.f32.gmra.mxu0 %v2865
  %v2867 = vpop.f32.mrf.mxu0
  %v2868 = vadd.f32 %v2756, %v2867
  %v2869 = vpop.f32.mrf.mxu0
  %2870 = vdwg.mxu0
  %2871 = vmatprep.subr.mxu0 0.0
  %v2872 = vand.u32 %v151, 4294901760
  %v2873 = vsub.f32 %v151, %v2872
  %v2874 = vand.u32 %v2873, 4294901760
  %v2875 = vsub.f32 %v2873, %v2874
  %v2876 = vand.u32 %v2875, 4294901760
  %2877 = vmatpush1.msra.mxu0 %v2876
  %2878 = vmatprep.subr.mxu0 0.0
  %v2879 = vand.u32 %v150, 4294901760
  %v2880 = vsub.f32 %v150, %v2879
  %v2881 = vand.u32 %v2880, 4294901760
  %v2882 = vsub.f32 %v2880, %v2881
  %v2883 = vand.u32 %v2882, 4294901760
  %2884 = vmatpush1.msra.mxu0 %v2883
  %2885 = vmatprep.subr.mxu0 0.0
  %v2886 = vand.u32 %v149, 4294901760
  %v2887 = vsub.f32 %v149, %v2886
  %v2888 = vand.u32 %v2887, 4294901760
  %v2889 = vsub.f32 %v2887, %v2888
  %v2890 = vand.u32 %v2889, 4294901760
  %2891 = vmatpush1.msra.mxu0 %v2890
  %2892 = vmatprep.subr.mxu0 0.0
  %v2893 = vand.u32 %v148, 4294901760
  %v2894 = vsub.f32 %v148, %v2893
  %v2895 = vand.u32 %v2894, 4294901760
  %v2896 = vsub.f32 %v2894, %v2895
  %v2897 = vand.u32 %v2896, 4294901760
  %2898 = vmatpush1.msra.mxu0 %v2897
  %2899 = vmatprep.subr.mxu0 0.0
  %v2900 = vand.u32 %v147, 4294901760
  %v2901 = vsub.f32 %v147, %v2900
  %v2902 = vand.u32 %v2901, 4294901760
  %v2903 = vsub.f32 %v2901, %v2902
  %v2904 = vand.u32 %v2903, 4294901760
  %2905 = vmatpush1.msra.mxu0 %v2904
  %2906 = vmatprep.subr.mxu0 0.0
  %v2907 = vand.u32 %v146, 4294901760
  %v2908 = vsub.f32 %v146, %v2907
  %v2909 = vand.u32 %v2908, 4294901760
  %v2910 = vsub.f32 %v2908, %v2909
  %v2911 = vand.u32 %v2910, 4294901760
  %2912 = vmatpush1.msra.mxu0 %v2911
  %2913 = vmatprep.subr.mxu0 0.0
  %v2914 = vand.u32 %v145, 4294901760
  %v2915 = vsub.f32 %v145, %v2914
  %v2916 = vand.u32 %v2915, 4294901760
  %v2917 = vsub.f32 %v2915, %v2916
  %v2918 = vand.u32 %v2917, 4294901760
  %2919 = vmatpush1.msra.mxu0 %v2918
  %2920 = vmatprep.subr.mxu0 0.0
  %v2921 = vand.u32 %v144, 4294901760
  %v2922 = vsub.f32 %v144, %v2921
  %v2923 = vand.u32 %v2922, 4294901760
  %v2924 = vsub.f32 %v2922, %v2923
  %v2925 = vand.u32 %v2924, 4294901760
  %2926 = vmatpush1.msra.mxu0 %v2925
  %2927 = vmatprep.subr.mxu0 0.0
  %v2928 = vand.u32 %v143, 4294901760
  %v2929 = vsub.f32 %v143, %v2928
  %v2930 = vand.u32 %v2929, 4294901760
  %v2931 = vsub.f32 %v2929, %v2930
  %v2932 = vand.u32 %v2931, 4294901760
  %2933 = vmatpush1.msra.mxu0 %v2932
  %2934 = vmatprep.subr.mxu0 0.0
  %v2935 = vand.u32 %v142, 4294901760
  %v2936 = vsub.f32 %v142, %v2935
  %v2937 = vand.u32 %v2936, 4294901760
  %v2938 = vsub.f32 %v2936, %v2937
  %v2939 = vand.u32 %v2938, 4294901760
  %2940 = vmatpush1.msra.mxu0 %v2939
  %2941 = vmatprep.subr.mxu0 0.0
  %v2942 = vand.u32 %v141, 4294901760
  %v2943 = vsub.f32 %v141, %v2942
  %v2944 = vand.u32 %v2943, 4294901760
  %v2945 = vsub.f32 %v2943, %v2944
  %v2946 = vand.u32 %v2945, 4294901760
  %2947 = vmatpush1.msra.mxu0 %v2946
  %2948 = vmatprep.subr.mxu0 0.0
  %v2949 = vand.u32 %v140, 4294901760
  %v2950 = vsub.f32 %v140, %v2949
  %v2951 = vand.u32 %v2950, 4294901760
  %v2952 = vsub.f32 %v2950, %v2951
  %v2953 = vand.u32 %v2952, 4294901760
  %2954 = vmatpush1.msra.mxu0 %v2953
  %2955 = vmatprep.subr.mxu0 0.0
  %v2956 = vand.u32 %v139, 4294901760
  %v2957 = vsub.f32 %v139, %v2956
  %v2958 = vand.u32 %v2957, 4294901760
  %v2959 = vsub.f32 %v2957, %v2958
  %v2960 = vand.u32 %v2959, 4294901760
  %2961 = vmatpush1.msra.mxu0 %v2960
  %2962 = vmatprep.subr.mxu0 0.0
  %v2963 = vand.u32 %v138, 4294901760
  %v2964 = vsub.f32 %v138, %v2963
  %v2965 = vand.u32 %v2964, 4294901760
  %v2966 = vsub.f32 %v2964, %v2965
  %v2967 = vand.u32 %v2966, 4294901760
  %2968 = vmatpush1.msra.mxu0 %v2967
  %2969 = vmatprep.subr.mxu0 0.0
  %v2970 = vand.u32 %v137, 4294901760
  %v2971 = vsub.f32 %v137, %v2970
  %v2972 = vand.u32 %v2971, 4294901760
  %v2973 = vsub.f32 %v2971, %v2972
  %v2974 = vand.u32 %v2973, 4294901760
  %2975 = vmatpush1.msra.mxu0 %v2974
  %2976 = vmatprep.subr.mxu0 0.0
  %v2977 = vand.u32 %v136, 4294901760
  %v2978 = vsub.f32 %v136, %v2977
  %v2979 = vand.u32 %v2978, 4294901760
  %v2980 = vsub.f32 %v2978, %v2979
  %v2981 = vand.u32 %v2980, 4294901760
  %2982 = vmatpush1.msra.mxu0 %v2981
  %2983 = vmatprep.subr.mxu0 0.0
  %v2984 = vand.u32 %v167, 4294901760
  %v2985 = vsub.f32 %v167, %v2984
  %v2986 = vand.u32 %v2985, 4294901760
  %v2987 = vsub.f32 %v2985, %v2986
  %v2988 = vand.u32 %v2987, 4294901760
  %2989 = vmatpush2.msra.mxu0 %v2988
  %2990 = vmatprep.subr.mxu0 0.0
  %v2991 = vand.u32 %v166, 4294901760
  %v2992 = vsub.f32 %v166, %v2991
  %v2993 = vand.u32 %v2992, 4294901760
  %v2994 = vsub.f32 %v2992, %v2993
  %v2995 = vand.u32 %v2994, 4294901760
  %2996 = vmatpush2.msra.mxu0 %v2995
  %2997 = vmatprep.subr.mxu0 0.0
  %v2998 = vand.u32 %v165, 4294901760
  %v2999 = vsub.f32 %v165, %v2998
  %v3000 = vand.u32 %v2999, 4294901760
  %v3001 = vsub.f32 %v2999, %v3000
  %v3002 = vand.u32 %v3001, 4294901760
  %3003 = vmatpush2.msra.mxu0 %v3002
  %3004 = vmatprep.subr.mxu0 0.0
  %v3005 = vand.u32 %v164, 4294901760
  %v3006 = vsub.f32 %v164, %v3005
  %v3007 = vand.u32 %v3006, 4294901760
  %v3008 = vsub.f32 %v3006, %v3007
  %v3009 = vand.u32 %v3008, 4294901760
  %3010 = vmatpush2.msra.mxu0 %v3009
  %3011 = vmatprep.subr.mxu0 0.0
  %v3012 = vand.u32 %v163, 4294901760
  %v3013 = vsub.f32 %v163, %v3012
  %v3014 = vand.u32 %v3013, 4294901760
  %v3015 = vsub.f32 %v3013, %v3014
  %v3016 = vand.u32 %v3015, 4294901760
  %3017 = vmatpush2.msra.mxu0 %v3016
  %3018 = vmatprep.subr.mxu0 0.0
  %v3019 = vand.u32 %v162, 4294901760
  %v3020 = vsub.f32 %v162, %v3019
  %v3021 = vand.u32 %v3020, 4294901760
  %v3022 = vsub.f32 %v3020, %v3021
  %v3023 = vand.u32 %v3022, 4294901760
  %3024 = vmatpush2.msra.mxu0 %v3023
  %3025 = vmatprep.subr.mxu0 0.0
  %v3026 = vand.u32 %v161, 4294901760
  %v3027 = vsub.f32 %v161, %v3026
  %v3028 = vand.u32 %v3027, 4294901760
  %v3029 = vsub.f32 %v3027, %v3028
  %v3030 = vand.u32 %v3029, 4294901760
  %3031 = vmatpush2.msra.mxu0 %v3030
  %3032 = vmatprep.subr.mxu0 0.0
  %v3033 = vand.u32 %v160, 4294901760
  %v3034 = vsub.f32 %v160, %v3033
  %v3035 = vand.u32 %v3034, 4294901760
  %v3036 = vsub.f32 %v3034, %v3035
  %v3037 = vand.u32 %v3036, 4294901760
  %3038 = vmatpush2.msra.mxu0 %v3037
  %3039 = vmatprep.subr.mxu0 0.0
  %v3040 = vand.u32 %v159, 4294901760
  %v3041 = vsub.f32 %v159, %v3040
  %v3042 = vand.u32 %v3041, 4294901760
  %v3043 = vsub.f32 %v3041, %v3042
  %v3044 = vand.u32 %v3043, 4294901760
  %3045 = vmatpush2.msra.mxu0 %v3044
  %3046 = vmatprep.subr.mxu0 0.0
  %v3047 = vand.u32 %v158, 4294901760
  %v3048 = vsub.f32 %v158, %v3047
  %v3049 = vand.u32 %v3048, 4294901760
  %v3050 = vsub.f32 %v3048, %v3049
  %v3051 = vand.u32 %v3050, 4294901760
  %3052 = vmatpush2.msra.mxu0 %v3051
  %3053 = vmatprep.subr.mxu0 0.0
  %v3054 = vand.u32 %v157, 4294901760
  %v3055 = vsub.f32 %v157, %v3054
  %v3056 = vand.u32 %v3055, 4294901760
  %v3057 = vsub.f32 %v3055, %v3056
  %v3058 = vand.u32 %v3057, 4294901760
  %3059 = vmatpush2.msra.mxu0 %v3058
  %3060 = vmatprep.subr.mxu0 0.0
  %v3061 = vand.u32 %v156, 4294901760
  %v3062 = vsub.f32 %v156, %v3061
  %v3063 = vand.u32 %v3062, 4294901760
  %v3064 = vsub.f32 %v3062, %v3063
  %v3065 = vand.u32 %v3064, 4294901760
  %3066 = vmatpush2.msra.mxu0 %v3065
  %3067 = vmatprep.subr.mxu0 0.0
  %v3068 = vand.u32 %v155, 4294901760
  %v3069 = vsub.f32 %v155, %v3068
  %v3070 = vand.u32 %v3069, 4294901760
  %v3071 = vsub.f32 %v3069, %v3070
  %v3072 = vand.u32 %v3071, 4294901760
  %3073 = vmatpush2.msra.mxu0 %v3072
  %3074 = vmatprep.subr.mxu0 0.0
  %v3075 = vand.u32 %v154, 4294901760
  %v3076 = vsub.f32 %v154, %v3075
  %v3077 = vand.u32 %v3076, 4294901760
  %v3078 = vsub.f32 %v3076, %v3077
  %v3079 = vand.u32 %v3078, 4294901760
  %3080 = vmatpush2.msra.mxu0 %v3079
  %3081 = vmatprep.subr.mxu0 0.0
  %v3082 = vand.u32 %v153, 4294901760
  %v3083 = vsub.f32 %v153, %v3082
  %v3084 = vand.u32 %v3083, 4294901760
  %v3085 = vsub.f32 %v3083, %v3084
  %v3086 = vand.u32 %v3085, 4294901760
  %3087 = vmatpush2.msra.mxu0 %v3086
  %3088 = vmatprep.subr.mxu0 0.0
  %v3089 = vand.u32 %v152, 4294901760
  %v3090 = vsub.f32 %v152, %v3089
  %v3091 = vand.u32 %v3090, 4294901760
  %v3092 = vsub.f32 %v3090, %v3091
  %v3093 = vand.u32 %v3092, 4294901760
  %3094 = vmatpush2.msra.mxu0 %v3093
  %v3095 = vand.u32 %v39, 4294901760
  %3096 = vmatprep.mubr.f32.mxu0 %v3095
  %v3097 = vand.u32 %v38, 4294901760
  %3098 = vmatmul.mubr.f32.gmra.mxu0 %v3097
  %v3099 = vpop.f32.mrf.mxu0
  %v3100 = vadd.f32 %v2868, %v3099
  %v3101 = vpop.f32.mrf.mxu0
  %3102 = vdwg.mxu0
  %3103 = vmatprep.subr.mxu0 0.0
  %v3104 = vand.u32 %v151, 4294901760
  %v3105 = vsub.f32 %v151, %v3104
  %3106 = vmatpush1.msra.mxu0 %v3105
  %3107 = vmatprep.subr.mxu0 0.0
  %v3108 = vand.u32 %v150, 4294901760
  %v3109 = vsub.f32 %v150, %v3108
  %3110 = vmatpush1.msra.mxu0 %v3109
  %3111 = vmatprep.subr.mxu0 0.0
  %v3112 = vand.u32 %v149, 4294901760
  %v3113 = vsub.f32 %v149, %v3112
  %3114 = vmatpush1.msra.mxu0 %v3113
  %3115 = vmatprep.subr.mxu0 0.0
  %v3116 = vand.u32 %v148, 4294901760
  %v3117 = vsub.f32 %v148, %v3116
  %3118 = vmatpush1.msra.mxu0 %v3117
  %3119 = vmatprep.subr.mxu0 0.0
  %v3120 = vand.u32 %v147, 4294901760
  %v3121 = vsub.f32 %v147, %v3120
  %3122 = vmatpush1.msra.mxu0 %v3121
  %3123 = vmatprep.subr.mxu0 0.0
  %v3124 = vand.u32 %v146, 4294901760
  %v3125 = vsub.f32 %v146, %v3124
  %3126 = vmatpush1.msra.mxu0 %v3125
  %3127 = vmatprep.subr.mxu0 0.0
  %v3128 = vand.u32 %v145, 4294901760
  %v3129 = vsub.f32 %v145, %v3128
  %3130 = vmatpush1.msra.mxu0 %v3129
  %3131 = vmatprep.subr.mxu0 0.0
  %v3132 = vand.u32 %v144, 4294901760
  %v3133 = vsub.f32 %v144, %v3132
  %3134 = vmatpush1.msra.mxu0 %v3133
  %3135 = vmatprep.subr.mxu0 0.0
  %v3136 = vand.u32 %v143, 4294901760
  %v3137 = vsub.f32 %v143, %v3136
  %3138 = vmatpush1.msra.mxu0 %v3137
  %3139 = vmatprep.subr.mxu0 0.0
  %v3140 = vand.u32 %v142, 4294901760
  %v3141 = vsub.f32 %v142, %v3140
  %3142 = vmatpush1.msra.mxu0 %v3141
  %3143 = vmatprep.subr.mxu0 0.0
  %v3144 = vand.u32 %v141, 4294901760
  %v3145 = vsub.f32 %v141, %v3144
  %3146 = vmatpush1.msra.mxu0 %v3145
  %3147 = vmatprep.subr.mxu0 0.0
  %v3148 = vand.u32 %v140, 4294901760
  %v3149 = vsub.f32 %v140, %v3148
  %3150 = vmatpush1.msra.mxu0 %v3149
  %3151 = vmatprep.subr.mxu0 0.0
  %v3152 = vand.u32 %v139, 4294901760
  %v3153 = vsub.f32 %v139, %v3152
  %3154 = vmatpush1.msra.mxu0 %v3153
  %3155 = vmatprep.subr.mxu0 0.0
  %v3156 = vand.u32 %v138, 4294901760
  %v3157 = vsub.f32 %v138, %v3156
  %3158 = vmatpush1.msra.mxu0 %v3157
  %3159 = vmatprep.subr.mxu0 0.0
  %v3160 = vand.u32 %v137, 4294901760
  %v3161 = vsub.f32 %v137, %v3160
  %3162 = vmatpush1.msra.mxu0 %v3161
  %3163 = vmatprep.subr.mxu0 0.0
  %v3164 = vand.u32 %v136, 4294901760
  %v3165 = vsub.f32 %v136, %v3164
  %3166 = vmatpush1.msra.mxu0 %v3165
  %3167 = vmatprep.subr.mxu0 0.0
  %v3168 = vand.u32 %v167, 4294901760
  %v3169 = vsub.f32 %v167, %v3168
  %3170 = vmatpush2.msra.mxu0 %v3169
  %3171 = vmatprep.subr.mxu0 0.0
  %v3172 = vand.u32 %v166, 4294901760
  %v3173 = vsub.f32 %v166, %v3172
  %3174 = vmatpush2.msra.mxu0 %v3173
  %3175 = vmatprep.subr.mxu0 0.0
  %v3176 = vand.u32 %v165, 4294901760
  %v3177 = vsub.f32 %v165, %v3176
  %3178 = vmatpush2.msra.mxu0 %v3177
  %3179 = vmatprep.subr.mxu0 0.0
  %v3180 = vand.u32 %v164, 4294901760
  %v3181 = vsub.f32 %v164, %v3180
  %3182 = vmatpush2.msra.mxu0 %v3181
  %3183 = vmatprep.subr.mxu0 0.0
  %v3184 = vand.u32 %v163, 4294901760
  %v3185 = vsub.f32 %v163, %v3184
  %3186 = vmatpush2.msra.mxu0 %v3185
  %3187 = vmatprep.subr.mxu0 0.0
  %v3188 = vand.u32 %v162, 4294901760
  %v3189 = vsub.f32 %v162, %v3188
  %3190 = vmatpush2.msra.mxu0 %v3189
  %3191 = vmatprep.subr.mxu0 0.0
  %v3192 = vand.u32 %v161, 4294901760
  %v3193 = vsub.f32 %v161, %v3192
  %3194 = vmatpush2.msra.mxu0 %v3193
  %3195 = vmatprep.subr.mxu0 0.0
  %v3196 = vand.u32 %v160, 4294901760
  %v3197 = vsub.f32 %v160, %v3196
  %3198 = vmatpush2.msra.mxu0 %v3197
  %3199 = vmatprep.subr.mxu0 0.0
  %v3200 = vand.u32 %v159, 4294901760
  %v3201 = vsub.f32 %v159, %v3200
  %3202 = vmatpush2.msra.mxu0 %v3201
  %3203 = vmatprep.subr.mxu0 0.0
  %v3204 = vand.u32 %v158, 4294901760
  %v3205 = vsub.f32 %v158, %v3204
  %3206 = vmatpush2.msra.mxu0 %v3205
  %3207 = vmatprep.subr.mxu0 0.0
  %v3208 = vand.u32 %v157, 4294901760
  %v3209 = vsub.f32 %v157, %v3208
  %3210 = vmatpush2.msra.mxu0 %v3209
  %3211 = vmatprep.subr.mxu0 0.0
  %v3212 = vand.u32 %v156, 4294901760
  %v3213 = vsub.f32 %v156, %v3212
  %3214 = vmatpush2.msra.mxu0 %v3213
  %3215 = vmatprep.subr.mxu0 0.0
  %v3216 = vand.u32 %v155, 4294901760
  %v3217 = vsub.f32 %v155, %v3216
  %3218 = vmatpush2.msra.mxu0 %v3217
  %3219 = vmatprep.subr.mxu0 0.0
  %v3220 = vand.u32 %v154, 4294901760
  %v3221 = vsub.f32 %v154, %v3220
  %3222 = vmatpush2.msra.mxu0 %v3221
  %3223 = vmatprep.subr.mxu0 0.0
  %v3224 = vand.u32 %v153, 4294901760
  %v3225 = vsub.f32 %v153, %v3224
  %3226 = vmatpush2.msra.mxu0 %v3225
  %3227 = vmatprep.subr.mxu0 0.0
  %v3228 = vand.u32 %v152, 4294901760
  %v3229 = vsub.f32 %v152, %v3228
  %3230 = vmatpush2.msra.mxu0 %v3229
  %v3231 = vand.u32 %v39, 4294901760
  %v3232 = vsub.f32 %v39, %v3231
  %3233 = vmatprep.mubr.f32.mxu0 %v3232
  %v3234 = vand.u32 %v38, 4294901760
  %v3235 = vsub.f32 %v38, %v3234
  %3236 = vmatmul.mubr.f32.gmra.mxu0 %v3235
  %v3237 = vpop.f32.mrf.mxu0
  %v3238 = vadd.f32 %v3100, %v3237
  %v3239 = vpop.f32.mrf.mxu0
  %3240 = vdwg.mxu0
  %3241 = vmatprep.subr.mxu0 0.0
  %v3242 = vand.u32 %v151, 4294901760
  %3243 = vmatpush1.msra.mxu0 %v3242
  %3244 = vmatprep.subr.mxu0 0.0
  %v3245 = vand.u32 %v150, 4294901760
  %3246 = vmatpush1.msra.mxu0 %v3245
  %3247 = vmatprep.subr.mxu0 0.0
  %v3248 = vand.u32 %v149, 4294901760
  %3249 = vmatpush1.msra.mxu0 %v3248
  %3250 = vmatprep.subr.mxu0 0.0
  %v3251 = vand.u32 %v148, 4294901760
  %3252 = vmatpush1.msra.mxu0 %v3251
  %3253 = vmatprep.subr.mxu0 0.0
  %v3254 = vand.u32 %v147, 4294901760
  %3255 = vmatpush1.msra.mxu0 %v3254
  %3256 = vmatprep.subr.mxu0 0.0
  %v3257 = vand.u32 %v146, 4294901760
  %3258 = vmatpush1.msra.mxu0 %v3257
  %3259 = vmatprep.subr.mxu0 0.0
  %v3260 = vand.u32 %v145, 4294901760
  %3261 = vmatpush1.msra.mxu0 %v3260
  %3262 = vmatprep.subr.mxu0 0.0
  %v3263 = vand.u32 %v144, 4294901760
  %3264 = vmatpush1.msra.mxu0 %v3263
  %3265 = vmatprep.subr.mxu0 0.0
  %v3266 = vand.u32 %v143, 4294901760
  %3267 = vmatpush1.msra.mxu0 %v3266
  %3268 = vmatprep.subr.mxu0 0.0
  %v3269 = vand.u32 %v142, 4294901760
  %3270 = vmatpush1.msra.mxu0 %v3269
  %3271 = vmatprep.subr.mxu0 0.0
  %v3272 = vand.u32 %v141, 4294901760
  %3273 = vmatpush1.msra.mxu0 %v3272
  %3274 = vmatprep.subr.mxu0 0.0
  %v3275 = vand.u32 %v140, 4294901760
  %3276 = vmatpush1.msra.mxu0 %v3275
  %3277 = vmatprep.subr.mxu0 0.0
  %v3278 = vand.u32 %v139, 4294901760
  %3279 = vmatpush1.msra.mxu0 %v3278
  %3280 = vmatprep.subr.mxu0 0.0
  %v3281 = vand.u32 %v138, 4294901760
  %3282 = vmatpush1.msra.mxu0 %v3281
  %3283 = vmatprep.subr.mxu0 0.0
  %v3284 = vand.u32 %v137, 4294901760
  %3285 = vmatpush1.msra.mxu0 %v3284
  %3286 = vmatprep.subr.mxu0 0.0
  %v3287 = vand.u32 %v136, 4294901760
  %3288 = vmatpush1.msra.mxu0 %v3287
  %3289 = vmatprep.subr.mxu0 0.0
  %v3290 = vand.u32 %v167, 4294901760
  %3291 = vmatpush2.msra.mxu0 %v3290
  %3292 = vmatprep.subr.mxu0 0.0
  %v3293 = vand.u32 %v166, 4294901760
  %3294 = vmatpush2.msra.mxu0 %v3293
  %3295 = vmatprep.subr.mxu0 0.0
  %v3296 = vand.u32 %v165, 4294901760
  %3297 = vmatpush2.msra.mxu0 %v3296
  %3298 = vmatprep.subr.mxu0 0.0
  %v3299 = vand.u32 %v164, 4294901760
  %3300 = vmatpush2.msra.mxu0 %v3299
  %3301 = vmatprep.subr.mxu0 0.0
  %v3302 = vand.u32 %v163, 4294901760
  %3303 = vmatpush2.msra.mxu0 %v3302
  %3304 = vmatprep.subr.mxu0 0.0
  %v3305 = vand.u32 %v162, 4294901760
  %3306 = vmatpush2.msra.mxu0 %v3305
  %3307 = vmatprep.subr.mxu0 0.0
  %v3308 = vand.u32 %v161, 4294901760
  %3309 = vmatpush2.msra.mxu0 %v3308
  %3310 = vmatprep.subr.mxu0 0.0
  %v3311 = vand.u32 %v160, 4294901760
  %3312 = vmatpush2.msra.mxu0 %v3311
  %3313 = vmatprep.subr.mxu0 0.0
  %v3314 = vand.u32 %v159, 4294901760
  %3315 = vmatpush2.msra.mxu0 %v3314
  %3316 = vmatprep.subr.mxu0 0.0
  %v3317 = vand.u32 %v158, 4294901760
  %3318 = vmatpush2.msra.mxu0 %v3317
  %3319 = vmatprep.subr.mxu0 0.0
  %v3320 = vand.u32 %v157, 4294901760
  %3321 = vmatpush2.msra.mxu0 %v3320
  %3322 = vmatprep.subr.mxu0 0.0
  %v3323 = vand.u32 %v156, 4294901760
  %3324 = vmatpush2.msra.mxu0 %v3323
  %3325 = vmatprep.subr.mxu0 0.0
  %v3326 = vand.u32 %v155, 4294901760
  %3327 = vmatpush2.msra.mxu0 %v3326
  %3328 = vmatprep.subr.mxu0 0.0
  %v3329 = vand.u32 %v154, 4294901760
  %3330 = vmatpush2.msra.mxu0 %v3329
  %3331 = vmatprep.subr.mxu0 0.0
  %v3332 = vand.u32 %v153, 4294901760
  %3333 = vmatpush2.msra.mxu0 %v3332
  %3334 = vmatprep.subr.mxu0 0.0
  %v3335 = vand.u32 %v152, 4294901760
  %3336 = vmatpush2.msra.mxu0 %v3335
  %v3337 = vand.u32 %v39, 4294901760
  %v3338 = vsub.f32 %v39, %v3337
  %v3339 = vand.u32 %v3338, 4294901760
  %3340 = vmatprep.mubr.f32.mxu0 %v3339
  %v3341 = vand.u32 %v38, 4294901760
  %v3342 = vsub.f32 %v38, %v3341
  %v3343 = vand.u32 %v3342, 4294901760
  %3344 = vmatmul.mubr.f32.gmra.mxu0 %v3343
  %v3345 = vpop.f32.mrf.mxu0
  %v3346 = vadd.f32 %v3238, %v3345
  %v3347 = vpop.f32.mrf.mxu0
  %3348 = vdwg.mxu0
  %3349 = vmatprep.subr.mxu0 0.0
  %v3350 = vand.u32 %v151, 4294901760
  %v3351 = vsub.f32 %v151, %v3350
  %v3352 = vand.u32 %v3351, 4294901760
  %3353 = vmatpush1.msra.mxu0 %v3352
  %3354 = vmatprep.subr.mxu0 0.0
  %v3355 = vand.u32 %v150, 4294901760
  %v3356 = vsub.f32 %v150, %v3355
  %v3357 = vand.u32 %v3356, 4294901760
  %3358 = vmatpush1.msra.mxu0 %v3357
  %3359 = vmatprep.subr.mxu0 0.0
  %v3360 = vand.u32 %v149, 4294901760
  %v3361 = vsub.f32 %v149, %v3360
  %v3362 = vand.u32 %v3361, 4294901760
  %3363 = vmatpush1.msra.mxu0 %v3362
  %3364 = vmatprep.subr.mxu0 0.0
  %v3365 = vand.u32 %v148, 4294901760
  %v3366 = vsub.f32 %v148, %v3365
  %v3367 = vand.u32 %v3366, 4294901760
  %3368 = vmatpush1.msra.mxu0 %v3367
  %3369 = vmatprep.subr.mxu0 0.0
  %v3370 = vand.u32 %v147, 4294901760
  %v3371 = vsub.f32 %v147, %v3370
  %v3372 = vand.u32 %v3371, 4294901760
  %3373 = vmatpush1.msra.mxu0 %v3372
  %3374 = vmatprep.subr.mxu0 0.0
  %v3375 = vand.u32 %v146, 4294901760
  %v3376 = vsub.f32 %v146, %v3375
  %v3377 = vand.u32 %v3376, 4294901760
  %3378 = vmatpush1.msra.mxu0 %v3377
  %3379 = vmatprep.subr.mxu0 0.0
  %v3380 = vand.u32 %v145, 4294901760
  %v3381 = vsub.f32 %v145, %v3380
  %v3382 = vand.u32 %v3381, 4294901760
  %3383 = vmatpush1.msra.mxu0 %v3382
  %3384 = vmatprep.subr.mxu0 0.0
  %v3385 = vand.u32 %v144, 4294901760
  %v3386 = vsub.f32 %v144, %v3385
  %v3387 = vand.u32 %v3386, 4294901760
  %3388 = vmatpush1.msra.mxu0 %v3387
  %3389 = vmatprep.subr.mxu0 0.0
  %v3390 = vand.u32 %v143, 4294901760
  %v3391 = vsub.f32 %v143, %v3390
  %v3392 = vand.u32 %v3391, 4294901760
  %3393 = vmatpush1.msra.mxu0 %v3392
  %3394 = vmatprep.subr.mxu0 0.0
  %v3395 = vand.u32 %v142, 4294901760
  %v3396 = vsub.f32 %v142, %v3395
  %v3397 = vand.u32 %v3396, 4294901760
  %3398 = vmatpush1.msra.mxu0 %v3397
  %3399 = vmatprep.subr.mxu0 0.0
  %v3400 = vand.u32 %v141, 4294901760
  %v3401 = vsub.f32 %v141, %v3400
  %v3402 = vand.u32 %v3401, 4294901760
  %3403 = vmatpush1.msra.mxu0 %v3402
  %3404 = vmatprep.subr.mxu0 0.0
  %v3405 = vand.u32 %v140, 4294901760
  %v3406 = vsub.f32 %v140, %v3405
  %v3407 = vand.u32 %v3406, 4294901760
  %3408 = vmatpush1.msra.mxu0 %v3407
  %3409 = vmatprep.subr.mxu0 0.0
  %v3410 = vand.u32 %v139, 4294901760
  %v3411 = vsub.f32 %v139, %v3410
  %v3412 = vand.u32 %v3411, 4294901760
  %3413 = vmatpush1.msra.mxu0 %v3412
  %3414 = vmatprep.subr.mxu0 0.0
  %v3415 = vand.u32 %v138, 4294901760
  %v3416 = vsub.f32 %v138, %v3415
  %v3417 = vand.u32 %v3416, 4294901760
  %3418 = vmatpush1.msra.mxu0 %v3417
  %3419 = vmatprep.subr.mxu0 0.0
  %v3420 = vand.u32 %v137, 4294901760
  %v3421 = vsub.f32 %v137, %v3420
  %v3422 = vand.u32 %v3421, 4294901760
  %3423 = vmatpush1.msra.mxu0 %v3422
  %3424 = vmatprep.subr.mxu0 0.0
  %v3425 = vand.u32 %v136, 4294901760
  %v3426 = vsub.f32 %v136, %v3425
  %v3427 = vand.u32 %v3426, 4294901760
  %3428 = vmatpush1.msra.mxu0 %v3427
  %3429 = vmatprep.subr.mxu0 0.0
  %v3430 = vand.u32 %v167, 4294901760
  %v3431 = vsub.f32 %v167, %v3430
  %v3432 = vand.u32 %v3431, 4294901760
  %3433 = vmatpush2.msra.mxu0 %v3432
  %3434 = vmatprep.subr.mxu0 0.0
  %v3435 = vand.u32 %v166, 4294901760
  %v3436 = vsub.f32 %v166, %v3435
  %v3437 = vand.u32 %v3436, 4294901760
  %3438 = vmatpush2.msra.mxu0 %v3437
  %3439 = vmatprep.subr.mxu0 0.0
  %v3440 = vand.u32 %v165, 4294901760
  %v3441 = vsub.f32 %v165, %v3440
  %v3442 = vand.u32 %v3441, 4294901760
  %3443 = vmatpush2.msra.mxu0 %v3442
  %3444 = vmatprep.subr.mxu0 0.0
  %v3445 = vand.u32 %v164, 4294901760
  %v3446 = vsub.f32 %v164, %v3445
  %v3447 = vand.u32 %v3446, 4294901760
  %3448 = vmatpush2.msra.mxu0 %v3447
  %3449 = vmatprep.subr.mxu0 0.0
  %v3450 = vand.u32 %v163, 4294901760
  %v3451 = vsub.f32 %v163, %v3450
  %v3452 = vand.u32 %v3451, 4294901760
  %3453 = vmatpush2.msra.mxu0 %v3452
  %3454 = vmatprep.subr.mxu0 0.0
  %v3455 = vand.u32 %v162, 4294901760
  %v3456 = vsub.f32 %v162, %v3455
  %v3457 = vand.u32 %v3456, 4294901760
  %3458 = vmatpush2.msra.mxu0 %v3457
  %3459 = vmatprep.subr.mxu0 0.0
  %v3460 = vand.u32 %v161, 4294901760
  %v3461 = vsub.f32 %v161, %v3460
  %v3462 = vand.u32 %v3461, 4294901760
  %3463 = vmatpush2.msra.mxu0 %v3462
  %3464 = vmatprep.subr.mxu0 0.0
  %v3465 = vand.u32 %v160, 4294901760
  %v3466 = vsub.f32 %v160, %v3465
  %v3467 = vand.u32 %v3466, 4294901760
  %3468 = vmatpush2.msra.mxu0 %v3467
  %3469 = vmatprep.subr.mxu0 0.0
  %v3470 = vand.u32 %v159, 4294901760
  %v3471 = vsub.f32 %v159, %v3470
  %v3472 = vand.u32 %v3471, 4294901760
  %3473 = vmatpush2.msra.mxu0 %v3472
  %3474 = vmatprep.subr.mxu0 0.0
  %v3475 = vand.u32 %v158, 4294901760
  %v3476 = vsub.f32 %v158, %v3475
  %v3477 = vand.u32 %v3476, 4294901760
  %3478 = vmatpush2.msra.mxu0 %v3477
  %3479 = vmatprep.subr.mxu0 0.0
  %v3480 = vand.u32 %v157, 4294901760
  %v3481 = vsub.f32 %v157, %v3480
  %v3482 = vand.u32 %v3481, 4294901760
  %3483 = vmatpush2.msra.mxu0 %v3482
  %3484 = vmatprep.subr.mxu0 0.0
  %v3485 = vand.u32 %v156, 4294901760
  %v3486 = vsub.f32 %v156, %v3485
  %v3487 = vand.u32 %v3486, 4294901760
  %3488 = vmatpush2.msra.mxu0 %v3487
  %3489 = vmatprep.subr.mxu0 0.0
  %v3490 = vand.u32 %v155, 4294901760
  %v3491 = vsub.f32 %v155, %v3490
  %v3492 = vand.u32 %v3491, 4294901760
  %3493 = vmatpush2.msra.mxu0 %v3492
  %3494 = vmatprep.subr.mxu0 0.0
  %v3495 = vand.u32 %v154, 4294901760
  %v3496 = vsub.f32 %v154, %v3495
  %v3497 = vand.u32 %v3496, 4294901760
  %3498 = vmatpush2.msra.mxu0 %v3497
  %3499 = vmatprep.subr.mxu0 0.0
  %v3500 = vand.u32 %v153, 4294901760
  %v3501 = vsub.f32 %v153, %v3500
  %v3502 = vand.u32 %v3501, 4294901760
  %3503 = vmatpush2.msra.mxu0 %v3502
  %3504 = vmatprep.subr.mxu0 0.0
  %v3505 = vand.u32 %v152, 4294901760
  %v3506 = vsub.f32 %v152, %v3505
  %v3507 = vand.u32 %v3506, 4294901760
  %3508 = vmatpush2.msra.mxu0 %v3507
  %v3509 = vand.u32 %v39, 4294901760
  %3510 = vmatprep.mubr.f32.mxu0 %v3509
  %v3511 = vand.u32 %v38, 4294901760
  %3512 = vmatmul.mubr.f32.gmra.mxu0 %v3511
  %v3513 = vpop.f32.mrf.mxu0
  %v3514 = vadd.f32 %v3346, %v3513
  %v3515 = vpop.f32.mrf.mxu0
  %3516 = vdwg.mxu0
  %3517 = vmatprep.subr.mxu0 0.0
  %v3518 = vand.u32 %v151, 4294901760
  %3519 = vmatpush1.msra.mxu0 %v3518
  %3520 = vmatprep.subr.mxu0 0.0
  %v3521 = vand.u32 %v150, 4294901760
  %3522 = vmatpush1.msra.mxu0 %v3521
  %3523 = vmatprep.subr.mxu0 0.0
  %v3524 = vand.u32 %v149, 4294901760
  %3525 = vmatpush1.msra.mxu0 %v3524
  %3526 = vmatprep.subr.mxu0 0.0
  %v3527 = vand.u32 %v148, 4294901760
  %3528 = vmatpush1.msra.mxu0 %v3527
  %3529 = vmatprep.subr.mxu0 0.0
  %v3530 = vand.u32 %v147, 4294901760
  %3531 = vmatpush1.msra.mxu0 %v3530
  %3532 = vmatprep.subr.mxu0 0.0
  %v3533 = vand.u32 %v146, 4294901760
  %3534 = vmatpush1.msra.mxu0 %v3533
  %3535 = vmatprep.subr.mxu0 0.0
  %v3536 = vand.u32 %v145, 4294901760
  %3537 = vmatpush1.msra.mxu0 %v3536
  %3538 = vmatprep.subr.mxu0 0.0
  %v3539 = vand.u32 %v144, 4294901760
  %3540 = vmatpush1.msra.mxu0 %v3539
  %3541 = vmatprep.subr.mxu0 0.0
  %v3542 = vand.u32 %v143, 4294901760
  %3543 = vmatpush1.msra.mxu0 %v3542
  %3544 = vmatprep.subr.mxu0 0.0
  %v3545 = vand.u32 %v142, 4294901760
  %3546 = vmatpush1.msra.mxu0 %v3545
  %3547 = vmatprep.subr.mxu0 0.0
  %v3548 = vand.u32 %v141, 4294901760
  %3549 = vmatpush1.msra.mxu0 %v3548
  %3550 = vmatprep.subr.mxu0 0.0
  %v3551 = vand.u32 %v140, 4294901760
  %3552 = vmatpush1.msra.mxu0 %v3551
  %3553 = vmatprep.subr.mxu0 0.0
  %v3554 = vand.u32 %v139, 4294901760
  %3555 = vmatpush1.msra.mxu0 %v3554
  %3556 = vmatprep.subr.mxu0 0.0
  %v3557 = vand.u32 %v138, 4294901760
  %3558 = vmatpush1.msra.mxu0 %v3557
  %3559 = vmatprep.subr.mxu0 0.0
  %v3560 = vand.u32 %v137, 4294901760
  %3561 = vmatpush1.msra.mxu0 %v3560
  %3562 = vmatprep.subr.mxu0 0.0
  %v3563 = vand.u32 %v136, 4294901760
  %3564 = vmatpush1.msra.mxu0 %v3563
  %3565 = vmatprep.subr.mxu0 0.0
  %v3566 = vand.u32 %v167, 4294901760
  %3567 = vmatpush2.msra.mxu0 %v3566
  %3568 = vmatprep.subr.mxu0 0.0
  %v3569 = vand.u32 %v166, 4294901760
  %3570 = vmatpush2.msra.mxu0 %v3569
  %3571 = vmatprep.subr.mxu0 0.0
  %v3572 = vand.u32 %v165, 4294901760
  %3573 = vmatpush2.msra.mxu0 %v3572
  %3574 = vmatprep.subr.mxu0 0.0
  %v3575 = vand.u32 %v164, 4294901760
  %3576 = vmatpush2.msra.mxu0 %v3575
  %3577 = vmatprep.subr.mxu0 0.0
  %v3578 = vand.u32 %v163, 4294901760
  %3579 = vmatpush2.msra.mxu0 %v3578
  %3580 = vmatprep.subr.mxu0 0.0
  %v3581 = vand.u32 %v162, 4294901760
  %3582 = vmatpush2.msra.mxu0 %v3581
  %3583 = vmatprep.subr.mxu0 0.0
  %v3584 = vand.u32 %v161, 4294901760
  %3585 = vmatpush2.msra.mxu0 %v3584
  %3586 = vmatprep.subr.mxu0 0.0
  %v3587 = vand.u32 %v160, 4294901760
  %3588 = vmatpush2.msra.mxu0 %v3587
  %3589 = vmatprep.subr.mxu0 0.0
  %v3590 = vand.u32 %v159, 4294901760
  %3591 = vmatpush2.msra.mxu0 %v3590
  %3592 = vmatprep.subr.mxu0 0.0
  %v3593 = vand.u32 %v158, 4294901760
  %3594 = vmatpush2.msra.mxu0 %v3593
  %3595 = vmatprep.subr.mxu0 0.0
  %v3596 = vand.u32 %v157, 4294901760
  %3597 = vmatpush2.msra.mxu0 %v3596
  %3598 = vmatprep.subr.mxu0 0.0
  %v3599 = vand.u32 %v156, 4294901760
  %3600 = vmatpush2.msra.mxu0 %v3599
  %3601 = vmatprep.subr.mxu0 0.0
  %v3602 = vand.u32 %v155, 4294901760
  %3603 = vmatpush2.msra.mxu0 %v3602
  %3604 = vmatprep.subr.mxu0 0.0
  %v3605 = vand.u32 %v154, 4294901760
  %3606 = vmatpush2.msra.mxu0 %v3605
  %3607 = vmatprep.subr.mxu0 0.0
  %v3608 = vand.u32 %v153, 4294901760
  %3609 = vmatpush2.msra.mxu0 %v3608
  %3610 = vmatprep.subr.mxu0 0.0
  %v3611 = vand.u32 %v152, 4294901760
  %3612 = vmatpush2.msra.mxu0 %v3611
  %v3613 = vand.u32 %v39, 4294901760
  %3614 = vmatprep.mubr.f32.mxu0 %v3613
  %v3615 = vand.u32 %v38, 4294901760
  %3616 = vmatmul.mubr.f32.gmra.mxu0 %v3615
  %v3617 = vpop.f32.mrf.mxu0
  %v3618 = vadd.f32 %v3514, %v3617
  %v3619 = vpop.f32.mrf.mxu0
  %3620 = vdwg.mxu0
  %vm3621 = vcmask 523264
  %v3622 = vsel %vm3621, %v3618, 0.0
  %3623 = vadd.xlane.f32.xlu0 %v3622
  %v3624 = vpop.xlane.xlu0 %3623
  %v3625 = vrcp.pop 64.0
  %v3626 = vmul.f32 %v3624, %v3625
  %v3627 = vsub.f32 %v3618, %v3626
  %v3628 = vmul.f32 %v3627, %v3627
  %v3629 = vsel %vm3621, %v3628, 0.0
  %3630 = vadd.xlane.f32.xlu0 %v3629
  %v3631 = vpop.xlane.xlu0 %3630
  %v3632 = vmul.f32 %v3631, %v3625
  %v3633 = vadd.f32 %v3632, 1e-05
  %v3634 = vrsqrt.pop %v3633
  %v3635 = vmul.f32 %v3627, %v3634
  %v3636 = vld [vmem:[%s3 + $0x1] sm:$0x1]
  %v3637 = vlaneseq
  %v3638 = vshrl.u32 %v3637, 7
  %v3639 = vsub.s32 0, %v3638
  %v3640 = vrot.slane %v3636, %v3639
  %v3641 = vmul.f32 %v3635, %v3640
  %v3642 = vld [vmem:[%s3 + $0x2] sm:$0x1]
  %v3643 = vlaneseq
  %v3644 = vshrl.u32 %v3643, 7
  %v3645 = vsub.s32 0, %v3644
  %v3646 = vrot.slane %v3642, %v3645
  %v3647 = vadd.f32 %v3641, %v3646
  %v3648 = vtanh.pop %v3647
  %v3649 = vld [vmem:[%s1] sm:$0xff]
  %v3650 = vld [vmem:[%s4] sm:$0xff]
  %v3651 = vld [vmem:[%s4 + $0x8] sm:$0xff]
  %v3652 = vld [vmem:[%s4 + $0x10] sm:$0xff]
  %v3653 = vld [vmem:[%s4 + $0x18] sm:$0xff]
  %v3654 = vld [vmem:[%s4 + $0x20] sm:$0xff]
  %v3655 = vld [vmem:[%s4 + $0x28] sm:$0xff]
  %v3656 = vld [vmem:[%s4 + $0x30] sm:$0xff]
  %v3657 = vld [vmem:[%s4 + $0x38] sm:$0xff]
  %v3658 = vld [vmem:[%s5] sm:$0x3f]
  %vm3659 = vcmask 48128
  %v3661 = vsel %vm3659, %v3649, 0
  %vm3663 = vcmask 1045504
  %v3665 = vsel %vm3663, %v3658, 0
  %3667 = vmatprep.subr.mxu0 0.0
  %3668 = vmatpush1.msra.mxu0 0.0
  %3669 = vmatprep.subr.mxu0 0.0
  %3670 = vmatpush1.msra.mxu0 0.0
  %3671 = vmatprep.subr.mxu0 0.0
  %3672 = vmatpush1.msra.mxu0 0.0
  %3673 = vmatprep.subr.mxu0 0.0
  %3674 = vmatpush1.msra.mxu0 0.0
  %3675 = vmatprep.subr.mxu0 0.0
  %3676 = vmatpush1.msra.mxu0 0.0
  %3677 = vmatprep.subr.mxu0 0.0
  %3678 = vmatpush1.msra.mxu0 0.0
  %3679 = vmatprep.subr.mxu0 0.0
  %3680 = vmatpush1.msra.mxu0 0.0
  %3681 = vmatprep.subr.mxu0 0.0
  %3682 = vmatpush1.msra.mxu0 0.0
  %3683 = vmatprep.subr.mxu0 0.0
  %3684 = vmatpush1.msra.mxu0 0.0
  %3685 = vmatprep.subr.mxu0 0.0
  %3686 = vmatpush1.msra.mxu0 0.0
  %3687 = vmatprep.subr.mxu0 0.0
  %3688 = vmatpush1.msra.mxu0 0.0
  %3689 = vmatprep.subr.mxu0 0.0
  %3690 = vmatpush1.msra.mxu0 0.0
  %3691 = vmatprep.subr.mxu0 0.0
  %3692 = vmatpush1.msra.mxu0 0.0
  %3693 = vmatprep.subr.mxu0 0.0
  %3694 = vmatpush1.msra.mxu0 0.0
  %3695 = vmatprep.subr.mxu0 0.0
  %3696 = vmatpush1.msra.mxu0 0.0
  %3697 = vmatprep.subr.mxu0 0.0
  %v3698 = vand.u32 %v3665, 4294901760
  %3699 = vmatpush1.msra.mxu0 %v3698
  %3700 = vmatprep.subr.mxu0 0.0
  %3701 = vmatpush2.msra.mxu0 0.0
  %3702 = vmatprep.subr.mxu0 0.0
  %3703 = vmatpush2.msra.mxu0 0.0
  %3704 = vmatprep.subr.mxu0 0.0
  %3705 = vmatpush2.msra.mxu0 0.0
  %3706 = vmatprep.subr.mxu0 0.0
  %3707 = vmatpush2.msra.mxu0 0.0
  %3708 = vmatprep.subr.mxu0 0.0
  %3709 = vmatpush2.msra.mxu0 0.0
  %3710 = vmatprep.subr.mxu0 0.0
  %3711 = vmatpush2.msra.mxu0 0.0
  %3712 = vmatprep.subr.mxu0 0.0
  %3713 = vmatpush2.msra.mxu0 0.0
  %3714 = vmatprep.subr.mxu0 0.0
  %3715 = vmatpush2.msra.mxu0 0.0
  %3716 = vmatprep.subr.mxu0 0.0
  %3717 = vmatpush2.msra.mxu0 0.0
  %3718 = vmatprep.subr.mxu0 0.0
  %3719 = vmatpush2.msra.mxu0 0.0
  %3720 = vmatprep.subr.mxu0 0.0
  %3721 = vmatpush2.msra.mxu0 0.0
  %3722 = vmatprep.subr.mxu0 0.0
  %3723 = vmatpush2.msra.mxu0 0.0
  %3724 = vmatprep.subr.mxu0 0.0
  %3725 = vmatpush2.msra.mxu0 0.0
  %3726 = vmatprep.subr.mxu0 0.0
  %3727 = vmatpush2.msra.mxu0 0.0
  %3728 = vmatprep.subr.mxu0 0.0
  %3729 = vmatpush2.msra.mxu0 0.0
  %3730 = vmatprep.subr.mxu0 0.0
  %3731 = vmatpush2.msra.mxu0 0.0
  %3732 = vmatprep.mubr.f32.mxu0 0.0
  %v3733 = vand.u32 %v3661, 4294901760
  %v3734 = vsub.f32 %v3661, %v3733
  %v3735 = vand.u32 %v3734, 4294901760
  %v3736 = vsub.f32 %v3734, %v3735
  %v3737 = vand.u32 %v3736, 4294901760
  %3738 = vmatmul.mubr.f32.gmra.mxu0 %v3737
  %v3739 = vpop.f32.mrf.mxu0
  %v3740 = vadd.f32 0.0, %v3739
  %v3741 = vpop.f32.mrf.mxu0
  %3742 = vdwg.mxu0
  %3743 = vmatprep.subr.mxu0 0.0
  %3744 = vmatpush1.msra.mxu0 0.0
  %3745 = vmatprep.subr.mxu0 0.0
  %3746 = vmatpush1.msra.mxu0 0.0
  %3747 = vmatprep.subr.mxu0 0.0
  %3748 = vmatpush1.msra.mxu0 0.0
  %3749 = vmatprep.subr.mxu0 0.0
  %3750 = vmatpush1.msra.mxu0 0.0
  %3751 = vmatprep.subr.mxu0 0.0
  %3752 = vmatpush1.msra.mxu0 0.0
  %3753 = vmatprep.subr.mxu0 0.0
  %3754 = vmatpush1.msra.mxu0 0.0
  %3755 = vmatprep.subr.mxu0 0.0
  %3756 = vmatpush1.msra.mxu0 0.0
  %3757 = vmatprep.subr.mxu0 0.0
  %3758 = vmatpush1.msra.mxu0 0.0
  %3759 = vmatprep.subr.mxu0 0.0
  %3760 = vmatpush1.msra.mxu0 0.0
  %3761 = vmatprep.subr.mxu0 0.0
  %3762 = vmatpush1.msra.mxu0 0.0
  %3763 = vmatprep.subr.mxu0 0.0
  %3764 = vmatpush1.msra.mxu0 0.0
  %3765 = vmatprep.subr.mxu0 0.0
  %3766 = vmatpush1.msra.mxu0 0.0
  %3767 = vmatprep.subr.mxu0 0.0
  %3768 = vmatpush1.msra.mxu0 0.0
  %3769 = vmatprep.subr.mxu0 0.0
  %3770 = vmatpush1.msra.mxu0 0.0
  %3771 = vmatprep.subr.mxu0 0.0
  %3772 = vmatpush1.msra.mxu0 0.0
  %3773 = vmatprep.subr.mxu0 0.0
  %v3774 = vand.u32 %v3665, 4294901760
  %v3775 = vsub.f32 %v3665, %v3774
  %v3776 = vand.u32 %v3775, 4294901760
  %v3777 = vsub.f32 %v3775, %v3776
  %v3778 = vand.u32 %v3777, 4294901760
  %3779 = vmatpush1.msra.mxu0 %v3778
  %3780 = vmatprep.subr.mxu0 0.0
  %3781 = vmatpush2.msra.mxu0 0.0
  %3782 = vmatprep.subr.mxu0 0.0
  %3783 = vmatpush2.msra.mxu0 0.0
  %3784 = vmatprep.subr.mxu0 0.0
  %3785 = vmatpush2.msra.mxu0 0.0
  %3786 = vmatprep.subr.mxu0 0.0
  %3787 = vmatpush2.msra.mxu0 0.0
  %3788 = vmatprep.subr.mxu0 0.0
  %3789 = vmatpush2.msra.mxu0 0.0
  %3790 = vmatprep.subr.mxu0 0.0
  %3791 = vmatpush2.msra.mxu0 0.0
  %3792 = vmatprep.subr.mxu0 0.0
  %3793 = vmatpush2.msra.mxu0 0.0
  %3794 = vmatprep.subr.mxu0 0.0
  %3795 = vmatpush2.msra.mxu0 0.0
  %3796 = vmatprep.subr.mxu0 0.0
  %3797 = vmatpush2.msra.mxu0 0.0
  %3798 = vmatprep.subr.mxu0 0.0
  %3799 = vmatpush2.msra.mxu0 0.0
  %3800 = vmatprep.subr.mxu0 0.0
  %3801 = vmatpush2.msra.mxu0 0.0
  %3802 = vmatprep.subr.mxu0 0.0
  %3803 = vmatpush2.msra.mxu0 0.0
  %3804 = vmatprep.subr.mxu0 0.0
  %3805 = vmatpush2.msra.mxu0 0.0
  %3806 = vmatprep.subr.mxu0 0.0
  %3807 = vmatpush2.msra.mxu0 0.0
  %3808 = vmatprep.subr.mxu0 0.0
  %3809 = vmatpush2.msra.mxu0 0.0
  %3810 = vmatprep.subr.mxu0 0.0
  %3811 = vmatpush2.msra.mxu0 0.0
  %3812 = vmatprep.mubr.f32.mxu0 0.0
  %v3813 = vand.u32 %v3661, 4294901760
  %3814 = vmatmul.mubr.f32.gmra.mxu0 %v3813
  %v3815 = vpop.f32.mrf.mxu0
  %v3816 = vadd.f32 %v3740, %v3815
  %v3817 = vpop.f32.mrf.mxu0
  %3818 = vdwg.mxu0
  %3819 = vmatprep.subr.mxu0 0.0
  %3820 = vmatpush1.msra.mxu0 0.0
  %3821 = vmatprep.subr.mxu0 0.0
  %3822 = vmatpush1.msra.mxu0 0.0
  %3823 = vmatprep.subr.mxu0 0.0
  %3824 = vmatpush1.msra.mxu0 0.0
  %3825 = vmatprep.subr.mxu0 0.0
  %3826 = vmatpush1.msra.mxu0 0.0
  %3827 = vmatprep.subr.mxu0 0.0
  %3828 = vmatpush1.msra.mxu0 0.0
  %3829 = vmatprep.subr.mxu0 0.0
  %3830 = vmatpush1.msra.mxu0 0.0
  %3831 = vmatprep.subr.mxu0 0.0
  %3832 = vmatpush1.msra.mxu0 0.0
  %3833 = vmatprep.subr.mxu0 0.0
  %3834 = vmatpush1.msra.mxu0 0.0
  %3835 = vmatprep.subr.mxu0 0.0
  %3836 = vmatpush1.msra.mxu0 0.0
  %3837 = vmatprep.subr.mxu0 0.0
  %3838 = vmatpush1.msra.mxu0 0.0
  %3839 = vmatprep.subr.mxu0 0.0
  %3840 = vmatpush1.msra.mxu0 0.0
  %3841 = vmatprep.subr.mxu0 0.0
  %3842 = vmatpush1.msra.mxu0 0.0
  %3843 = vmatprep.subr.mxu0 0.0
  %3844 = vmatpush1.msra.mxu0 0.0
  %3845 = vmatprep.subr.mxu0 0.0
  %3846 = vmatpush1.msra.mxu0 0.0
  %3847 = vmatprep.subr.mxu0 0.0
  %3848 = vmatpush1.msra.mxu0 0.0
  %3849 = vmatprep.subr.mxu0 0.0
  %v3850 = vand.u32 %v3665, 4294901760
  %v3851 = vsub.f32 %v3665, %v3850
  %3852 = vmatpush1.msra.mxu0 %v3851
  %3853 = vmatprep.subr.mxu0 0.0
  %3854 = vmatpush2.msra.mxu0 0.0
  %3855 = vmatprep.subr.mxu0 0.0
  %3856 = vmatpush2.msra.mxu0 0.0
  %3857 = vmatprep.subr.mxu0 0.0
  %3858 = vmatpush2.msra.mxu0 0.0
  %3859 = vmatprep.subr.mxu0 0.0
  %3860 = vmatpush2.msra.mxu0 0.0
  %3861 = vmatprep.subr.mxu0 0.0
  %3862 = vmatpush2.msra.mxu0 0.0
  %3863 = vmatprep.subr.mxu0 0.0
  %3864 = vmatpush2.msra.mxu0 0.0
  %3865 = vmatprep.subr.mxu0 0.0
  %3866 = vmatpush2.msra.mxu0 0.0
  %3867 = vmatprep.subr.mxu0 0.0
  %3868 = vmatpush2.msra.mxu0 0.0
  %3869 = vmatprep.subr.mxu0 0.0
  %3870 = vmatpush2.msra.mxu0 0.0
  %3871 = vmatprep.subr.mxu0 0.0
  %3872 = vmatpush2.msra.mxu0 0.0
  %3873 = vmatprep.subr.mxu0 0.0
  %3874 = vmatpush2.msra.mxu0 0.0
  %3875 = vmatprep.subr.mxu0 0.0
  %3876 = vmatpush2.msra.mxu0 0.0
  %3877 = vmatprep.subr.mxu0 0.0
  %3878 = vmatpush2.msra.mxu0 0.0
  %3879 = vmatprep.subr.mxu0 0.0
  %3880 = vmatpush2.msra.mxu0 0.0
  %3881 = vmatprep.subr.mxu0 0.0
  %3882 = vmatpush2.msra.mxu0 0.0
  %3883 = vmatprep.subr.mxu0 0.0
  %3884 = vmatpush2.msra.mxu0 0.0
  %3885 = vmatprep.mubr.f32.mxu0 0.0
  %v3886 = vand.u32 %v3661, 4294901760
  %v3887 = vsub.f32 %v3661, %v3886
  %3888 = vmatmul.mubr.f32.gmra.mxu0 %v3887
  %v3889 = vpop.f32.mrf.mxu0
  %v3890 = vadd.f32 %v3816, %v3889
  %v3891 = vpop.f32.mrf.mxu0
  %3892 = vdwg.mxu0
  %3893 = vmatprep.subr.mxu0 0.0
  %3894 = vmatpush1.msra.mxu0 0.0
  %3895 = vmatprep.subr.mxu0 0.0
  %3896 = vmatpush1.msra.mxu0 0.0
  %3897 = vmatprep.subr.mxu0 0.0
  %3898 = vmatpush1.msra.mxu0 0.0
  %3899 = vmatprep.subr.mxu0 0.0
  %3900 = vmatpush1.msra.mxu0 0.0
  %3901 = vmatprep.subr.mxu0 0.0
  %3902 = vmatpush1.msra.mxu0 0.0
  %3903 = vmatprep.subr.mxu0 0.0
  %3904 = vmatpush1.msra.mxu0 0.0
  %3905 = vmatprep.subr.mxu0 0.0
  %3906 = vmatpush1.msra.mxu0 0.0
  %3907 = vmatprep.subr.mxu0 0.0
  %3908 = vmatpush1.msra.mxu0 0.0
  %3909 = vmatprep.subr.mxu0 0.0
  %3910 = vmatpush1.msra.mxu0 0.0
  %3911 = vmatprep.subr.mxu0 0.0
  %3912 = vmatpush1.msra.mxu0 0.0
  %3913 = vmatprep.subr.mxu0 0.0
  %3914 = vmatpush1.msra.mxu0 0.0
  %3915 = vmatprep.subr.mxu0 0.0
  %3916 = vmatpush1.msra.mxu0 0.0
  %3917 = vmatprep.subr.mxu0 0.0
  %3918 = vmatpush1.msra.mxu0 0.0
  %3919 = vmatprep.subr.mxu0 0.0
  %3920 = vmatpush1.msra.mxu0 0.0
  %3921 = vmatprep.subr.mxu0 0.0
  %3922 = vmatpush1.msra.mxu0 0.0
  %3923 = vmatprep.subr.mxu0 0.0
  %v3924 = vand.u32 %v3665, 4294901760
  %3925 = vmatpush1.msra.mxu0 %v3924
  %3926 = vmatprep.subr.mxu0 0.0
  %3927 = vmatpush2.msra.mxu0 0.0
  %3928 = vmatprep.subr.mxu0 0.0
  %3929 = vmatpush2.msra.mxu0 0.0
  %3930 = vmatprep.subr.mxu0 0.0
  %3931 = vmatpush2.msra.mxu0 0.0
  %3932 = vmatprep.subr.mxu0 0.0
  %3933 = vmatpush2.msra.mxu0 0.0
  %3934 = vmatprep.subr.mxu0 0.0
  %3935 = vmatpush2.msra.mxu0 0.0
  %3936 = vmatprep.subr.mxu0 0.0
  %3937 = vmatpush2.msra.mxu0 0.0
  %3938 = vmatprep.subr.mxu0 0.0
  %3939 = vmatpush2.msra.mxu0 0.0
  %3940 = vmatprep.subr.mxu0 0.0
  %3941 = vmatpush2.msra.mxu0 0.0
  %3942 = vmatprep.subr.mxu0 0.0
  %3943 = vmatpush2.msra.mxu0 0.0
  %3944 = vmatprep.subr.mxu0 0.0
  %3945 = vmatpush2.msra.mxu0 0.0
  %3946 = vmatprep.subr.mxu0 0.0
  %3947 = vmatpush2.msra.mxu0 0.0
  %3948 = vmatprep.subr.mxu0 0.0
  %3949 = vmatpush2.msra.mxu0 0.0
  %3950 = vmatprep.subr.mxu0 0.0
  %3951 = vmatpush2.msra.mxu0 0.0
  %3952 = vmatprep.subr.mxu0 0.0
  %3953 = vmatpush2.msra.mxu0 0.0
  %3954 = vmatprep.subr.mxu0 0.0
  %3955 = vmatpush2.msra.mxu0 0.0
  %3956 = vmatprep.subr.mxu0 0.0
  %3957 = vmatpush2.msra.mxu0 0.0
  %3958 = vmatprep.mubr.f32.mxu0 0.0
  %v3959 = vand.u32 %v3661, 4294901760
  %v3960 = vsub.f32 %v3661, %v3959
  %v3961 = vand.u32 %v3960, 4294901760
  %3962 = vmatmul.mubr.f32.gmra.mxu0 %v3961
  %v3963 = vpop.f32.mrf.mxu0
  %v3964 = vadd.f32 %v3890, %v3963
  %v3965 = vpop.f32.mrf.mxu0
  %3966 = vdwg.mxu0
  %3967 = vmatprep.subr.mxu0 0.0
  %3968 = vmatpush1.msra.mxu0 0.0
  %3969 = vmatprep.subr.mxu0 0.0
  %3970 = vmatpush1.msra.mxu0 0.0
  %3971 = vmatprep.subr.mxu0 0.0
  %3972 = vmatpush1.msra.mxu0 0.0
  %3973 = vmatprep.subr.mxu0 0.0
  %3974 = vmatpush1.msra.mxu0 0.0
  %3975 = vmatprep.subr.mxu0 0.0
  %3976 = vmatpush1.msra.mxu0 0.0
  %3977 = vmatprep.subr.mxu0 0.0
  %3978 = vmatpush1.msra.mxu0 0.0
  %3979 = vmatprep.subr.mxu0 0.0
  %3980 = vmatpush1.msra.mxu0 0.0
  %3981 = vmatprep.subr.mxu0 0.0
  %3982 = vmatpush1.msra.mxu0 0.0
  %3983 = vmatprep.subr.mxu0 0.0
  %3984 = vmatpush1.msra.mxu0 0.0
  %3985 = vmatprep.subr.mxu0 0.0
  %3986 = vmatpush1.msra.mxu0 0.0
  %3987 = vmatprep.subr.mxu0 0.0
  %3988 = vmatpush1.msra.mxu0 0.0
  %3989 = vmatprep.subr.mxu0 0.0
  %3990 = vmatpush1.msra.mxu0 0.0
  %3991 = vmatprep.subr.mxu0 0.0
  %3992 = vmatpush1.msra.mxu0 0.0
  %3993 = vmatprep.subr.mxu0 0.0
  %3994 = vmatpush1.msra.mxu0 0.0
  %3995 = vmatprep.subr.mxu0 0.0
  %3996 = vmatpush1.msra.mxu0 0.0
  %3997 = vmatprep.subr.mxu0 0.0
  %v3998 = vand.u32 %v3665, 4294901760
  %v3999 = vsub.f32 %v3665, %v3998
  %v4000 = vand.u32 %v3999, 4294901760
  %4001 = vmatpush1.msra.mxu0 %v4000
  %4002 = vmatprep.subr.mxu0 0.0
  %4003 = vmatpush2.msra.mxu0 0.0
  %4004 = vmatprep.subr.mxu0 0.0
  %4005 = vmatpush2.msra.mxu0 0.0
  %4006 = vmatprep.subr.mxu0 0.0
  %4007 = vmatpush2.msra.mxu0 0.0
  %4008 = vmatprep.subr.mxu0 0.0
  %4009 = vmatpush2.msra.mxu0 0.0
  %4010 = vmatprep.subr.mxu0 0.0
  %4011 = vmatpush2.msra.mxu0 0.0
  %4012 = vmatprep.subr.mxu0 0.0
  %4013 = vmatpush2.msra.mxu0 0.0
  %4014 = vmatprep.subr.mxu0 0.0
  %4015 = vmatpush2.msra.mxu0 0.0
  %4016 = vmatprep.subr.mxu0 0.0
  %4017 = vmatpush2.msra.mxu0 0.0
  %4018 = vmatprep.subr.mxu0 0.0
  %4019 = vmatpush2.msra.mxu0 0.0
  %4020 = vmatprep.subr.mxu0 0.0
  %4021 = vmatpush2.msra.mxu0 0.0
  %4022 = vmatprep.subr.mxu0 0.0
  %4023 = vmatpush2.msra.mxu0 0.0
  %4024 = vmatprep.subr.mxu0 0.0
  %4025 = vmatpush2.msra.mxu0 0.0
  %4026 = vmatprep.subr.mxu0 0.0
  %4027 = vmatpush2.msra.mxu0 0.0
  %4028 = vmatprep.subr.mxu0 0.0
  %4029 = vmatpush2.msra.mxu0 0.0
  %4030 = vmatprep.subr.mxu0 0.0
  %4031 = vmatpush2.msra.mxu0 0.0
  %4032 = vmatprep.subr.mxu0 0.0
  %4033 = vmatpush2.msra.mxu0 0.0
  %4034 = vmatprep.mubr.f32.mxu0 0.0
  %v4035 = vand.u32 %v3661, 4294901760
  %4036 = vmatmul.mubr.f32.gmra.mxu0 %v4035
  %v4037 = vpop.f32.mrf.mxu0
  %v4038 = vadd.f32 %v3964, %v4037
  %v4039 = vpop.f32.mrf.mxu0
  %4040 = vdwg.mxu0
  %4041 = vmatprep.subr.mxu0 0.0
  %4042 = vmatpush1.msra.mxu0 0.0
  %4043 = vmatprep.subr.mxu0 0.0
  %4044 = vmatpush1.msra.mxu0 0.0
  %4045 = vmatprep.subr.mxu0 0.0
  %4046 = vmatpush1.msra.mxu0 0.0
  %4047 = vmatprep.subr.mxu0 0.0
  %4048 = vmatpush1.msra.mxu0 0.0
  %4049 = vmatprep.subr.mxu0 0.0
  %4050 = vmatpush1.msra.mxu0 0.0
  %4051 = vmatprep.subr.mxu0 0.0
  %4052 = vmatpush1.msra.mxu0 0.0
  %4053 = vmatprep.subr.mxu0 0.0
  %4054 = vmatpush1.msra.mxu0 0.0
  %4055 = vmatprep.subr.mxu0 0.0
  %4056 = vmatpush1.msra.mxu0 0.0
  %4057 = vmatprep.subr.mxu0 0.0
  %4058 = vmatpush1.msra.mxu0 0.0
  %4059 = vmatprep.subr.mxu0 0.0
  %4060 = vmatpush1.msra.mxu0 0.0
  %4061 = vmatprep.subr.mxu0 0.0
  %4062 = vmatpush1.msra.mxu0 0.0
  %4063 = vmatprep.subr.mxu0 0.0
  %4064 = vmatpush1.msra.mxu0 0.0
  %4065 = vmatprep.subr.mxu0 0.0
  %4066 = vmatpush1.msra.mxu0 0.0
  %4067 = vmatprep.subr.mxu0 0.0
  %4068 = vmatpush1.msra.mxu0 0.0
  %4069 = vmatprep.subr.mxu0 0.0
  %4070 = vmatpush1.msra.mxu0 0.0
  %4071 = vmatprep.subr.mxu0 0.0
  %v4072 = vand.u32 %v3665, 4294901760
  %4073 = vmatpush1.msra.mxu0 %v4072
  %4074 = vmatprep.subr.mxu0 0.0
  %4075 = vmatpush2.msra.mxu0 0.0
  %4076 = vmatprep.subr.mxu0 0.0
  %4077 = vmatpush2.msra.mxu0 0.0
  %4078 = vmatprep.subr.mxu0 0.0
  %4079 = vmatpush2.msra.mxu0 0.0
  %4080 = vmatprep.subr.mxu0 0.0
  %4081 = vmatpush2.msra.mxu0 0.0
  %4082 = vmatprep.subr.mxu0 0.0
  %4083 = vmatpush2.msra.mxu0 0.0
  %4084 = vmatprep.subr.mxu0 0.0
  %4085 = vmatpush2.msra.mxu0 0.0
  %4086 = vmatprep.subr.mxu0 0.0
  %4087 = vmatpush2.msra.mxu0 0.0
  %4088 = vmatprep.subr.mxu0 0.0
  %4089 = vmatpush2.msra.mxu0 0.0
  %4090 = vmatprep.subr.mxu0 0.0
  %4091 = vmatpush2.msra.mxu0 0.0
  %4092 = vmatprep.subr.mxu0 0.0
  %4093 = vmatpush2.msra.mxu0 0.0
  %4094 = vmatprep.subr.mxu0 0.0
  %4095 = vmatpush2.msra.mxu0 0.0
  %4096 = vmatprep.subr.mxu0 0.0
  %4097 = vmatpush2.msra.mxu0 0.0
  %4098 = vmatprep.subr.mxu0 0.0
  %4099 = vmatpush2.msra.mxu0 0.0
  %4100 = vmatprep.subr.mxu0 0.0
  %4101 = vmatpush2.msra.mxu0 0.0
  %4102 = vmatprep.subr.mxu0 0.0
  %4103 = vmatpush2.msra.mxu0 0.0
  %4104 = vmatprep.subr.mxu0 0.0
  %4105 = vmatpush2.msra.mxu0 0.0
  %4106 = vmatprep.mubr.f32.mxu0 0.0
  %v4107 = vand.u32 %v3661, 4294901760
  %4108 = vmatmul.mubr.f32.gmra.mxu0 %v4107
  %v4109 = vpop.f32.mrf.mxu0
  %v4110 = vadd.f32 %v4038, %v4109
  %v4111 = vpop.f32.mrf.mxu0
  %4112 = vdwg.mxu0
  %v4114 = vsel %vm3621, %v3648, 0
  %4116 = vmatprep.subr.mxu0 0.0
  %4117 = vmatpush1.msra.mxu0 0.0
  %4118 = vmatprep.subr.mxu0 0.0
  %4119 = vmatpush1.msra.mxu0 0.0
  %4120 = vmatprep.subr.mxu0 0.0
  %4121 = vmatpush1.msra.mxu0 0.0
  %4122 = vmatprep.subr.mxu0 0.0
  %4123 = vmatpush1.msra.mxu0 0.0
  %4124 = vmatprep.subr.mxu0 0.0
  %4125 = vmatpush1.msra.mxu0 0.0
  %4126 = vmatprep.subr.mxu0 0.0
  %4127 = vmatpush1.msra.mxu0 0.0
  %4128 = vmatprep.subr.mxu0 0.0
  %4129 = vmatpush1.msra.mxu0 0.0
  %4130 = vmatprep.subr.mxu0 0.0
  %4131 = vmatpush1.msra.mxu0 0.0
  %4132 = vmatprep.subr.mxu0 0.0
  %v4133 = vand.u32 %v3657, 4294901760
  %4134 = vmatpush1.msra.mxu0 %v4133
  %4135 = vmatprep.subr.mxu0 0.0
  %v4136 = vand.u32 %v3656, 4294901760
  %4137 = vmatpush1.msra.mxu0 %v4136
  %4138 = vmatprep.subr.mxu0 0.0
  %v4139 = vand.u32 %v3655, 4294901760
  %4140 = vmatpush1.msra.mxu0 %v4139
  %4141 = vmatprep.subr.mxu0 0.0
  %v4142 = vand.u32 %v3654, 4294901760
  %4143 = vmatpush1.msra.mxu0 %v4142
  %4144 = vmatprep.subr.mxu0 0.0
  %v4145 = vand.u32 %v3653, 4294901760
  %4146 = vmatpush1.msra.mxu0 %v4145
  %4147 = vmatprep.subr.mxu0 0.0
  %v4148 = vand.u32 %v3652, 4294901760
  %4149 = vmatpush1.msra.mxu0 %v4148
  %4150 = vmatprep.subr.mxu0 0.0
  %v4151 = vand.u32 %v3651, 4294901760
  %4152 = vmatpush1.msra.mxu0 %v4151
  %4153 = vmatprep.subr.mxu0 0.0
  %v4154 = vand.u32 %v3650, 4294901760
  %4155 = vmatpush1.msra.mxu0 %v4154
  %4156 = vmatprep.subr.mxu0 0.0
  %4157 = vmatpush2.msra.mxu0 0.0
  %4158 = vmatprep.subr.mxu0 0.0
  %4159 = vmatpush2.msra.mxu0 0.0
  %4160 = vmatprep.subr.mxu0 0.0
  %4161 = vmatpush2.msra.mxu0 0.0
  %4162 = vmatprep.subr.mxu0 0.0
  %4163 = vmatpush2.msra.mxu0 0.0
  %4164 = vmatprep.subr.mxu0 0.0
  %4165 = vmatpush2.msra.mxu0 0.0
  %4166 = vmatprep.subr.mxu0 0.0
  %4167 = vmatpush2.msra.mxu0 0.0
  %4168 = vmatprep.subr.mxu0 0.0
  %4169 = vmatpush2.msra.mxu0 0.0
  %4170 = vmatprep.subr.mxu0 0.0
  %4171 = vmatpush2.msra.mxu0 0.0
  %4172 = vmatprep.subr.mxu0 0.0
  %4173 = vmatpush2.msra.mxu0 0.0
  %4174 = vmatprep.subr.mxu0 0.0
  %4175 = vmatpush2.msra.mxu0 0.0
  %4176 = vmatprep.subr.mxu0 0.0
  %4177 = vmatpush2.msra.mxu0 0.0
  %4178 = vmatprep.subr.mxu0 0.0
  %4179 = vmatpush2.msra.mxu0 0.0
  %4180 = vmatprep.subr.mxu0 0.0
  %4181 = vmatpush2.msra.mxu0 0.0
  %4182 = vmatprep.subr.mxu0 0.0
  %4183 = vmatpush2.msra.mxu0 0.0
  %4184 = vmatprep.subr.mxu0 0.0
  %4185 = vmatpush2.msra.mxu0 0.0
  %4186 = vmatprep.subr.mxu0 0.0
  %4187 = vmatpush2.msra.mxu0 0.0
  %4188 = vmatprep.mubr.f32.mxu0 0.0
  %v4189 = vand.u32 %v4114, 4294901760
  %v4190 = vsub.f32 %v4114, %v4189
  %v4191 = vand.u32 %v4190, 4294901760
  %v4192 = vsub.f32 %v4190, %v4191
  %v4193 = vand.u32 %v4192, 4294901760
  %4194 = vmatmul.mubr.f32.gmra.mxu0 %v4193
  %v4195 = vpop.f32.mrf.mxu0
  %v4196 = vadd.f32 %v4110, %v4195
  %v4197 = vpop.f32.mrf.mxu0
  %4198 = vdwg.mxu0
  %4199 = vmatprep.subr.mxu0 0.0
  %4200 = vmatpush1.msra.mxu0 0.0
  %4201 = vmatprep.subr.mxu0 0.0
  %4202 = vmatpush1.msra.mxu0 0.0
  %4203 = vmatprep.subr.mxu0 0.0
  %4204 = vmatpush1.msra.mxu0 0.0
  %4205 = vmatprep.subr.mxu0 0.0
  %4206 = vmatpush1.msra.mxu0 0.0
  %4207 = vmatprep.subr.mxu0 0.0
  %4208 = vmatpush1.msra.mxu0 0.0
  %4209 = vmatprep.subr.mxu0 0.0
  %4210 = vmatpush1.msra.mxu0 0.0
  %4211 = vmatprep.subr.mxu0 0.0
  %4212 = vmatpush1.msra.mxu0 0.0
  %4213 = vmatprep.subr.mxu0 0.0
  %4214 = vmatpush1.msra.mxu0 0.0
  %4215 = vmatprep.subr.mxu0 0.0
  %v4216 = vand.u32 %v3657, 4294901760
  %v4217 = vsub.f32 %v3657, %v4216
  %v4218 = vand.u32 %v4217, 4294901760
  %v4219 = vsub.f32 %v4217, %v4218
  %v4220 = vand.u32 %v4219, 4294901760
  %4221 = vmatpush1.msra.mxu0 %v4220
  %4222 = vmatprep.subr.mxu0 0.0
  %v4223 = vand.u32 %v3656, 4294901760
  %v4224 = vsub.f32 %v3656, %v4223
  %v4225 = vand.u32 %v4224, 4294901760
  %v4226 = vsub.f32 %v4224, %v4225
  %v4227 = vand.u32 %v4226, 4294901760
  %4228 = vmatpush1.msra.mxu0 %v4227
  %4229 = vmatprep.subr.mxu0 0.0
  %v4230 = vand.u32 %v3655, 4294901760
  %v4231 = vsub.f32 %v3655, %v4230
  %v4232 = vand.u32 %v4231, 4294901760
  %v4233 = vsub.f32 %v4231, %v4232
  %v4234 = vand.u32 %v4233, 4294901760
  %4235 = vmatpush1.msra.mxu0 %v4234
  %4236 = vmatprep.subr.mxu0 0.0
  %v4237 = vand.u32 %v3654, 4294901760
  %v4238 = vsub.f32 %v3654, %v4237
  %v4239 = vand.u32 %v4238, 4294901760
  %v4240 = vsub.f32 %v4238, %v4239
  %v4241 = vand.u32 %v4240, 4294901760
  %4242 = vmatpush1.msra.mxu0 %v4241
  %4243 = vmatprep.subr.mxu0 0.0
  %v4244 = vand.u32 %v3653, 4294901760
  %v4245 = vsub.f32 %v3653, %v4244
  %v4246 = vand.u32 %v4245, 4294901760
  %v4247 = vsub.f32 %v4245, %v4246
  %v4248 = vand.u32 %v4247, 4294901760
  %4249 = vmatpush1.msra.mxu0 %v4248
  %4250 = vmatprep.subr.mxu0 0.0
  %v4251 = vand.u32 %v3652, 4294901760
  %v4252 = vsub.f32 %v3652, %v4251
  %v4253 = vand.u32 %v4252, 4294901760
  %v4254 = vsub.f32 %v4252, %v4253
  %v4255 = vand.u32 %v4254, 4294901760
  %4256 = vmatpush1.msra.mxu0 %v4255
  %4257 = vmatprep.subr.mxu0 0.0
  %v4258 = vand.u32 %v3651, 4294901760
  %v4259 = vsub.f32 %v3651, %v4258
  %v4260 = vand.u32 %v4259, 4294901760
  %v4261 = vsub.f32 %v4259, %v4260
  %v4262 = vand.u32 %v4261, 4294901760
  %4263 = vmatpush1.msra.mxu0 %v4262
  %4264 = vmatprep.subr.mxu0 0.0
  %v4265 = vand.u32 %v3650, 4294901760
  %v4266 = vsub.f32 %v3650, %v4265
  %v4267 = vand.u32 %v4266, 4294901760
  %v4268 = vsub.f32 %v4266, %v4267
  %v4269 = vand.u32 %v4268, 4294901760
  %4270 = vmatpush1.msra.mxu0 %v4269
  %4271 = vmatprep.subr.mxu0 0.0
  %4272 = vmatpush2.msra.mxu0 0.0
  %4273 = vmatprep.subr.mxu0 0.0
  %4274 = vmatpush2.msra.mxu0 0.0
  %4275 = vmatprep.subr.mxu0 0.0
  %4276 = vmatpush2.msra.mxu0 0.0
  %4277 = vmatprep.subr.mxu0 0.0
  %4278 = vmatpush2.msra.mxu0 0.0
  %4279 = vmatprep.subr.mxu0 0.0
  %4280 = vmatpush2.msra.mxu0 0.0
  %4281 = vmatprep.subr.mxu0 0.0
  %4282 = vmatpush2.msra.mxu0 0.0
  %4283 = vmatprep.subr.mxu0 0.0
  %4284 = vmatpush2.msra.mxu0 0.0
  %4285 = vmatprep.subr.mxu0 0.0
  %4286 = vmatpush2.msra.mxu0 0.0
  %4287 = vmatprep.subr.mxu0 0.0
  %4288 = vmatpush2.msra.mxu0 0.0
  %4289 = vmatprep.subr.mxu0 0.0
  %4290 = vmatpush2.msra.mxu0 0.0
  %4291 = vmatprep.subr.mxu0 0.0
  %4292 = vmatpush2.msra.mxu0 0.0
  %4293 = vmatprep.subr.mxu0 0.0
  %4294 = vmatpush2.msra.mxu0 0.0
  %4295 = vmatprep.subr.mxu0 0.0
  %4296 = vmatpush2.msra.mxu0 0.0
  %4297 = vmatprep.subr.mxu0 0.0
  %4298 = vmatpush2.msra.mxu0 0.0
  %4299 = vmatprep.subr.mxu0 0.0
  %4300 = vmatpush2.msra.mxu0 0.0
  %4301 = vmatprep.subr.mxu0 0.0
  %4302 = vmatpush2.msra.mxu0 0.0
  %4303 = vmatprep.mubr.f32.mxu0 0.0
  %v4304 = vand.u32 %v4114, 4294901760
  %4305 = vmatmul.mubr.f32.gmra.mxu0 %v4304
  %v4306 = vpop.f32.mrf.mxu0
  %v4307 = vadd.f32 %v4196, %v4306
  %v4308 = vpop.f32.mrf.mxu0
  %4309 = vdwg.mxu0
  %4310 = vmatprep.subr.mxu0 0.0
  %4311 = vmatpush1.msra.mxu0 0.0
  %4312 = vmatprep.subr.mxu0 0.0
  %4313 = vmatpush1.msra.mxu0 0.0
  %4314 = vmatprep.subr.mxu0 0.0
  %4315 = vmatpush1.msra.mxu0 0.0
  %4316 = vmatprep.subr.mxu0 0.0
  %4317 = vmatpush1.msra.mxu0 0.0
  %4318 = vmatprep.subr.mxu0 0.0
  %4319 = vmatpush1.msra.mxu0 0.0
  %4320 = vmatprep.subr.mxu0 0.0
  %4321 = vmatpush1.msra.mxu0 0.0
  %4322 = vmatprep.subr.mxu0 0.0
  %4323 = vmatpush1.msra.mxu0 0.0
  %4324 = vmatprep.subr.mxu0 0.0
  %4325 = vmatpush1.msra.mxu0 0.0
  %4326 = vmatprep.subr.mxu0 0.0
  %v4327 = vand.u32 %v3657, 4294901760
  %v4328 = vsub.f32 %v3657, %v4327
  %4329 = vmatpush1.msra.mxu0 %v4328
  %4330 = vmatprep.subr.mxu0 0.0
  %v4331 = vand.u32 %v3656, 4294901760
  %v4332 = vsub.f32 %v3656, %v4331
  %4333 = vmatpush1.msra.mxu0 %v4332
  %4334 = vmatprep.subr.mxu0 0.0
  %v4335 = vand.u32 %v3655, 4294901760
  %v4336 = vsub.f32 %v3655, %v4335
  %4337 = vmatpush1.msra.mxu0 %v4336
  %4338 = vmatprep.subr.mxu0 0.0
  %v4339 = vand.u32 %v3654, 4294901760
  %v4340 = vsub.f32 %v3654, %v4339
  %4341 = vmatpush1.msra.mxu0 %v4340
  %4342 = vmatprep.subr.mxu0 0.0
  %v4343 = vand.u32 %v3653, 4294901760
  %v4344 = vsub.f32 %v3653, %v4343
  %4345 = vmatpush1.msra.mxu0 %v4344
  %4346 = vmatprep.subr.mxu0 0.0
  %v4347 = vand.u32 %v3652, 4294901760
  %v4348 = vsub.f32 %v3652, %v4347
  %4349 = vmatpush1.msra.mxu0 %v4348
  %4350 = vmatprep.subr.mxu0 0.0
  %v4351 = vand.u32 %v3651, 4294901760
  %v4352 = vsub.f32 %v3651, %v4351
  %4353 = vmatpush1.msra.mxu0 %v4352
  %4354 = vmatprep.subr.mxu0 0.0
  %v4355 = vand.u32 %v3650, 4294901760
  %v4356 = vsub.f32 %v3650, %v4355
  %4357 = vmatpush1.msra.mxu0 %v4356
  %4358 = vmatprep.subr.mxu0 0.0
  %4359 = vmatpush2.msra.mxu0 0.0
  %4360 = vmatprep.subr.mxu0 0.0
  %4361 = vmatpush2.msra.mxu0 0.0
  %4362 = vmatprep.subr.mxu0 0.0
  %4363 = vmatpush2.msra.mxu0 0.0
  %4364 = vmatprep.subr.mxu0 0.0
  %4365 = vmatpush2.msra.mxu0 0.0
  %4366 = vmatprep.subr.mxu0 0.0
  %4367 = vmatpush2.msra.mxu0 0.0
  %4368 = vmatprep.subr.mxu0 0.0
  %4369 = vmatpush2.msra.mxu0 0.0
  %4370 = vmatprep.subr.mxu0 0.0
  %4371 = vmatpush2.msra.mxu0 0.0
  %4372 = vmatprep.subr.mxu0 0.0
  %4373 = vmatpush2.msra.mxu0 0.0
  %4374 = vmatprep.subr.mxu0 0.0
  %4375 = vmatpush2.msra.mxu0 0.0
  %4376 = vmatprep.subr.mxu0 0.0
  %4377 = vmatpush2.msra.mxu0 0.0
  %4378 = vmatprep.subr.mxu0 0.0
  %4379 = vmatpush2.msra.mxu0 0.0
  %4380 = vmatprep.subr.mxu0 0.0
  %4381 = vmatpush2.msra.mxu0 0.0
  %4382 = vmatprep.subr.mxu0 0.0
  %4383 = vmatpush2.msra.mxu0 0.0
  %4384 = vmatprep.subr.mxu0 0.0
  %4385 = vmatpush2.msra.mxu0 0.0
  %4386 = vmatprep.subr.mxu0 0.0
  %4387 = vmatpush2.msra.mxu0 0.0
  %4388 = vmatprep.subr.mxu0 0.0
  %4389 = vmatpush2.msra.mxu0 0.0
  %4390 = vmatprep.mubr.f32.mxu0 0.0
  %v4391 = vand.u32 %v4114, 4294901760
  %v4392 = vsub.f32 %v4114, %v4391
  %4393 = vmatmul.mubr.f32.gmra.mxu0 %v4392
  %v4394 = vpop.f32.mrf.mxu0
  %v4395 = vadd.f32 %v4307, %v4394
  %v4396 = vpop.f32.mrf.mxu0
  %4397 = vdwg.mxu0
  %4398 = vmatprep.subr.mxu0 0.0
  %4399 = vmatpush1.msra.mxu0 0.0
  %4400 = vmatprep.subr.mxu0 0.0
  %4401 = vmatpush1.msra.mxu0 0.0
  %4402 = vmatprep.subr.mxu0 0.0
  %4403 = vmatpush1.msra.mxu0 0.0
  %4404 = vmatprep.subr.mxu0 0.0
  %4405 = vmatpush1.msra.mxu0 0.0
  %4406 = vmatprep.subr.mxu0 0.0
  %4407 = vmatpush1.msra.mxu0 0.0
  %4408 = vmatprep.subr.mxu0 0.0
  %4409 = vmatpush1.msra.mxu0 0.0
  %4410 = vmatprep.subr.mxu0 0.0
  %4411 = vmatpush1.msra.mxu0 0.0
  %4412 = vmatprep.subr.mxu0 0.0
  %4413 = vmatpush1.msra.mxu0 0.0
  %4414 = vmatprep.subr.mxu0 0.0
  %v4415 = vand.u32 %v3657, 4294901760
  %4416 = vmatpush1.msra.mxu0 %v4415
  %4417 = vmatprep.subr.mxu0 0.0
  %v4418 = vand.u32 %v3656, 4294901760
  %4419 = vmatpush1.msra.mxu0 %v4418
  %4420 = vmatprep.subr.mxu0 0.0
  %v4421 = vand.u32 %v3655, 4294901760
  %4422 = vmatpush1.msra.mxu0 %v4421
  %4423 = vmatprep.subr.mxu0 0.0
  %v4424 = vand.u32 %v3654, 4294901760
  %4425 = vmatpush1.msra.mxu0 %v4424
  %4426 = vmatprep.subr.mxu0 0.0
  %v4427 = vand.u32 %v3653, 4294901760
  %4428 = vmatpush1.msra.mxu0 %v4427
  %4429 = vmatprep.subr.mxu0 0.0
  %v4430 = vand.u32 %v3652, 4294901760
  %4431 = vmatpush1.msra.mxu0 %v4430
  %4432 = vmatprep.subr.mxu0 0.0
  %v4433 = vand.u32 %v3651, 4294901760
  %4434 = vmatpush1.msra.mxu0 %v4433
  %4435 = vmatprep.subr.mxu0 0.0
  %v4436 = vand.u32 %v3650, 4294901760
  %4437 = vmatpush1.msra.mxu0 %v4436
  %4438 = vmatprep.subr.mxu0 0.0
  %4439 = vmatpush2.msra.mxu0 0.0
  %4440 = vmatprep.subr.mxu0 0.0
  %4441 = vmatpush2.msra.mxu0 0.0
  %4442 = vmatprep.subr.mxu0 0.0
  %4443 = vmatpush2.msra.mxu0 0.0
  %4444 = vmatprep.subr.mxu0 0.0
  %4445 = vmatpush2.msra.mxu0 0.0
  %4446 = vmatprep.subr.mxu0 0.0
  %4447 = vmatpush2.msra.mxu0 0.0
  %4448 = vmatprep.subr.mxu0 0.0
  %4449 = vmatpush2.msra.mxu0 0.0
  %4450 = vmatprep.subr.mxu0 0.0
  %4451 = vmatpush2.msra.mxu0 0.0
  %4452 = vmatprep.subr.mxu0 0.0
  %4453 = vmatpush2.msra.mxu0 0.0
  %4454 = vmatprep.subr.mxu0 0.0
  %4455 = vmatpush2.msra.mxu0 0.0
  %4456 = vmatprep.subr.mxu0 0.0
  %4457 = vmatpush2.msra.mxu0 0.0
  %4458 = vmatprep.subr.mxu0 0.0
  %4459 = vmatpush2.msra.mxu0 0.0
  %4460 = vmatprep.subr.mxu0 0.0
  %4461 = vmatpush2.msra.mxu0 0.0
  %4462 = vmatprep.subr.mxu0 0.0
  %4463 = vmatpush2.msra.mxu0 0.0
  %4464 = vmatprep.subr.mxu0 0.0
  %4465 = vmatpush2.msra.mxu0 0.0
  %4466 = vmatprep.subr.mxu0 0.0
  %4467 = vmatpush2.msra.mxu0 0.0
  %4468 = vmatprep.subr.mxu0 0.0
  %4469 = vmatpush2.msra.mxu0 0.0
  %4470 = vmatprep.mubr.f32.mxu0 0.0
  %v4471 = vand.u32 %v4114, 4294901760
  %v4472 = vsub.f32 %v4114, %v4471
  %v4473 = vand.u32 %v4472, 4294901760
  %4474 = vmatmul.mubr.f32.gmra.mxu0 %v4473
  %v4475 = vpop.f32.mrf.mxu0
  %v4476 = vadd.f32 %v4395, %v4475
  %v4477 = vpop.f32.mrf.mxu0
  %4478 = vdwg.mxu0
  %4479 = vmatprep.subr.mxu0 0.0
  %4480 = vmatpush1.msra.mxu0 0.0
  %4481 = vmatprep.subr.mxu0 0.0
  %4482 = vmatpush1.msra.mxu0 0.0
  %4483 = vmatprep.subr.mxu0 0.0
  %4484 = vmatpush1.msra.mxu0 0.0
  %4485 = vmatprep.subr.mxu0 0.0
  %4486 = vmatpush1.msra.mxu0 0.0
  %4487 = vmatprep.subr.mxu0 0.0
  %4488 = vmatpush1.msra.mxu0 0.0
  %4489 = vmatprep.subr.mxu0 0.0
  %4490 = vmatpush1.msra.mxu0 0.0
  %4491 = vmatprep.subr.mxu0 0.0
  %4492 = vmatpush1.msra.mxu0 0.0
  %4493 = vmatprep.subr.mxu0 0.0
  %4494 = vmatpush1.msra.mxu0 0.0
  %4495 = vmatprep.subr.mxu0 0.0
  %v4496 = vand.u32 %v3657, 4294901760
  %v4497 = vsub.f32 %v3657, %v4496
  %v4498 = vand.u32 %v4497, 4294901760
  %4499 = vmatpush1.msra.mxu0 %v4498
  %4500 = vmatprep.subr.mxu0 0.0
  %v4501 = vand.u32 %v3656, 4294901760
  %v4502 = vsub.f32 %v3656, %v4501
  %v4503 = vand.u32 %v4502, 4294901760
  %4504 = vmatpush1.msra.mxu0 %v4503
  %4505 = vmatprep.subr.mxu0 0.0
  %v4506 = vand.u32 %v3655, 4294901760
  %v4507 = vsub.f32 %v3655, %v4506
  %v4508 = vand.u32 %v4507, 4294901760
  %4509 = vmatpush1.msra.mxu0 %v4508
  %4510 = vmatprep.subr.mxu0 0.0
  %v4511 = vand.u32 %v3654, 4294901760
  %v4512 = vsub.f32 %v3654, %v4511
  %v4513 = vand.u32 %v4512, 4294901760
  %4514 = vmatpush1.msra.mxu0 %v4513
  %4515 = vmatprep.subr.mxu0 0.0
  %v4516 = vand.u32 %v3653, 4294901760
  %v4517 = vsub.f32 %v3653, %v4516
  %v4518 = vand.u32 %v4517, 4294901760
  %4519 = vmatpush1.msra.mxu0 %v4518
  %4520 = vmatprep.subr.mxu0 0.0
  %v4521 = vand.u32 %v3652, 4294901760
  %v4522 = vsub.f32 %v3652, %v4521
  %v4523 = vand.u32 %v4522, 4294901760
  %4524 = vmatpush1.msra.mxu0 %v4523
  %4525 = vmatprep.subr.mxu0 0.0
  %v4526 = vand.u32 %v3651, 4294901760
  %v4527 = vsub.f32 %v3651, %v4526
  %v4528 = vand.u32 %v4527, 4294901760
  %4529 = vmatpush1.msra.mxu0 %v4528
  %4530 = vmatprep.subr.mxu0 0.0
  %v4531 = vand.u32 %v3650, 4294901760
  %v4532 = vsub.f32 %v3650, %v4531
  %v4533 = vand.u32 %v4532, 4294901760
  %4534 = vmatpush1.msra.mxu0 %v4533
  %4535 = vmatprep.subr.mxu0 0.0
  %4536 = vmatpush2.msra.mxu0 0.0
  %4537 = vmatprep.subr.mxu0 0.0
  %4538 = vmatpush2.msra.mxu0 0.0
  %4539 = vmatprep.subr.mxu0 0.0
  %4540 = vmatpush2.msra.mxu0 0.0
  %4541 = vmatprep.subr.mxu0 0.0
  %4542 = vmatpush2.msra.mxu0 0.0
  %4543 = vmatprep.subr.mxu0 0.0
  %4544 = vmatpush2.msra.mxu0 0.0
  %4545 = vmatprep.subr.mxu0 0.0
  %4546 = vmatpush2.msra.mxu0 0.0
  %4547 = vmatprep.subr.mxu0 0.0
  %4548 = vmatpush2.msra.mxu0 0.0
  %4549 = vmatprep.subr.mxu0 0.0
  %4550 = vmatpush2.msra.mxu0 0.0
  %4551 = vmatprep.subr.mxu0 0.0
  %4552 = vmatpush2.msra.mxu0 0.0
  %4553 = vmatprep.subr.mxu0 0.0
  %4554 = vmatpush2.msra.mxu0 0.0
  %4555 = vmatprep.subr.mxu0 0.0
  %4556 = vmatpush2.msra.mxu0 0.0
  %4557 = vmatprep.subr.mxu0 0.0
  %4558 = vmatpush2.msra.mxu0 0.0
  %4559 = vmatprep.subr.mxu0 0.0
  %4560 = vmatpush2.msra.mxu0 0.0
  %4561 = vmatprep.subr.mxu0 0.0
  %4562 = vmatpush2.msra.mxu0 0.0
  %4563 = vmatprep.subr.mxu0 0.0
  %4564 = vmatpush2.msra.mxu0 0.0
  %4565 = vmatprep.subr.mxu0 0.0
  %4566 = vmatpush2.msra.mxu0 0.0
  %4567 = vmatprep.mubr.f32.mxu0 0.0
  %v4568 = vand.u32 %v4114, 4294901760
  %4569 = vmatmul.mubr.f32.gmra.mxu0 %v4568
  %v4570 = vpop.f32.mrf.mxu0
  %v4571 = vadd.f32 %v4476, %v4570
  %v4572 = vpop.f32.mrf.mxu0
  %4573 = vdwg.mxu0
  %4574 = vmatprep.subr.mxu0 0.0
  %4575 = vmatpush1.msra.mxu0 0.0
  %4576 = vmatprep.subr.mxu0 0.0
  %4577 = vmatpush1.msra.mxu0 0.0
  %4578 = vmatprep.subr.mxu0 0.0
  %4579 = vmatpush1.msra.mxu0 0.0
  %4580 = vmatprep.subr.mxu0 0.0
  %4581 = vmatpush1.msra.mxu0 0.0
  %4582 = vmatprep.subr.mxu0 0.0
  %4583 = vmatpush1.msra.mxu0 0.0
  %4584 = vmatprep.subr.mxu0 0.0
  %4585 = vmatpush1.msra.mxu0 0.0
  %4586 = vmatprep.subr.mxu0 0.0
  %4587 = vmatpush1.msra.mxu0 0.0
  %4588 = vmatprep.subr.mxu0 0.0
  %4589 = vmatpush1.msra.mxu0 0.0
  %4590 = vmatprep.subr.mxu0 0.0
  %v4591 = vand.u32 %v3657, 4294901760
  %4592 = vmatpush1.msra.mxu0 %v4591
  %4593 = vmatprep.subr.mxu0 0.0
  %v4594 = vand.u32 %v3656, 4294901760
  %4595 = vmatpush1.msra.mxu0 %v4594
  %4596 = vmatprep.subr.mxu0 0.0
  %v4597 = vand.u32 %v3655, 4294901760
  %4598 = vmatpush1.msra.mxu0 %v4597
  %4599 = vmatprep.subr.mxu0 0.0
  %v4600 = vand.u32 %v3654, 4294901760
  %4601 = vmatpush1.msra.mxu0 %v4600
  %4602 = vmatprep.subr.mxu0 0.0
  %v4603 = vand.u32 %v3653, 4294901760
  %4604 = vmatpush1.msra.mxu0 %v4603
  %4605 = vmatprep.subr.mxu0 0.0
  %v4606 = vand.u32 %v3652, 4294901760
  %4607 = vmatpush1.msra.mxu0 %v4606
  %4608 = vmatprep.subr.mxu0 0.0
  %v4609 = vand.u32 %v3651, 4294901760
  %4610 = vmatpush1.msra.mxu0 %v4609
  %4611 = vmatprep.subr.mxu0 0.0
  %v4612 = vand.u32 %v3650, 4294901760
  %4613 = vmatpush1.msra.mxu0 %v4612
  %4614 = vmatprep.subr.mxu0 0.0
  %4615 = vmatpush2.msra.mxu0 0.0
  %4616 = vmatprep.subr.mxu0 0.0
  %4617 = vmatpush2.msra.mxu0 0.0
  %4618 = vmatprep.subr.mxu0 0.0
  %4619 = vmatpush2.msra.mxu0 0.0
  %4620 = vmatprep.subr.mxu0 0.0
  %4621 = vmatpush2.msra.mxu0 0.0
  %4622 = vmatprep.subr.mxu0 0.0
  %4623 = vmatpush2.msra.mxu0 0.0
  %4624 = vmatprep.subr.mxu0 0.0
  %4625 = vmatpush2.msra.mxu0 0.0
  %4626 = vmatprep.subr.mxu0 0.0
  %4627 = vmatpush2.msra.mxu0 0.0
  %4628 = vmatprep.subr.mxu0 0.0
  %4629 = vmatpush2.msra.mxu0 0.0
  %4630 = vmatprep.subr.mxu0 0.0
  %4631 = vmatpush2.msra.mxu0 0.0
  %4632 = vmatprep.subr.mxu0 0.0
  %4633 = vmatpush2.msra.mxu0 0.0
  %4634 = vmatprep.subr.mxu0 0.0
  %4635 = vmatpush2.msra.mxu0 0.0
  %4636 = vmatprep.subr.mxu0 0.0
  %4637 = vmatpush2.msra.mxu0 0.0
  %4638 = vmatprep.subr.mxu0 0.0
  %4639 = vmatpush2.msra.mxu0 0.0
  %4640 = vmatprep.subr.mxu0 0.0
  %4641 = vmatpush2.msra.mxu0 0.0
  %4642 = vmatprep.subr.mxu0 0.0
  %4643 = vmatpush2.msra.mxu0 0.0
  %4644 = vmatprep.subr.mxu0 0.0
  %4645 = vmatpush2.msra.mxu0 0.0
  %4646 = vmatprep.mubr.f32.mxu0 0.0
  %v4647 = vand.u32 %v4114, 4294901760
  %4648 = vmatmul.mubr.f32.gmra.mxu0 %v4647
  %v4649 = vpop.f32.mrf.mxu0
  %v4650 = vadd.f32 %v4571, %v4649
  %v4651 = vpop.f32.mrf.mxu0
  %4652 = vdwg.mxu0
  %v4653 = vld [vmem:[%s6] sm:$0x1]
  %v4654 = vlaneseq
  %v4655 = vshrl.u32 %v4654, 7
  %v4656 = vsub.s32 0, %v4655
  %v4657 = vrot.slane %v4653, %v4656
  %v4658 = vadd.f32 %v4650, %v4657
  %v4659 = vmax.f32 %v4658, 0.0
  %v4660 = vld [vmem:[%s7] sm:$0xff]
  %v4661 = vld [vmem:[%s7 + $0x8] sm:$0xff]
  %v4662 = vld [vmem:[%s7 + $0x10] sm:$0xff]
  %v4663 = vld [vmem:[%s7 + $0x18] sm:$0xff]
  %v4664 = vld [vmem:[%s7 + $0x20] sm:$0xff]
  %v4665 = vld [vmem:[%s7 + $0x28] sm:$0xff]
  %v4666 = vld [vmem:[%s7 + $0x30] sm:$0xff]
  %v4667 = vld [vmem:[%s7 + $0x38] sm:$0xff]
  %v4668 = vld [vmem:[%s7 + $0x40] sm:$0xff]
  %v4669 = vld [vmem:[%s7 + $0x48] sm:$0xff]
  %v4670 = vld [vmem:[%s7 + $0x50] sm:$0xff]
  %v4671 = vld [vmem:[%s7 + $0x58] sm:$0xff]
  %v4672 = vld [vmem:[%s7 + $0x60] sm:$0xff]
  %v4673 = vld [vmem:[%s7 + $0x68] sm:$0xff]
  %v4674 = vld [vmem:[%s7 + $0x70] sm:$0xff]
  %v4675 = vld [vmem:[%s7 + $0x78] sm:$0xff]
  %v4676 = vld [vmem:[%s6 + $0x1] sm:$0x1]
  %v4677 = vlaneseq
  %v4678 = vshrl.u32 %v4677, 7
  %v4679 = vsub.s32 0, %v4678
  %v4680 = vrot.slane %v4676, %v4679
  %4681 = vmatprep.subr.mxu0 0.0
  %v4682 = vand.u32 %v4675, 4294901760
  %4683 = vmatpush1.msra.mxu0 %v4682
  %4684 = vmatprep.subr.mxu0 0.0
  %v4685 = vand.u32 %v4674, 4294901760
  %4686 = vmatpush1.msra.mxu0 %v4685
  %4687 = vmatprep.subr.mxu0 0.0
  %v4688 = vand.u32 %v4673, 4294901760
  %4689 = vmatpush1.msra.mxu0 %v4688
  %4690 = vmatprep.subr.mxu0 0.0
  %v4691 = vand.u32 %v4672, 4294901760
  %4692 = vmatpush1.msra.mxu0 %v4691
  %4693 = vmatprep.subr.mxu0 0.0
  %v4694 = vand.u32 %v4671, 4294901760
  %4695 = vmatpush1.msra.mxu0 %v4694
  %4696 = vmatprep.subr.mxu0 0.0
  %v4697 = vand.u32 %v4670, 4294901760
  %4698 = vmatpush1.msra.mxu0 %v4697
  %4699 = vmatprep.subr.mxu0 0.0
  %v4700 = vand.u32 %v4669, 4294901760
  %4701 = vmatpush1.msra.mxu0 %v4700
  %4702 = vmatprep.subr.mxu0 0.0
  %v4703 = vand.u32 %v4668, 4294901760
  %4704 = vmatpush1.msra.mxu0 %v4703
  %4705 = vmatprep.subr.mxu0 0.0
  %v4706 = vand.u32 %v4667, 4294901760
  %4707 = vmatpush1.msra.mxu0 %v4706
  %4708 = vmatprep.subr.mxu0 0.0
  %v4709 = vand.u32 %v4666, 4294901760
  %4710 = vmatpush1.msra.mxu0 %v4709
  %4711 = vmatprep.subr.mxu0 0.0
  %v4712 = vand.u32 %v4665, 4294901760
  %4713 = vmatpush1.msra.mxu0 %v4712
  %4714 = vmatprep.subr.mxu0 0.0
  %v4715 = vand.u32 %v4664, 4294901760
  %4716 = vmatpush1.msra.mxu0 %v4715
  %4717 = vmatprep.subr.mxu0 0.0
  %v4718 = vand.u32 %v4663, 4294901760
  %4719 = vmatpush1.msra.mxu0 %v4718
  %4720 = vmatprep.subr.mxu0 0.0
  %v4721 = vand.u32 %v4662, 4294901760
  %4722 = vmatpush1.msra.mxu0 %v4721
  %4723 = vmatprep.subr.mxu0 0.0
  %v4724 = vand.u32 %v4661, 4294901760
  %4725 = vmatpush1.msra.mxu0 %v4724
  %4726 = vmatprep.subr.mxu0 0.0
  %v4727 = vand.u32 %v4660, 4294901760
  %4728 = vmatpush1.msra.mxu0 %v4727
  %4729 = vmatprep.subr.mxu0 0.0
  %4730 = vmatpush2.msra.mxu0 0.0
  %4731 = vmatprep.subr.mxu0 0.0
  %4732 = vmatpush2.msra.mxu0 0.0
  %4733 = vmatprep.subr.mxu0 0.0
  %4734 = vmatpush2.msra.mxu0 0.0
  %4735 = vmatprep.subr.mxu0 0.0
  %4736 = vmatpush2.msra.mxu0 0.0
  %4737 = vmatprep.subr.mxu0 0.0
  %4738 = vmatpush2.msra.mxu0 0.0
  %4739 = vmatprep.subr.mxu0 0.0
  %4740 = vmatpush2.msra.mxu0 0.0
  %4741 = vmatprep.subr.mxu0 0.0
  %4742 = vmatpush2.msra.mxu0 0.0
  %4743 = vmatprep.subr.mxu0 0.0
  %4744 = vmatpush2.msra.mxu0 0.0
  %4745 = vmatprep.subr.mxu0 0.0
  %4746 = vmatpush2.msra.mxu0 0.0
  %4747 = vmatprep.subr.mxu0 0.0
  %4748 = vmatpush2.msra.mxu0 0.0
  %4749 = vmatprep.subr.mxu0 0.0
  %4750 = vmatpush2.msra.mxu0 0.0
  %4751 = vmatprep.subr.mxu0 0.0
  %4752 = vmatpush2.msra.mxu0 0.0
  %4753 = vmatprep.subr.mxu0 0.0
  %4754 = vmatpush2.msra.mxu0 0.0
  %4755 = vmatprep.subr.mxu0 0.0
  %4756 = vmatpush2.msra.mxu0 0.0
  %4757 = vmatprep.subr.mxu0 0.0
  %4758 = vmatpush2.msra.mxu0 0.0
  %4759 = vmatprep.subr.mxu0 0.0
  %4760 = vmatpush2.msra.mxu0 0.0
  %4761 = vmatprep.mubr.f32.mxu0 0.0
  %v4762 = vand.u32 %v4659, 4294901760
  %v4763 = vsub.f32 %v4659, %v4762
  %v4764 = vand.u32 %v4763, 4294901760
  %v4765 = vsub.f32 %v4763, %v4764
  %v4766 = vand.u32 %v4765, 4294901760
  %4767 = vmatmul.mubr.f32.gmra.mxu0 %v4766
  %v4768 = vpop.f32.mrf.mxu0
  %v4769 = vadd.f32 %v4680, %v4768
  %v4770 = vpop.f32.mrf.mxu0
  %4771 = vdwg.mxu0
  %4772 = vmatprep.subr.mxu0 0.0
  %v4773 = vand.u32 %v4675, 4294901760
  %v4774 = vsub.f32 %v4675, %v4773
  %v4775 = vand.u32 %v4774, 4294901760
  %v4776 = vsub.f32 %v4774, %v4775
  %v4777 = vand.u32 %v4776, 4294901760
  %4778 = vmatpush1.msra.mxu0 %v4777
  %4779 = vmatprep.subr.mxu0 0.0
  %v4780 = vand.u32 %v4674, 4294901760
  %v4781 = vsub.f32 %v4674, %v4780
  %v4782 = vand.u32 %v4781, 4294901760
  %v4783 = vsub.f32 %v4781, %v4782
  %v4784 = vand.u32 %v4783, 4294901760
  %4785 = vmatpush1.msra.mxu0 %v4784
  %4786 = vmatprep.subr.mxu0 0.0
  %v4787 = vand.u32 %v4673, 4294901760
  %v4788 = vsub.f32 %v4673, %v4787
  %v4789 = vand.u32 %v4788, 4294901760
  %v4790 = vsub.f32 %v4788, %v4789
  %v4791 = vand.u32 %v4790, 4294901760
  %4792 = vmatpush1.msra.mxu0 %v4791
  %4793 = vmatprep.subr.mxu0 0.0
  %v4794 = vand.u32 %v4672, 4294901760
  %v4795 = vsub.f32 %v4672, %v4794
  %v4796 = vand.u32 %v4795, 4294901760
  %v4797 = vsub.f32 %v4795, %v4796
  %v4798 = vand.u32 %v4797, 4294901760
  %4799 = vmatpush1.msra.mxu0 %v4798
  %4800 = vmatprep.subr.mxu0 0.0
  %v4801 = vand.u32 %v4671, 4294901760
  %v4802 = vsub.f32 %v4671, %v4801
  %v4803 = vand.u32 %v4802, 4294901760
  %v4804 = vsub.f32 %v4802, %v4803
  %v4805 = vand.u32 %v4804, 4294901760
  %4806 = vmatpush1.msra.mxu0 %v4805
  %4807 = vmatprep.subr.mxu0 0.0
  %v4808 = vand.u32 %v4670, 4294901760
  %v4809 = vsub.f32 %v4670, %v4808
  %v4810 = vand.u32 %v4809, 4294901760
  %v4811 = vsub.f32 %v4809, %v4810
  %v4812 = vand.u32 %v4811, 4294901760
  %4813 = vmatpush1.msra.mxu0 %v4812
  %4814 = vmatprep.subr.mxu0 0.0
  %v4815 = vand.u32 %v4669, 4294901760
  %v4816 = vsub.f32 %v4669, %v4815
  %v4817 = vand.u32 %v4816, 4294901760
  %v4818 = vsub.f32 %v4816, %v4817
  %v4819 = vand.u32 %v4818, 4294901760
  %4820 = vmatpush1.msra.mxu0 %v4819
  %4821 = vmatprep.subr.mxu0 0.0
  %v4822 = vand.u32 %v4668, 4294901760
  %v4823 = vsub.f32 %v4668, %v4822
  %v4824 = vand.u32 %v4823, 4294901760
  %v4825 = vsub.f32 %v4823, %v4824
  %v4826 = vand.u32 %v4825, 4294901760
  %4827 = vmatpush1.msra.mxu0 %v4826
  %4828 = vmatprep.subr.mxu0 0.0
  %v4829 = vand.u32 %v4667, 4294901760
  %v4830 = vsub.f32 %v4667, %v4829
  %v4831 = vand.u32 %v4830, 4294901760
  %v4832 = vsub.f32 %v4830, %v4831
  %v4833 = vand.u32 %v4832, 4294901760
  %4834 = vmatpush1.msra.mxu0 %v4833
  %4835 = vmatprep.subr.mxu0 0.0
  %v4836 = vand.u32 %v4666, 4294901760
  %v4837 = vsub.f32 %v4666, %v4836
  %v4838 = vand.u32 %v4837, 4294901760
  %v4839 = vsub.f32 %v4837, %v4838
  %v4840 = vand.u32 %v4839, 4294901760
  %4841 = vmatpush1.msra.mxu0 %v4840
  %4842 = vmatprep.subr.mxu0 0.0
  %v4843 = vand.u32 %v4665, 4294901760
  %v4844 = vsub.f32 %v4665, %v4843
  %v4845 = vand.u32 %v4844, 4294901760
  %v4846 = vsub.f32 %v4844, %v4845
  %v4847 = vand.u32 %v4846, 4294901760
  %4848 = vmatpush1.msra.mxu0 %v4847
  %4849 = vmatprep.subr.mxu0 0.0
  %v4850 = vand.u32 %v4664, 4294901760
  %v4851 = vsub.f32 %v4664, %v4850
  %v4852 = vand.u32 %v4851, 4294901760
  %v4853 = vsub.f32 %v4851, %v4852
  %v4854 = vand.u32 %v4853, 4294901760
  %4855 = vmatpush1.msra.mxu0 %v4854
  %4856 = vmatprep.subr.mxu0 0.0
  %v4857 = vand.u32 %v4663, 4294901760
  %v4858 = vsub.f32 %v4663, %v4857
  %v4859 = vand.u32 %v4858, 4294901760
  %v4860 = vsub.f32 %v4858, %v4859
  %v4861 = vand.u32 %v4860, 4294901760
  %4862 = vmatpush1.msra.mxu0 %v4861
  %4863 = vmatprep.subr.mxu0 0.0
  %v4864 = vand.u32 %v4662, 4294901760
  %v4865 = vsub.f32 %v4662, %v4864
  %v4866 = vand.u32 %v4865, 4294901760
  %v4867 = vsub.f32 %v4865, %v4866
  %v4868 = vand.u32 %v4867, 4294901760
  %4869 = vmatpush1.msra.mxu0 %v4868
  %4870 = vmatprep.subr.mxu0 0.0
  %v4871 = vand.u32 %v4661, 4294901760
  %v4872 = vsub.f32 %v4661, %v4871
  %v4873 = vand.u32 %v4872, 4294901760
  %v4874 = vsub.f32 %v4872, %v4873
  %v4875 = vand.u32 %v4874, 4294901760
  %4876 = vmatpush1.msra.mxu0 %v4875
  %4877 = vmatprep.subr.mxu0 0.0
  %v4878 = vand.u32 %v4660, 4294901760
  %v4879 = vsub.f32 %v4660, %v4878
  %v4880 = vand.u32 %v4879, 4294901760
  %v4881 = vsub.f32 %v4879, %v4880
  %v4882 = vand.u32 %v4881, 4294901760
  %4883 = vmatpush1.msra.mxu0 %v4882
  %4884 = vmatprep.subr.mxu0 0.0
  %4885 = vmatpush2.msra.mxu0 0.0
  %4886 = vmatprep.subr.mxu0 0.0
  %4887 = vmatpush2.msra.mxu0 0.0
  %4888 = vmatprep.subr.mxu0 0.0
  %4889 = vmatpush2.msra.mxu0 0.0
  %4890 = vmatprep.subr.mxu0 0.0
  %4891 = vmatpush2.msra.mxu0 0.0
  %4892 = vmatprep.subr.mxu0 0.0
  %4893 = vmatpush2.msra.mxu0 0.0
  %4894 = vmatprep.subr.mxu0 0.0
  %4895 = vmatpush2.msra.mxu0 0.0
  %4896 = vmatprep.subr.mxu0 0.0
  %4897 = vmatpush2.msra.mxu0 0.0
  %4898 = vmatprep.subr.mxu0 0.0
  %4899 = vmatpush2.msra.mxu0 0.0
  %4900 = vmatprep.subr.mxu0 0.0
  %4901 = vmatpush2.msra.mxu0 0.0
  %4902 = vmatprep.subr.mxu0 0.0
  %4903 = vmatpush2.msra.mxu0 0.0
  %4904 = vmatprep.subr.mxu0 0.0
  %4905 = vmatpush2.msra.mxu0 0.0
  %4906 = vmatprep.subr.mxu0 0.0
  %4907 = vmatpush2.msra.mxu0 0.0
  %4908 = vmatprep.subr.mxu0 0.0
  %4909 = vmatpush2.msra.mxu0 0.0
  %4910 = vmatprep.subr.mxu0 0.0
  %4911 = vmatpush2.msra.mxu0 0.0
  %4912 = vmatprep.subr.mxu0 0.0
  %4913 = vmatpush2.msra.mxu0 0.0
  %4914 = vmatprep.subr.mxu0 0.0
  %4915 = vmatpush2.msra.mxu0 0.0
  %4916 = vmatprep.mubr.f32.mxu0 0.0
  %v4917 = vand.u32 %v4659, 4294901760
  %4918 = vmatmul.mubr.f32.gmra.mxu0 %v4917
  %v4919 = vpop.f32.mrf.mxu0
  %v4920 = vadd.f32 %v4769, %v4919
  %v4921 = vpop.f32.mrf.mxu0
  %4922 = vdwg.mxu0
  %4923 = vmatprep.subr.mxu0 0.0
  %v4924 = vand.u32 %v4675, 4294901760
  %v4925 = vsub.f32 %v4675, %v4924
  %4926 = vmatpush1.msra.mxu0 %v4925
  %4927 = vmatprep.subr.mxu0 0.0
  %v4928 = vand.u32 %v4674, 4294901760
  %v4929 = vsub.f32 %v4674, %v4928
  %4930 = vmatpush1.msra.mxu0 %v4929
  %4931 = vmatprep.subr.mxu0 0.0
  %v4932 = vand.u32 %v4673, 4294901760
  %v4933 = vsub.f32 %v4673, %v4932
  %4934 = vmatpush1.msra.mxu0 %v4933
  %4935 = vmatprep.subr.mxu0 0.0
  %v4936 = vand.u32 %v4672, 4294901760
  %v4937 = vsub.f32 %v4672, %v4936
  %4938 = vmatpush1.msra.mxu0 %v4937
  %4939 = vmatprep.subr.mxu0 0.0
  %v4940 = vand.u32 %v4671, 4294901760
  %v4941 = vsub.f32 %v4671, %v4940
  %4942 = vmatpush1.msra.mxu0 %v4941
  %4943 = vmatprep.subr.mxu0 0.0
  %v4944 = vand.u32 %v4670, 4294901760
  %v4945 = vsub.f32 %v4670, %v4944
  %4946 = vmatpush1.msra.mxu0 %v4945
  %4947 = vmatprep.subr.mxu0 0.0
  %v4948 = vand.u32 %v4669, 4294901760
  %v4949 = vsub.f32 %v4669, %v4948
  %4950 = vmatpush1.msra.mxu0 %v4949
  %4951 = vmatprep.subr.mxu0 0.0
  %v4952 = vand.u32 %v4668, 4294901760
  %v4953 = vsub.f32 %v4668, %v4952
  %4954 = vmatpush1.msra.mxu0 %v4953
  %4955 = vmatprep.subr.mxu0 0.0
  %v4956 = vand.u32 %v4667, 4294901760
  %v4957 = vsub.f32 %v4667, %v4956
  %4958 = vmatpush1.msra.mxu0 %v4957
  %4959 = vmatprep.subr.mxu0 0.0
  %v4960 = vand.u32 %v4666, 4294901760
  %v4961 = vsub.f32 %v4666, %v4960
  %4962 = vmatpush1.msra.mxu0 %v4961
  %4963 = vmatprep.subr.mxu0 0.0
  %v4964 = vand.u32 %v4665, 4294901760
  %v4965 = vsub.f32 %v4665, %v4964
  %4966 = vmatpush1.msra.mxu0 %v4965
  %4967 = vmatprep.subr.mxu0 0.0
  %v4968 = vand.u32 %v4664, 4294901760
  %v4969 = vsub.f32 %v4664, %v4968
  %4970 = vmatpush1.msra.mxu0 %v4969
  %4971 = vmatprep.subr.mxu0 0.0
  %v4972 = vand.u32 %v4663, 4294901760
  %v4973 = vsub.f32 %v4663, %v4972
  %4974 = vmatpush1.msra.mxu0 %v4973
  %4975 = vmatprep.subr.mxu0 0.0
  %v4976 = vand.u32 %v4662, 4294901760
  %v4977 = vsub.f32 %v4662, %v4976
  %4978 = vmatpush1.msra.mxu0 %v4977
  %4979 = vmatprep.subr.mxu0 0.0
  %v4980 = vand.u32 %v4661, 4294901760
  %v4981 = vsub.f32 %v4661, %v4980
  %4982 = vmatpush1.msra.mxu0 %v4981
  %4983 = vmatprep.subr.mxu0 0.0
  %v4984 = vand.u32 %v4660, 4294901760
  %v4985 = vsub.f32 %v4660, %v4984
  %4986 = vmatpush1.msra.mxu0 %v4985
  %4987 = vmatprep.subr.mxu0 0.0
  %4988 = vmatpush2.msra.mxu0 0.0
  %4989 = vmatprep.subr.mxu0 0.0
  %4990 = vmatpush2.msra.mxu0 0.0
  %4991 = vmatprep.subr.mxu0 0.0
  %4992 = vmatpush2.msra.mxu0 0.0
  %4993 = vmatprep.subr.mxu0 0.0
  %4994 = vmatpush2.msra.mxu0 0.0
  %4995 = vmatprep.subr.mxu0 0.0
  %4996 = vmatpush2.msra.mxu0 0.0
  %4997 = vmatprep.subr.mxu0 0.0
  %4998 = vmatpush2.msra.mxu0 0.0
  %4999 = vmatprep.subr.mxu0 0.0
  %5000 = vmatpush2.msra.mxu0 0.0
  %5001 = vmatprep.subr.mxu0 0.0
  %5002 = vmatpush2.msra.mxu0 0.0
  %5003 = vmatprep.subr.mxu0 0.0
  %5004 = vmatpush2.msra.mxu0 0.0
  %5005 = vmatprep.subr.mxu0 0.0
  %5006 = vmatpush2.msra.mxu0 0.0
  %5007 = vmatprep.subr.mxu0 0.0
  %5008 = vmatpush2.msra.mxu0 0.0
  %5009 = vmatprep.subr.mxu0 0.0
  %5010 = vmatpush2.msra.mxu0 0.0
  %5011 = vmatprep.subr.mxu0 0.0
  %5012 = vmatpush2.msra.mxu0 0.0
  %5013 = vmatprep.subr.mxu0 0.0
  %5014 = vmatpush2.msra.mxu0 0.0
  %5015 = vmatprep.subr.mxu0 0.0
  %5016 = vmatpush2.msra.mxu0 0.0
  %5017 = vmatprep.subr.mxu0 0.0
  %5018 = vmatpush2.msra.mxu0 0.0
  %5019 = vmatprep.mubr.f32.mxu0 0.0
  %v5020 = vand.u32 %v4659, 4294901760
  %v5021 = vsub.f32 %v4659, %v5020
  %5022 = vmatmul.mubr.f32.gmra.mxu0 %v5021
  %v5023 = vpop.f32.mrf.mxu0
  %v5024 = vadd.f32 %v4920, %v5023
  %v5025 = vpop.f32.mrf.mxu0
  %5026 = vdwg.mxu0
  %5027 = vmatprep.subr.mxu0 0.0
  %v5028 = vand.u32 %v4675, 4294901760
  %5029 = vmatpush1.msra.mxu0 %v5028
  %5030 = vmatprep.subr.mxu0 0.0
  %v5031 = vand.u32 %v4674, 4294901760
  %5032 = vmatpush1.msra.mxu0 %v5031
  %5033 = vmatprep.subr.mxu0 0.0
  %v5034 = vand.u32 %v4673, 4294901760
  %5035 = vmatpush1.msra.mxu0 %v5034
  %5036 = vmatprep.subr.mxu0 0.0
  %v5037 = vand.u32 %v4672, 4294901760
  %5038 = vmatpush1.msra.mxu0 %v5037
  %5039 = vmatprep.subr.mxu0 0.0
  %v5040 = vand.u32 %v4671, 4294901760
  %5041 = vmatpush1.msra.mxu0 %v5040
  %5042 = vmatprep.subr.mxu0 0.0
  %v5043 = vand.u32 %v4670, 4294901760
  %5044 = vmatpush1.msra.mxu0 %v5043
  %5045 = vmatprep.subr.mxu0 0.0
  %v5046 = vand.u32 %v4669, 4294901760
  %5047 = vmatpush1.msra.mxu0 %v5046
  %5048 = vmatprep.subr.mxu0 0.0
  %v5049 = vand.u32 %v4668, 4294901760
  %5050 = vmatpush1.msra.mxu0 %v5049
  %5051 = vmatprep.subr.mxu0 0.0
  %v5052 = vand.u32 %v4667, 4294901760
  %5053 = vmatpush1.msra.mxu0 %v5052
  %5054 = vmatprep.subr.mxu0 0.0
  %v5055 = vand.u32 %v4666, 4294901760
  %5056 = vmatpush1.msra.mxu0 %v5055
  %5057 = vmatprep.subr.mxu0 0.0
  %v5058 = vand.u32 %v4665, 4294901760
  %5059 = vmatpush1.msra.mxu0 %v5058
  %5060 = vmatprep.subr.mxu0 0.0
  %v5061 = vand.u32 %v4664, 4294901760
  %5062 = vmatpush1.msra.mxu0 %v5061
  %5063 = vmatprep.subr.mxu0 0.0
  %v5064 = vand.u32 %v4663, 4294901760
  %5065 = vmatpush1.msra.mxu0 %v5064
  %5066 = vmatprep.subr.mxu0 0.0
  %v5067 = vand.u32 %v4662, 4294901760
  %5068 = vmatpush1.msra.mxu0 %v5067
  %5069 = vmatprep.subr.mxu0 0.0
  %v5070 = vand.u32 %v4661, 4294901760
  %5071 = vmatpush1.msra.mxu0 %v5070
  %5072 = vmatprep.subr.mxu0 0.0
  %v5073 = vand.u32 %v4660, 4294901760
  %5074 = vmatpush1.msra.mxu0 %v5073
  %5075 = vmatprep.subr.mxu0 0.0
  %5076 = vmatpush2.msra.mxu0 0.0
  %5077 = vmatprep.subr.mxu0 0.0
  %5078 = vmatpush2.msra.mxu0 0.0
  %5079 = vmatprep.subr.mxu0 0.0
  %5080 = vmatpush2.msra.mxu0 0.0
  %5081 = vmatprep.subr.mxu0 0.0
  %5082 = vmatpush2.msra.mxu0 0.0
  %5083 = vmatprep.subr.mxu0 0.0
  %5084 = vmatpush2.msra.mxu0 0.0
  %5085 = vmatprep.subr.mxu0 0.0
  %5086 = vmatpush2.msra.mxu0 0.0
  %5087 = vmatprep.subr.mxu0 0.0
  %5088 = vmatpush2.msra.mxu0 0.0
  %5089 = vmatprep.subr.mxu0 0.0
  %5090 = vmatpush2.msra.mxu0 0.0
  %5091 = vmatprep.subr.mxu0 0.0
  %5092 = vmatpush2.msra.mxu0 0.0
  %5093 = vmatprep.subr.mxu0 0.0
  %5094 = vmatpush2.msra.mxu0 0.0
  %5095 = vmatprep.subr.mxu0 0.0
  %5096 = vmatpush2.msra.mxu0 0.0
  %5097 = vmatprep.subr.mxu0 0.0
  %5098 = vmatpush2.msra.mxu0 0.0
  %5099 = vmatprep.subr.mxu0 0.0
  %5100 = vmatpush2.msra.mxu0 0.0
  %5101 = vmatprep.subr.mxu0 0.0
  %5102 = vmatpush2.msra.mxu0 0.0
  %5103 = vmatprep.subr.mxu0 0.0
  %5104 = vmatpush2.msra.mxu0 0.0
  %5105 = vmatprep.subr.mxu0 0.0
  %5106 = vmatpush2.msra.mxu0 0.0
  %5107 = vmatprep.mubr.f32.mxu0 0.0
  %v5108 = vand.u32 %v4659, 4294901760
  %v5109 = vsub.f32 %v4659, %v5108
  %v5110 = vand.u32 %v5109, 4294901760
  %5111 = vmatmul.mubr.f32.gmra.mxu0 %v5110
  %v5112 = vpop.f32.mrf.mxu0
  %v5113 = vadd.f32 %v5024, %v5112
  %v5114 = vpop.f32.mrf.mxu0
  %5115 = vdwg.mxu0
  %5116 = vmatprep.subr.mxu0 0.0
  %v5117 = vand.u32 %v4675, 4294901760
  %v5118 = vsub.f32 %v4675, %v5117
  %v5119 = vand.u32 %v5118, 4294901760
  %5120 = vmatpush1.msra.mxu0 %v5119
  %5121 = vmatprep.subr.mxu0 0.0
  %v5122 = vand.u32 %v4674, 4294901760
  %v5123 = vsub.f32 %v4674, %v5122
  %v5124 = vand.u32 %v5123, 4294901760
  %5125 = vmatpush1.msra.mxu0 %v5124
  %5126 = vmatprep.subr.mxu0 0.0
  %v5127 = vand.u32 %v4673, 4294901760
  %v5128 = vsub.f32 %v4673, %v5127
  %v5129 = vand.u32 %v5128, 4294901760
  %5130 = vmatpush1.msra.mxu0 %v5129
  %5131 = vmatprep.subr.mxu0 0.0
  %v5132 = vand.u32 %v4672, 4294901760
  %v5133 = vsub.f32 %v4672, %v5132
  %v5134 = vand.u32 %v5133, 4294901760
  %5135 = vmatpush1.msra.mxu0 %v5134
  %5136 = vmatprep.subr.mxu0 0.0
  %v5137 = vand.u32 %v4671, 4294901760
  %v5138 = vsub.f32 %v4671, %v5137
  %v5139 = vand.u32 %v5138, 4294901760
  %5140 = vmatpush1.msra.mxu0 %v5139
  %5141 = vmatprep.subr.mxu0 0.0
  %v5142 = vand.u32 %v4670, 4294901760
  %v5143 = vsub.f32 %v4670, %v5142
  %v5144 = vand.u32 %v5143, 4294901760
  %5145 = vmatpush1.msra.mxu0 %v5144
  %5146 = vmatprep.subr.mxu0 0.0
  %v5147 = vand.u32 %v4669, 4294901760
  %v5148 = vsub.f32 %v4669, %v5147
  %v5149 = vand.u32 %v5148, 4294901760
  %5150 = vmatpush1.msra.mxu0 %v5149
  %5151 = vmatprep.subr.mxu0 0.0
  %v5152 = vand.u32 %v4668, 4294901760
  %v5153 = vsub.f32 %v4668, %v5152
  %v5154 = vand.u32 %v5153, 4294901760
  %5155 = vmatpush1.msra.mxu0 %v5154
  %5156 = vmatprep.subr.mxu0 0.0
  %v5157 = vand.u32 %v4667, 4294901760
  %v5158 = vsub.f32 %v4667, %v5157
  %v5159 = vand.u32 %v5158, 4294901760
  %5160 = vmatpush1.msra.mxu0 %v5159
  %5161 = vmatprep.subr.mxu0 0.0
  %v5162 = vand.u32 %v4666, 4294901760
  %v5163 = vsub.f32 %v4666, %v5162
  %v5164 = vand.u32 %v5163, 4294901760
  %5165 = vmatpush1.msra.mxu0 %v5164
  %5166 = vmatprep.subr.mxu0 0.0
  %v5167 = vand.u32 %v4665, 4294901760
  %v5168 = vsub.f32 %v4665, %v5167
  %v5169 = vand.u32 %v5168, 4294901760
  %5170 = vmatpush1.msra.mxu0 %v5169
  %5171 = vmatprep.subr.mxu0 0.0
  %v5172 = vand.u32 %v4664, 4294901760
  %v5173 = vsub.f32 %v4664, %v5172
  %v5174 = vand.u32 %v5173, 4294901760
  %5175 = vmatpush1.msra.mxu0 %v5174
  %5176 = vmatprep.subr.mxu0 0.0
  %v5177 = vand.u32 %v4663, 4294901760
  %v5178 = vsub.f32 %v4663, %v5177
  %v5179 = vand.u32 %v5178, 4294901760
  %5180 = vmatpush1.msra.mxu0 %v5179
  %5181 = vmatprep.subr.mxu0 0.0
  %v5182 = vand.u32 %v4662, 4294901760
  %v5183 = vsub.f32 %v4662, %v5182
  %v5184 = vand.u32 %v5183, 4294901760
  %5185 = vmatpush1.msra.mxu0 %v5184
  %5186 = vmatprep.subr.mxu0 0.0
  %v5187 = vand.u32 %v4661, 4294901760
  %v5188 = vsub.f32 %v4661, %v5187
  %v5189 = vand.u32 %v5188, 4294901760
  %5190 = vmatpush1.msra.mxu0 %v5189
  %5191 = vmatprep.subr.mxu0 0.0
  %v5192 = vand.u32 %v4660, 4294901760
  %v5193 = vsub.f32 %v4660, %v5192
  %v5194 = vand.u32 %v5193, 4294901760
  %5195 = vmatpush1.msra.mxu0 %v5194
  %5196 = vmatprep.subr.mxu0 0.0
  %5197 = vmatpush2.msra.mxu0 0.0
  %5198 = vmatprep.subr.mxu0 0.0
  %5199 = vmatpush2.msra.mxu0 0.0
  %5200 = vmatprep.subr.mxu0 0.0
  %5201 = vmatpush2.msra.mxu0 0.0
  %5202 = vmatprep.subr.mxu0 0.0
  %5203 = vmatpush2.msra.mxu0 0.0
  %5204 = vmatprep.subr.mxu0 0.0
  %5205 = vmatpush2.msra.mxu0 0.0
  %5206 = vmatprep.subr.mxu0 0.0
  %5207 = vmatpush2.msra.mxu0 0.0
  %5208 = vmatprep.subr.mxu0 0.0
  %5209 = vmatpush2.msra.mxu0 0.0
  %5210 = vmatprep.subr.mxu0 0.0
  %5211 = vmatpush2.msra.mxu0 0.0
  %5212 = vmatprep.subr.mxu0 0.0
  %5213 = vmatpush2.msra.mxu0 0.0
  %5214 = vmatprep.subr.mxu0 0.0
  %5215 = vmatpush2.msra.mxu0 0.0
  %5216 = vmatprep.subr.mxu0 0.0
  %5217 = vmatpush2.msra.mxu0 0.0
  %5218 = vmatprep.subr.mxu0 0.0
  %5219 = vmatpush2.msra.mxu0 0.0
  %5220 = vmatprep.subr.mxu0 0.0
  %5221 = vmatpush2.msra.mxu0 0.0
  %5222 = vmatprep.subr.mxu0 0.0
  %5223 = vmatpush2.msra.mxu0 0.0
  %5224 = vmatprep.subr.mxu0 0.0
  %5225 = vmatpush2.msra.mxu0 0.0
  %5226 = vmatprep.subr.mxu0 0.0
  %5227 = vmatpush2.msra.mxu0 0.0
  %5228 = vmatprep.mubr.f32.mxu0 0.0
  %v5229 = vand.u32 %v4659, 4294901760
  %5230 = vmatmul.mubr.f32.gmra.mxu0 %v5229
  %v5231 = vpop.f32.mrf.mxu0
  %v5232 = vadd.f32 %v5113, %v5231
  %v5233 = vpop.f32.mrf.mxu0
  %5234 = vdwg.mxu0
  %5235 = vmatprep.subr.mxu0 0.0
  %v5236 = vand.u32 %v4675, 4294901760
  %5237 = vmatpush1.msra.mxu0 %v5236
  %5238 = vmatprep.subr.mxu0 0.0
  %v5239 = vand.u32 %v4674, 4294901760
  %5240 = vmatpush1.msra.mxu0 %v5239
  %5241 = vmatprep.subr.mxu0 0.0
  %v5242 = vand.u32 %v4673, 4294901760
  %5243 = vmatpush1.msra.mxu0 %v5242
  %5244 = vmatprep.subr.mxu0 0.0
  %v5245 = vand.u32 %v4672, 4294901760
  %5246 = vmatpush1.msra.mxu0 %v5245
  %5247 = vmatprep.subr.mxu0 0.0
  %v5248 = vand.u32 %v4671, 4294901760
  %5249 = vmatpush1.msra.mxu0 %v5248
  %5250 = vmatprep.subr.mxu0 0.0
  %v5251 = vand.u32 %v4670, 4294901760
  %5252 = vmatpush1.msra.mxu0 %v5251
  %5253 = vmatprep.subr.mxu0 0.0
  %v5254 = vand.u32 %v4669, 4294901760
  %5255 = vmatpush1.msra.mxu0 %v5254
  %5256 = vmatprep.subr.mxu0 0.0
  %v5257 = vand.u32 %v4668, 4294901760
  %5258 = vmatpush1.msra.mxu0 %v5257
  %5259 = vmatprep.subr.mxu0 0.0
  %v5260 = vand.u32 %v4667, 4294901760
  %5261 = vmatpush1.msra.mxu0 %v5260
  %5262 = vmatprep.subr.mxu0 0.0
  %v5263 = vand.u32 %v4666, 4294901760
  %5264 = vmatpush1.msra.mxu0 %v5263
  %5265 = vmatprep.subr.mxu0 0.0
  %v5266 = vand.u32 %v4665, 4294901760
  %5267 = vmatpush1.msra.mxu0 %v5266
  %5268 = vmatprep.subr.mxu0 0.0
  %v5269 = vand.u32 %v4664, 4294901760
  %5270 = vmatpush1.msra.mxu0 %v5269
  %5271 = vmatprep.subr.mxu0 0.0
  %v5272 = vand.u32 %v4663, 4294901760
  %5273 = vmatpush1.msra.mxu0 %v5272
  %5274 = vmatprep.subr.mxu0 0.0
  %v5275 = vand.u32 %v4662, 4294901760
  %5276 = vmatpush1.msra.mxu0 %v5275
  %5277 = vmatprep.subr.mxu0 0.0
  %v5278 = vand.u32 %v4661, 4294901760
  %5279 = vmatpush1.msra.mxu0 %v5278
  %5280 = vmatprep.subr.mxu0 0.0
  %v5281 = vand.u32 %v4660, 4294901760
  %5282 = vmatpush1.msra.mxu0 %v5281
  %5283 = vmatprep.subr.mxu0 0.0
  %5284 = vmatpush2.msra.mxu0 0.0
  %5285 = vmatprep.subr.mxu0 0.0
  %5286 = vmatpush2.msra.mxu0 0.0
  %5287 = vmatprep.subr.mxu0 0.0
  %5288 = vmatpush2.msra.mxu0 0.0
  %5289 = vmatprep.subr.mxu0 0.0
  %5290 = vmatpush2.msra.mxu0 0.0
  %5291 = vmatprep.subr.mxu0 0.0
  %5292 = vmatpush2.msra.mxu0 0.0
  %5293 = vmatprep.subr.mxu0 0.0
  %5294 = vmatpush2.msra.mxu0 0.0
  %5295 = vmatprep.subr.mxu0 0.0
  %5296 = vmatpush2.msra.mxu0 0.0
  %5297 = vmatprep.subr.mxu0 0.0
  %5298 = vmatpush2.msra.mxu0 0.0
  %5299 = vmatprep.subr.mxu0 0.0
  %5300 = vmatpush2.msra.mxu0 0.0
  %5301 = vmatprep.subr.mxu0 0.0
  %5302 = vmatpush2.msra.mxu0 0.0
  %5303 = vmatprep.subr.mxu0 0.0
  %5304 = vmatpush2.msra.mxu0 0.0
  %5305 = vmatprep.subr.mxu0 0.0
  %5306 = vmatpush2.msra.mxu0 0.0
  %5307 = vmatprep.subr.mxu0 0.0
  %5308 = vmatpush2.msra.mxu0 0.0
  %5309 = vmatprep.subr.mxu0 0.0
  %5310 = vmatpush2.msra.mxu0 0.0
  %5311 = vmatprep.subr.mxu0 0.0
  %5312 = vmatpush2.msra.mxu0 0.0
  %5313 = vmatprep.subr.mxu0 0.0
  %5314 = vmatpush2.msra.mxu0 0.0
  %5315 = vmatprep.mubr.f32.mxu0 0.0
  %v5316 = vand.u32 %v4659, 4294901760
  %5317 = vmatmul.mubr.f32.gmra.mxu0 %v5316
  %v5318 = vpop.f32.mrf.mxu0
  %v5319 = vadd.f32 %v5232, %v5318
  %v5320 = vpop.f32.mrf.mxu0
  %5321 = vdwg.mxu0
  %v5322 = vmax.f32 %v5319, 0.0
  %v5323 = vld [vmem:[%s8] sm:$0xff]
  %v5324 = vld [vmem:[%s8 + $0x8] sm:$0xff]
  %v5325 = vld [vmem:[%s8 + $0x10] sm:$0xff]
  %v5326 = vld [vmem:[%s8 + $0x18] sm:$0xff]
  %v5327 = vld [vmem:[%s8 + $0x20] sm:$0xff]
  %v5328 = vld [vmem:[%s8 + $0x28] sm:$0xff]
  %v5329 = vld [vmem:[%s8 + $0x30] sm:$0xff]
  %v5330 = vld [vmem:[%s8 + $0x38] sm:$0xff]
  %v5331 = vld [vmem:[%s8 + $0x40] sm:$0xff]
  %v5332 = vld [vmem:[%s8 + $0x48] sm:$0xff]
  %v5333 = vld [vmem:[%s8 + $0x50] sm:$0xff]
  %v5334 = vld [vmem:[%s8 + $0x58] sm:$0xff]
  %v5335 = vld [vmem:[%s8 + $0x60] sm:$0xff]
  %v5336 = vld [vmem:[%s8 + $0x68] sm:$0xff]
  %v5337 = vld [vmem:[%s8 + $0x70] sm:$0xff]
  %v5338 = vld [vmem:[%s8 + $0x78] sm:$0xff]
  %v5339 = vld [vmem:[%s6 + $0x2] sm:$0x1]
  %v5340 = vlaneseq
  %v5341 = vshrl.u32 %v5340, 7
  %v5342 = vsub.s32 0, %v5341
  %v5343 = vrot.slane %v5339, %v5342
  %5344 = vmatprep.subr.mxu0 0.0
  %v5345 = vand.u32 %v5338, 4294901760
  %5346 = vmatpush1.msra.mxu0 %v5345
  %5347 = vmatprep.subr.mxu0 0.0
  %v5348 = vand.u32 %v5337, 4294901760
  %5349 = vmatpush1.msra.mxu0 %v5348
  %5350 = vmatprep.subr.mxu0 0.0
  %v5351 = vand.u32 %v5336, 4294901760
  %5352 = vmatpush1.msra.mxu0 %v5351
  %5353 = vmatprep.subr.mxu0 0.0
  %v5354 = vand.u32 %v5335, 4294901760
  %5355 = vmatpush1.msra.mxu0 %v5354
  %5356 = vmatprep.subr.mxu0 0.0
  %v5357 = vand.u32 %v5334, 4294901760
  %5358 = vmatpush1.msra.mxu0 %v5357
  %5359 = vmatprep.subr.mxu0 0.0
  %v5360 = vand.u32 %v5333, 4294901760
  %5361 = vmatpush1.msra.mxu0 %v5360
  %5362 = vmatprep.subr.mxu0 0.0
  %v5363 = vand.u32 %v5332, 4294901760
  %5364 = vmatpush1.msra.mxu0 %v5363
  %5365 = vmatprep.subr.mxu0 0.0
  %v5366 = vand.u32 %v5331, 4294901760
  %5367 = vmatpush1.msra.mxu0 %v5366
  %5368 = vmatprep.subr.mxu0 0.0
  %v5369 = vand.u32 %v5330, 4294901760
  %5370 = vmatpush1.msra.mxu0 %v5369
  %5371 = vmatprep.subr.mxu0 0.0
  %v5372 = vand.u32 %v5329, 4294901760
  %5373 = vmatpush1.msra.mxu0 %v5372
  %5374 = vmatprep.subr.mxu0 0.0
  %v5375 = vand.u32 %v5328, 4294901760
  %5376 = vmatpush1.msra.mxu0 %v5375
  %5377 = vmatprep.subr.mxu0 0.0
  %v5378 = vand.u32 %v5327, 4294901760
  %5379 = vmatpush1.msra.mxu0 %v5378
  %5380 = vmatprep.subr.mxu0 0.0
  %v5381 = vand.u32 %v5326, 4294901760
  %5382 = vmatpush1.msra.mxu0 %v5381
  %5383 = vmatprep.subr.mxu0 0.0
  %v5384 = vand.u32 %v5325, 4294901760
  %5385 = vmatpush1.msra.mxu0 %v5384
  %5386 = vmatprep.subr.mxu0 0.0
  %v5387 = vand.u32 %v5324, 4294901760
  %5388 = vmatpush1.msra.mxu0 %v5387
  %5389 = vmatprep.subr.mxu0 0.0
  %v5390 = vand.u32 %v5323, 4294901760
  %5391 = vmatpush1.msra.mxu0 %v5390
  %5392 = vmatprep.subr.mxu0 0.0
  %5393 = vmatpush2.msra.mxu0 0.0
  %5394 = vmatprep.subr.mxu0 0.0
  %5395 = vmatpush2.msra.mxu0 0.0
  %5396 = vmatprep.subr.mxu0 0.0
  %5397 = vmatpush2.msra.mxu0 0.0
  %5398 = vmatprep.subr.mxu0 0.0
  %5399 = vmatpush2.msra.mxu0 0.0
  %5400 = vmatprep.subr.mxu0 0.0
  %5401 = vmatpush2.msra.mxu0 0.0
  %5402 = vmatprep.subr.mxu0 0.0
  %5403 = vmatpush2.msra.mxu0 0.0
  %5404 = vmatprep.subr.mxu0 0.0
  %5405 = vmatpush2.msra.mxu0 0.0
  %5406 = vmatprep.subr.mxu0 0.0
  %5407 = vmatpush2.msra.mxu0 0.0
  %5408 = vmatprep.subr.mxu0 0.0
  %5409 = vmatpush2.msra.mxu0 0.0
  %5410 = vmatprep.subr.mxu0 0.0
  %5411 = vmatpush2.msra.mxu0 0.0
  %5412 = vmatprep.subr.mxu0 0.0
  %5413 = vmatpush2.msra.mxu0 0.0
  %5414 = vmatprep.subr.mxu0 0.0
  %5415 = vmatpush2.msra.mxu0 0.0
  %5416 = vmatprep.subr.mxu0 0.0
  %5417 = vmatpush2.msra.mxu0 0.0
  %5418 = vmatprep.subr.mxu0 0.0
  %5419 = vmatpush2.msra.mxu0 0.0
  %5420 = vmatprep.subr.mxu0 0.0
  %5421 = vmatpush2.msra.mxu0 0.0
  %5422 = vmatprep.subr.mxu0 0.0
  %5423 = vmatpush2.msra.mxu0 0.0
  %5424 = vmatprep.mubr.f32.mxu0 0.0
  %v5425 = vand.u32 %v5322, 4294901760
  %v5426 = vsub.f32 %v5322, %v5425
  %v5427 = vand.u32 %v5426, 4294901760
  %v5428 = vsub.f32 %v5426, %v5427
  %v5429 = vand.u32 %v5428, 4294901760
  %5430 = vmatmul.mubr.f32.gmra.mxu0 %v5429
  %v5431 = vpop.f32.mrf.mxu0
  %v5432 = vadd.f32 %v5343, %v5431
  %v5433 = vpop.f32.mrf.mxu0
  %5434 = vdwg.mxu0
  %5435 = vmatprep.subr.mxu0 0.0
  %v5436 = vand.u32 %v5338, 4294901760
  %v5437 = vsub.f32 %v5338, %v5436
  %v5438 = vand.u32 %v5437, 4294901760
  %v5439 = vsub.f32 %v5437, %v5438
  %v5440 = vand.u32 %v5439, 4294901760
  %5441 = vmatpush1.msra.mxu0 %v5440
  %5442 = vmatprep.subr.mxu0 0.0
  %v5443 = vand.u32 %v5337, 4294901760
  %v5444 = vsub.f32 %v5337, %v5443
  %v5445 = vand.u32 %v5444, 4294901760
  %v5446 = vsub.f32 %v5444, %v5445
  %v5447 = vand.u32 %v5446, 4294901760
  %5448 = vmatpush1.msra.mxu0 %v5447
  %5449 = vmatprep.subr.mxu0 0.0
  %v5450 = vand.u32 %v5336, 4294901760
  %v5451 = vsub.f32 %v5336, %v5450
  %v5452 = vand.u32 %v5451, 4294901760
  %v5453 = vsub.f32 %v5451, %v5452
  %v5454 = vand.u32 %v5453, 4294901760
  %5455 = vmatpush1.msra.mxu0 %v5454
  %5456 = vmatprep.subr.mxu0 0.0
  %v5457 = vand.u32 %v5335, 4294901760
  %v5458 = vsub.f32 %v5335, %v5457
  %v5459 = vand.u32 %v5458, 4294901760
  %v5460 = vsub.f32 %v5458, %v5459
  %v5461 = vand.u32 %v5460, 4294901760
  %5462 = vmatpush1.msra.mxu0 %v5461
  %5463 = vmatprep.subr.mxu0 0.0
  %v5464 = vand.u32 %v5334, 4294901760
  %v5465 = vsub.f32 %v5334, %v5464
  %v5466 = vand.u32 %v5465, 4294901760
  %v5467 = vsub.f32 %v5465, %v5466
  %v5468 = vand.u32 %v5467, 4294901760
  %5469 = vmatpush1.msra.mxu0 %v5468
  %5470 = vmatprep.subr.mxu0 0.0
  %v5471 = vand.u32 %v5333, 4294901760
  %v5472 = vsub.f32 %v5333, %v5471
  %v5473 = vand.u32 %v5472, 4294901760
  %v5474 = vsub.f32 %v5472, %v5473
  %v5475 = vand.u32 %v5474, 4294901760
  %5476 = vmatpush1.msra.mxu0 %v5475
  %5477 = vmatprep.subr.mxu0 0.0
  %v5478 = vand.u32 %v5332, 4294901760
  %v5479 = vsub.f32 %v5332, %v5478
  %v5480 = vand.u32 %v5479, 4294901760
  %v5481 = vsub.f32 %v5479, %v5480
  %v5482 = vand.u32 %v5481, 4294901760
  %5483 = vmatpush1.msra.mxu0 %v5482
  %5484 = vmatprep.subr.mxu0 0.0
  %v5485 = vand.u32 %v5331, 4294901760
  %v5486 = vsub.f32 %v5331, %v5485
  %v5487 = vand.u32 %v5486, 4294901760
  %v5488 = vsub.f32 %v5486, %v5487
  %v5489 = vand.u32 %v5488, 4294901760
  %5490 = vmatpush1.msra.mxu0 %v5489
  %5491 = vmatprep.subr.mxu0 0.0
  %v5492 = vand.u32 %v5330, 4294901760
  %v5493 = vsub.f32 %v5330, %v5492
  %v5494 = vand.u32 %v5493, 4294901760
  %v5495 = vsub.f32 %v5493, %v5494
  %v5496 = vand.u32 %v5495, 4294901760
  %5497 = vmatpush1.msra.mxu0 %v5496
  %5498 = vmatprep.subr.mxu0 0.0
  %v5499 = vand.u32 %v5329, 4294901760
  %v5500 = vsub.f32 %v5329, %v5499
  %v5501 = vand.u32 %v5500, 4294901760
  %v5502 = vsub.f32 %v5500, %v5501
  %v5503 = vand.u32 %v5502, 4294901760
  %5504 = vmatpush1.msra.mxu0 %v5503
  %5505 = vmatprep.subr.mxu0 0.0
  %v5506 = vand.u32 %v5328, 4294901760
  %v5507 = vsub.f32 %v5328, %v5506
  %v5508 = vand.u32 %v5507, 4294901760
  %v5509 = vsub.f32 %v5507, %v5508
  %v5510 = vand.u32 %v5509, 4294901760
  %5511 = vmatpush1.msra.mxu0 %v5510
  %5512 = vmatprep.subr.mxu0 0.0
  %v5513 = vand.u32 %v5327, 4294901760
  %v5514 = vsub.f32 %v5327, %v5513
  %v5515 = vand.u32 %v5514, 4294901760
  %v5516 = vsub.f32 %v5514, %v5515
  %v5517 = vand.u32 %v5516, 4294901760
  %5518 = vmatpush1.msra.mxu0 %v5517
  %5519 = vmatprep.subr.mxu0 0.0
  %v5520 = vand.u32 %v5326, 4294901760
  %v5521 = vsub.f32 %v5326, %v5520
  %v5522 = vand.u32 %v5521, 4294901760
  %v5523 = vsub.f32 %v5521, %v5522
  %v5524 = vand.u32 %v5523, 4294901760
  %5525 = vmatpush1.msra.mxu0 %v5524
  %5526 = vmatprep.subr.mxu0 0.0
  %v5527 = vand.u32 %v5325, 4294901760
  %v5528 = vsub.f32 %v5325, %v5527
  %v5529 = vand.u32 %v5528, 4294901760
  %v5530 = vsub.f32 %v5528, %v5529
  %v5531 = vand.u32 %v5530, 4294901760
  %5532 = vmatpush1.msra.mxu0 %v5531
  %5533 = vmatprep.subr.mxu0 0.0
  %v5534 = vand.u32 %v5324, 4294901760
  %v5535 = vsub.f32 %v5324, %v5534
  %v5536 = vand.u32 %v5535, 4294901760
  %v5537 = vsub.f32 %v5535, %v5536
  %v5538 = vand.u32 %v5537, 4294901760
  %5539 = vmatpush1.msra.mxu0 %v5538
  %5540 = vmatprep.subr.mxu0 0.0
  %v5541 = vand.u32 %v5323, 4294901760
  %v5542 = vsub.f32 %v5323, %v5541
  %v5543 = vand.u32 %v5542, 4294901760
  %v5544 = vsub.f32 %v5542, %v5543
  %v5545 = vand.u32 %v5544, 4294901760
  %5546 = vmatpush1.msra.mxu0 %v5545
  %5547 = vmatprep.subr.mxu0 0.0
  %5548 = vmatpush2.msra.mxu0 0.0
  %5549 = vmatprep.subr.mxu0 0.0
  %5550 = vmatpush2.msra.mxu0 0.0
  %5551 = vmatprep.subr.mxu0 0.0
  %5552 = vmatpush2.msra.mxu0 0.0
  %5553 = vmatprep.subr.mxu0 0.0
  %5554 = vmatpush2.msra.mxu0 0.0
  %5555 = vmatprep.subr.mxu0 0.0
  %5556 = vmatpush2.msra.mxu0 0.0
  %5557 = vmatprep.subr.mxu0 0.0
  %5558 = vmatpush2.msra.mxu0 0.0
  %5559 = vmatprep.subr.mxu0 0.0
  %5560 = vmatpush2.msra.mxu0 0.0
  %5561 = vmatprep.subr.mxu0 0.0
  %5562 = vmatpush2.msra.mxu0 0.0
  %5563 = vmatprep.subr.mxu0 0.0
  %5564 = vmatpush2.msra.mxu0 0.0
  %5565 = vmatprep.subr.mxu0 0.0
  %5566 = vmatpush2.msra.mxu0 0.0
  %5567 = vmatprep.subr.mxu0 0.0
  %5568 = vmatpush2.msra.mxu0 0.0
  %5569 = vmatprep.subr.mxu0 0.0
  %5570 = vmatpush2.msra.mxu0 0.0
  %5571 = vmatprep.subr.mxu0 0.0
  %5572 = vmatpush2.msra.mxu0 0.0
  %5573 = vmatprep.subr.mxu0 0.0
  %5574 = vmatpush2.msra.mxu0 0.0
  %5575 = vmatprep.subr.mxu0 0.0
  %5576 = vmatpush2.msra.mxu0 0.0
  %5577 = vmatprep.subr.mxu0 0.0
  %5578 = vmatpush2.msra.mxu0 0.0
  %5579 = vmatprep.mubr.f32.mxu0 0.0
  %v5580 = vand.u32 %v5322, 4294901760
  %5581 = vmatmul.mubr.f32.gmra.mxu0 %v5580
  %v5582 = vpop.f32.mrf.mxu0
  %v5583 = vadd.f32 %v5432, %v5582
  %v5584 = vpop.f32.mrf.mxu0
  %5585 = vdwg.mxu0
  %5586 = vmatprep.subr.mxu0 0.0
  %v5587 = vand.u32 %v5338, 4294901760
  %v5588 = vsub.f32 %v5338, %v5587
  %5589 = vmatpush1.msra.mxu0 %v5588
  %5590 = vmatprep.subr.mxu0 0.0
  %v5591 = vand.u32 %v5337, 4294901760
  %v5592 = vsub.f32 %v5337, %v5591
  %5593 = vmatpush1.msra.mxu0 %v5592
  %5594 = vmatprep.subr.mxu0 0.0
  %v5595 = vand.u32 %v5336, 4294901760
  %v5596 = vsub.f32 %v5336, %v5595
  %5597 = vmatpush1.msra.mxu0 %v5596
  %5598 = vmatprep.subr.mxu0 0.0
  %v5599 = vand.u32 %v5335, 4294901760
  %v5600 = vsub.f32 %v5335, %v5599
  %5601 = vmatpush1.msra.mxu0 %v5600
  %5602 = vmatprep.subr.mxu0 0.0
  %v5603 = vand.u32 %v5334, 4294901760
  %v5604 = vsub.f32 %v5334, %v5603
  %5605 = vmatpush1.msra.mxu0 %v5604
  %5606 = vmatprep.subr.mxu0 0.0
  %v5607 = vand.u32 %v5333, 4294901760
  %v5608 = vsub.f32 %v5333, %v5607
  %5609 = vmatpush1.msra.mxu0 %v5608
  %5610 = vmatprep.subr.mxu0 0.0
  %v5611 = vand.u32 %v5332, 4294901760
  %v5612 = vsub.f32 %v5332, %v5611
  %5613 = vmatpush1.msra.mxu0 %v5612
  %5614 = vmatprep.subr.mxu0 0.0
  %v5615 = vand.u32 %v5331, 4294901760
  %v5616 = vsub.f32 %v5331, %v5615
  %5617 = vmatpush1.msra.mxu0 %v5616
  %5618 = vmatprep.subr.mxu0 0.0
  %v5619 = vand.u32 %v5330, 4294901760
  %v5620 = vsub.f32 %v5330, %v5619
  %5621 = vmatpush1.msra.mxu0 %v5620
  %5622 = vmatprep.subr.mxu0 0.0
  %v5623 = vand.u32 %v5329, 4294901760
  %v5624 = vsub.f32 %v5329, %v5623
  %5625 = vmatpush1.msra.mxu0 %v5624
  %5626 = vmatprep.subr.mxu0 0.0
  %v5627 = vand.u32 %v5328, 4294901760
  %v5628 = vsub.f32 %v5328, %v5627
  %5629 = vmatpush1.msra.mxu0 %v5628
  %5630 = vmatprep.subr.mxu0 0.0
  %v5631 = vand.u32 %v5327, 4294901760
  %v5632 = vsub.f32 %v5327, %v5631
  %5633 = vmatpush1.msra.mxu0 %v5632
  %5634 = vmatprep.subr.mxu0 0.0
  %v5635 = vand.u32 %v5326, 4294901760
  %v5636 = vsub.f32 %v5326, %v5635
  %5637 = vmatpush1.msra.mxu0 %v5636
  %5638 = vmatprep.subr.mxu0 0.0
  %v5639 = vand.u32 %v5325, 4294901760
  %v5640 = vsub.f32 %v5325, %v5639
  %5641 = vmatpush1.msra.mxu0 %v5640
  %5642 = vmatprep.subr.mxu0 0.0
  %v5643 = vand.u32 %v5324, 4294901760
  %v5644 = vsub.f32 %v5324, %v5643
  %5645 = vmatpush1.msra.mxu0 %v5644
  %5646 = vmatprep.subr.mxu0 0.0
  %v5647 = vand.u32 %v5323, 4294901760
  %v5648 = vsub.f32 %v5323, %v5647
  %5649 = vmatpush1.msra.mxu0 %v5648
  %5650 = vmatprep.subr.mxu0 0.0
  %5651 = vmatpush2.msra.mxu0 0.0
  %5652 = vmatprep.subr.mxu0 0.0
  %5653 = vmatpush2.msra.mxu0 0.0
  %5654 = vmatprep.subr.mxu0 0.0
  %5655 = vmatpush2.msra.mxu0 0.0
  %5656 = vmatprep.subr.mxu0 0.0
  %5657 = vmatpush2.msra.mxu0 0.0
  %5658 = vmatprep.subr.mxu0 0.0
  %5659 = vmatpush2.msra.mxu0 0.0
  %5660 = vmatprep.subr.mxu0 0.0
  %5661 = vmatpush2.msra.mxu0 0.0
  %5662 = vmatprep.subr.mxu0 0.0
  %5663 = vmatpush2.msra.mxu0 0.0
  %5664 = vmatprep.subr.mxu0 0.0
  %5665 = vmatpush2.msra.mxu0 0.0
  %5666 = vmatprep.subr.mxu0 0.0
  %5667 = vmatpush2.msra.mxu0 0.0
  %5668 = vmatprep.subr.mxu0 0.0
  %5669 = vmatpush2.msra.mxu0 0.0
  %5670 = vmatprep.subr.mxu0 0.0
  %5671 = vmatpush2.msra.mxu0 0.0
  %5672 = vmatprep.subr.mxu0 0.0
  %5673 = vmatpush2.msra.mxu0 0.0
  %5674 = vmatprep.subr.mxu0 0.0
  %5675 = vmatpush2.msra.mxu0 0.0
  %5676 = vmatprep.subr.mxu0 0.0
  %5677 = vmatpush2.msra.mxu0 0.0
  %5678 = vmatprep.subr.mxu0 0.0
  %5679 = vmatpush2.msra.mxu0 0.0
  %5680 = vmatprep.subr.mxu0 0.0
  %5681 = vmatpush2.msra.mxu0 0.0
  %5682 = vmatprep.mubr.f32.mxu0 0.0
  %v5683 = vand.u32 %v5322, 4294901760
  %v5684 = vsub.f32 %v5322, %v5683
  %5685 = vmatmul.mubr.f32.gmra.mxu0 %v5684
  %v5686 = vpop.f32.mrf.mxu0
  %v5687 = vadd.f32 %v5583, %v5686
  %v5688 = vpop.f32.mrf.mxu0
  %5689 = vdwg.mxu0
  %5690 = vmatprep.subr.mxu0 0.0
  %v5691 = vand.u32 %v5338, 4294901760
  %5692 = vmatpush1.msra.mxu0 %v5691
  %5693 = vmatprep.subr.mxu0 0.0
  %v5694 = vand.u32 %v5337, 4294901760
  %5695 = vmatpush1.msra.mxu0 %v5694
  %5696 = vmatprep.subr.mxu0 0.0
  %v5697 = vand.u32 %v5336, 4294901760
  %5698 = vmatpush1.msra.mxu0 %v5697
  %5699 = vmatprep.subr.mxu0 0.0
  %v5700 = vand.u32 %v5335, 4294901760
  %5701 = vmatpush1.msra.mxu0 %v5700
  %5702 = vmatprep.subr.mxu0 0.0
  %v5703 = vand.u32 %v5334, 4294901760
  %5704 = vmatpush1.msra.mxu0 %v5703
  %5705 = vmatprep.subr.mxu0 0.0
  %v5706 = vand.u32 %v5333, 4294901760
  %5707 = vmatpush1.msra.mxu0 %v5706
  %5708 = vmatprep.subr.mxu0 0.0
  %v5709 = vand.u32 %v5332, 4294901760
  %5710 = vmatpush1.msra.mxu0 %v5709
  %5711 = vmatprep.subr.mxu0 0.0
  %v5712 = vand.u32 %v5331, 4294901760
  %5713 = vmatpush1.msra.mxu0 %v5712
  %5714 = vmatprep.subr.mxu0 0.0
  %v5715 = vand.u32 %v5330, 4294901760
  %5716 = vmatpush1.msra.mxu0 %v5715
  %5717 = vmatprep.subr.mxu0 0.0
  %v5718 = vand.u32 %v5329, 4294901760
  %5719 = vmatpush1.msra.mxu0 %v5718
  %5720 = vmatprep.subr.mxu0 0.0
  %v5721 = vand.u32 %v5328, 4294901760
  %5722 = vmatpush1.msra.mxu0 %v5721
  %5723 = vmatprep.subr.mxu0 0.0
  %v5724 = vand.u32 %v5327, 4294901760
  %5725 = vmatpush1.msra.mxu0 %v5724
  %5726 = vmatprep.subr.mxu0 0.0
  %v5727 = vand.u32 %v5326, 4294901760
  %5728 = vmatpush1.msra.mxu0 %v5727
  %5729 = vmatprep.subr.mxu0 0.0
  %v5730 = vand.u32 %v5325, 4294901760
  %5731 = vmatpush1.msra.mxu0 %v5730
  %5732 = vmatprep.subr.mxu0 0.0
  %v5733 = vand.u32 %v5324, 4294901760
  %5734 = vmatpush1.msra.mxu0 %v5733
  %5735 = vmatprep.subr.mxu0 0.0
  %v5736 = vand.u32 %v5323, 4294901760
  %5737 = vmatpush1.msra.mxu0 %v5736
  %5738 = vmatprep.subr.mxu0 0.0
  %5739 = vmatpush2.msra.mxu0 0.0
  %5740 = vmatprep.subr.mxu0 0.0
  %5741 = vmatpush2.msra.mxu0 0.0
  %5742 = vmatprep.subr.mxu0 0.0
  %5743 = vmatpush2.msra.mxu0 0.0
  %5744 = vmatprep.subr.mxu0 0.0
  %5745 = vmatpush2.msra.mxu0 0.0
  %5746 = vmatprep.subr.mxu0 0.0
  %5747 = vmatpush2.msra.mxu0 0.0
  %5748 = vmatprep.subr.mxu0 0.0
  %5749 = vmatpush2.msra.mxu0 0.0
  %5750 = vmatprep.subr.mxu0 0.0
  %5751 = vmatpush2.msra.mxu0 0.0
  %5752 = vmatprep.subr.mxu0 0.0
  %5753 = vmatpush2.msra.mxu0 0.0
  %5754 = vmatprep.subr.mxu0 0.0
  %5755 = vmatpush2.msra.mxu0 0.0
  %5756 = vmatprep.subr.mxu0 0.0
  %5757 = vmatpush2.msra.mxu0 0.0
  %5758 = vmatprep.subr.mxu0 0.0
  %5759 = vmatpush2.msra.mxu0 0.0
  %5760 = vmatprep.subr.mxu0 0.0
  %5761 = vmatpush2.msra.mxu0 0.0
  %5762 = vmatprep.subr.mxu0 0.0
  %5763 = vmatpush2.msra.mxu0 0.0
  %5764 = vmatprep.subr.mxu0 0.0
  %5765 = vmatpush2.msra.mxu0 0.0
  %5766 = vmatprep.subr.mxu0 0.0
  %5767 = vmatpush2.msra.mxu0 0.0
  %5768 = vmatprep.subr.mxu0 0.0
  %5769 = vmatpush2.msra.mxu0 0.0
  %5770 = vmatprep.mubr.f32.mxu0 0.0
  %v5771 = vand.u32 %v5322, 4294901760
  %v5772 = vsub.f32 %v5322, %v5771
  %v5773 = vand.u32 %v5772, 4294901760
  %5774 = vmatmul.mubr.f32.gmra.mxu0 %v5773
  %v5775 = vpop.f32.mrf.mxu0
  %v5776 = vadd.f32 %v5687, %v5775
  %v5777 = vpop.f32.mrf.mxu0
  %5778 = vdwg.mxu0
  %5779 = vmatprep.subr.mxu0 0.0
  %v5780 = vand.u32 %v5338, 4294901760
  %v5781 = vsub.f32 %v5338, %v5780
  %v5782 = vand.u32 %v5781, 4294901760
  %5783 = vmatpush1.msra.mxu0 %v5782
  %5784 = vmatprep.subr.mxu0 0.0
  %v5785 = vand.u32 %v5337, 4294901760
  %v5786 = vsub.f32 %v5337, %v5785
  %v5787 = vand.u32 %v5786, 4294901760
  %5788 = vmatpush1.msra.mxu0 %v5787
  %5789 = vmatprep.subr.mxu0 0.0
  %v5790 = vand.u32 %v5336, 4294901760
  %v5791 = vsub.f32 %v5336, %v5790
  %v5792 = vand.u32 %v5791, 4294901760
  %5793 = vmatpush1.msra.mxu0 %v5792
  %5794 = vmatprep.subr.mxu0 0.0
  %v5795 = vand.u32 %v5335, 4294901760
  %v5796 = vsub.f32 %v5335, %v5795
  %v5797 = vand.u32 %v5796, 4294901760
  %5798 = vmatpush1.msra.mxu0 %v5797
  %5799 = vmatprep.subr.mxu0 0.0
  %v5800 = vand.u32 %v5334, 4294901760
  %v5801 = vsub.f32 %v5334, %v5800
  %v5802 = vand.u32 %v5801, 4294901760
  %5803 = vmatpush1.msra.mxu0 %v5802
  %5804 = vmatprep.subr.mxu0 0.0
  %v5805 = vand.u32 %v5333, 4294901760
  %v5806 = vsub.f32 %v5333, %v5805
  %v5807 = vand.u32 %v5806, 4294901760
  %5808 = vmatpush1.msra.mxu0 %v5807
  %5809 = vmatprep.subr.mxu0 0.0
  %v5810 = vand.u32 %v5332, 4294901760
  %v5811 = vsub.f32 %v5332, %v5810
  %v5812 = vand.u32 %v5811, 4294901760
  %5813 = vmatpush1.msra.mxu0 %v5812
  %5814 = vmatprep.subr.mxu0 0.0
  %v5815 = vand.u32 %v5331, 4294901760
  %v5816 = vsub.f32 %v5331, %v5815
  %v5817 = vand.u32 %v5816, 4294901760
  %5818 = vmatpush1.msra.mxu0 %v5817
  %5819 = vmatprep.subr.mxu0 0.0
  %v5820 = vand.u32 %v5330, 4294901760
  %v5821 = vsub.f32 %v5330, %v5820
  %v5822 = vand.u32 %v5821, 4294901760
  %5823 = vmatpush1.msra.mxu0 %v5822
  %5824 = vmatprep.subr.mxu0 0.0
  %v5825 = vand.u32 %v5329, 4294901760
  %v5826 = vsub.f32 %v5329, %v5825
  %v5827 = vand.u32 %v5826, 4294901760
  %5828 = vmatpush1.msra.mxu0 %v5827
  %5829 = vmatprep.subr.mxu0 0.0
  %v5830 = vand.u32 %v5328, 4294901760
  %v5831 = vsub.f32 %v5328, %v5830
  %v5832 = vand.u32 %v5831, 4294901760
  %5833 = vmatpush1.msra.mxu0 %v5832
  %5834 = vmatprep.subr.mxu0 0.0
  %v5835 = vand.u32 %v5327, 4294901760
  %v5836 = vsub.f32 %v5327, %v5835
  %v5837 = vand.u32 %v5836, 4294901760
  %5838 = vmatpush1.msra.mxu0 %v5837
  %5839 = vmatprep.subr.mxu0 0.0
  %v5840 = vand.u32 %v5326, 4294901760
  %v5841 = vsub.f32 %v5326, %v5840
  %v5842 = vand.u32 %v5841, 4294901760
  %5843 = vmatpush1.msra.mxu0 %v5842
  %5844 = vmatprep.subr.mxu0 0.0
  %v5845 = vand.u32 %v5325, 4294901760
  %v5846 = vsub.f32 %v5325, %v5845
  %v5847 = vand.u32 %v5846, 4294901760
  %5848 = vmatpush1.msra.mxu0 %v5847
  %5849 = vmatprep.subr.mxu0 0.0
  %v5850 = vand.u32 %v5324, 4294901760
  %v5851 = vsub.f32 %v5324, %v5850
  %v5852 = vand.u32 %v5851, 4294901760
  %5853 = vmatpush1.msra.mxu0 %v5852
  %5854 = vmatprep.subr.mxu0 0.0
  %v5855 = vand.u32 %v5323, 4294901760
  %v5856 = vsub.f32 %v5323, %v5855
  %v5857 = vand.u32 %v5856, 4294901760
  %5858 = vmatpush1.msra.mxu0 %v5857
  %5859 = vmatprep.subr.mxu0 0.0
  %5860 = vmatpush2.msra.mxu0 0.0
  %5861 = vmatprep.subr.mxu0 0.0
  %5862 = vmatpush2.msra.mxu0 0.0
  %5863 = vmatprep.subr.mxu0 0.0
  %5864 = vmatpush2.msra.mxu0 0.0
  %5865 = vmatprep.subr.mxu0 0.0
  %5866 = vmatpush2.msra.mxu0 0.0
  %5867 = vmatprep.subr.mxu0 0.0
  %5868 = vmatpush2.msra.mxu0 0.0
  %5869 = vmatprep.subr.mxu0 0.0
  %5870 = vmatpush2.msra.mxu0 0.0
  %5871 = vmatprep.subr.mxu0 0.0
  %5872 = vmatpush2.msra.mxu0 0.0
  %5873 = vmatprep.subr.mxu0 0.0
  %5874 = vmatpush2.msra.mxu0 0.0
  %5875 = vmatprep.subr.mxu0 0.0
  %5876 = vmatpush2.msra.mxu0 0.0
  %5877 = vmatprep.subr.mxu0 0.0
  %5878 = vmatpush2.msra.mxu0 0.0
  %5879 = vmatprep.subr.mxu0 0.0
  %5880 = vmatpush2.msra.mxu0 0.0
  %5881 = vmatprep.subr.mxu0 0.0
  %5882 = vmatpush2.msra.mxu0 0.0
  %5883 = vmatprep.subr.mxu0 0.0
  %5884 = vmatpush2.msra.mxu0 0.0
  %5885 = vmatprep.subr.mxu0 0.0
  %5886 = vmatpush2.msra.mxu0 0.0
  %5887 = vmatprep.subr.mxu0 0.0
  %5888 = vmatpush2.msra.mxu0 0.0
  %5889 = vmatprep.subr.mxu0 0.0
  %5890 = vmatpush2.msra.mxu0 0.0
  %5891 = vmatprep.mubr.f32.mxu0 0.0
  %v5892 = vand.u32 %v5322, 4294901760
  %5893 = vmatmul.mubr.f32.gmra.mxu0 %v5892
  %v5894 = vpop.f32.mrf.mxu0
  %v5895 = vadd.f32 %v5776, %v5894
  %v5896 = vpop.f32.mrf.mxu0
  %5897 = vdwg.mxu0
  %5898 = vmatprep.subr.mxu0 0.0
  %v5899 = vand.u32 %v5338, 4294901760
  %5900 = vmatpush1.msra.mxu0 %v5899
  %5901 = vmatprep.subr.mxu0 0.0
  %v5902 = vand.u32 %v5337, 4294901760
  %5903 = vmatpush1.msra.mxu0 %v5902
  %5904 = vmatprep.subr.mxu0 0.0
  %v5905 = vand.u32 %v5336, 4294901760
  %5906 = vmatpush1.msra.mxu0 %v5905
  %5907 = vmatprep.subr.mxu0 0.0
  %v5908 = vand.u32 %v5335, 4294901760
  %5909 = vmatpush1.msra.mxu0 %v5908
  %5910 = vmatprep.subr.mxu0 0.0
  %v5911 = vand.u32 %v5334, 4294901760
  %5912 = vmatpush1.msra.mxu0 %v5911
  %5913 = vmatprep.subr.mxu0 0.0
  %v5914 = vand.u32 %v5333, 4294901760
  %5915 = vmatpush1.msra.mxu0 %v5914
  %5916 = vmatprep.subr.mxu0 0.0
  %v5917 = vand.u32 %v5332, 4294901760
  %5918 = vmatpush1.msra.mxu0 %v5917
  %5919 = vmatprep.subr.mxu0 0.0
  %v5920 = vand.u32 %v5331, 4294901760
  %5921 = vmatpush1.msra.mxu0 %v5920
  %5922 = vmatprep.subr.mxu0 0.0
  %v5923 = vand.u32 %v5330, 4294901760
  %5924 = vmatpush1.msra.mxu0 %v5923
  %5925 = vmatprep.subr.mxu0 0.0
  %v5926 = vand.u32 %v5329, 4294901760
  %5927 = vmatpush1.msra.mxu0 %v5926
  %5928 = vmatprep.subr.mxu0 0.0
  %v5929 = vand.u32 %v5328, 4294901760
  %5930 = vmatpush1.msra.mxu0 %v5929
  %5931 = vmatprep.subr.mxu0 0.0
  %v5932 = vand.u32 %v5327, 4294901760
  %5933 = vmatpush1.msra.mxu0 %v5932
  %5934 = vmatprep.subr.mxu0 0.0
  %v5935 = vand.u32 %v5326, 4294901760
  %5936 = vmatpush1.msra.mxu0 %v5935
  %5937 = vmatprep.subr.mxu0 0.0
  %v5938 = vand.u32 %v5325, 4294901760
  %5939 = vmatpush1.msra.mxu0 %v5938
  %5940 = vmatprep.subr.mxu0 0.0
  %v5941 = vand.u32 %v5324, 4294901760
  %5942 = vmatpush1.msra.mxu0 %v5941
  %5943 = vmatprep.subr.mxu0 0.0
  %v5944 = vand.u32 %v5323, 4294901760
  %5945 = vmatpush1.msra.mxu0 %v5944
  %5946 = vmatprep.subr.mxu0 0.0
  %5947 = vmatpush2.msra.mxu0 0.0
  %5948 = vmatprep.subr.mxu0 0.0
  %5949 = vmatpush2.msra.mxu0 0.0
  %5950 = vmatprep.subr.mxu0 0.0
  %5951 = vmatpush2.msra.mxu0 0.0
  %5952 = vmatprep.subr.mxu0 0.0
  %5953 = vmatpush2.msra.mxu0 0.0
  %5954 = vmatprep.subr.mxu0 0.0
  %5955 = vmatpush2.msra.mxu0 0.0
  %5956 = vmatprep.subr.mxu0 0.0
  %5957 = vmatpush2.msra.mxu0 0.0
  %5958 = vmatprep.subr.mxu0 0.0
  %5959 = vmatpush2.msra.mxu0 0.0
  %5960 = vmatprep.subr.mxu0 0.0
  %5961 = vmatpush2.msra.mxu0 0.0
  %5962 = vmatprep.subr.mxu0 0.0
  %5963 = vmatpush2.msra.mxu0 0.0
  %5964 = vmatprep.subr.mxu0 0.0
  %5965 = vmatpush2.msra.mxu0 0.0
  %5966 = vmatprep.subr.mxu0 0.0
  %5967 = vmatpush2.msra.mxu0 0.0
  %5968 = vmatprep.subr.mxu0 0.0
  %5969 = vmatpush2.msra.mxu0 0.0
  %5970 = vmatprep.subr.mxu0 0.0
  %5971 = vmatpush2.msra.mxu0 0.0
  %5972 = vmatprep.subr.mxu0 0.0
  %5973 = vmatpush2.msra.mxu0 0.0
  %5974 = vmatprep.subr.mxu0 0.0
  %5975 = vmatpush2.msra.mxu0 0.0
  %5976 = vmatprep.subr.mxu0 0.0
  %5977 = vmatpush2.msra.mxu0 0.0
  %5978 = vmatprep.mubr.f32.mxu0 0.0
  %v5979 = vand.u32 %v5322, 4294901760
  %5980 = vmatmul.mubr.f32.gmra.mxu0 %v5979
  %v5981 = vpop.f32.mrf.mxu0
  %v5982 = vadd.f32 %v5895, %v5981
  %v5983 = vpop.f32.mrf.mxu0
  %5984 = vdwg.mxu0
  %v5985 = vlaneseq
  %v5986 = vand.u32 %v5985, 127
  %vm5987 = vcmp.eq.s32.totalorder %v5986, 3
  %v5988 = vand.u32 2147483647, %v5982
  %v5989 = vsel %vm5987, %v5988, %v5982
  %vm5990 = vcmask 31744
  %5991 = vst.msk [vmem:[%s9] sm:$0xff] %vm5990, %v5989
  // Predicated region
  $region38: #{tpu_custom_call.1} parent=0 // pred_check
    _
  $region39: #{tpu_custom_call.1} parent=0 // pred_check_branch
    %5993 = sbr.rel (0) target = $region41
  $region40: #{tpu_custom_call.1} parent=0 // pred_region
    _
  $region41: #{tpu_custom_call.1} parent=0 // pred_fallthru
    _
  // Predicated region
  $region42: #{tpu_custom_call.1} parent=0 // pred_check
    _
  $region43: #{tpu_custom_call.1} parent=0 // pred_check_branch
    %5995 = sbr.rel (0) target = $region45
  $region44: #{tpu_custom_call.1} parent=0 // pred_region
    _
  $region45: #{tpu_custom_call.1} parent=0 // pred_fallthru
    _

</llo_original>
